<compile_context>
chip_gen: v5e
topology: v5e:2x2
jax: 0.10.0
libtpu: 0.0.40
codegen_flags: <defaults>
</compile_context>

<pallas_src>
import functools

import jax
import jax.numpy as jnp
from jax import lax
from jax.experimental import pallas as pl
from jax.experimental.pallas import tpu as pltpu

LANE = 128  # TPU lane width; out-channel dim of on-chip intermediates pads to this.


def _block_kernel(p1_ref, w1_ref, b1_ref, w2_ref, b2_ref, o_ref):
    # p1_ref: (Bt, H1, W1, 9*Cin) bf16  conv1 im2col patches (packed in wrapper)
    # w1_ref: (9*Cin, Cp)         bf16  conv1 weights as one MXU slab
    # b1_ref: (1, Cp)             f32
    # w2_ref: (9, Cp, Cp)         bf16  conv2 weights, one (Cp,Cp) slab per tap
    # b2_ref: (1, Cp)             f32
    # o_ref : (Bt, H2, W2, Cout)        real (unpadded) output channels
    Bt, H1, W1, K1 = p1_ref.shape
    _, H2, W2, Cout = o_ref.shape
    Cp = w1_ref.shape[1]
    M1 = Bt * H1 * W1
    M2 = Bt * H2 * W2

    # ---- conv1 + bias + ReLU: single im2col matmul (bf16 in, f32 acc) ----
    p1 = p1_ref[...].reshape(M1, K1)
    h = jnp.dot(p1, w1_ref[...], preferred_element_type=jnp.float32)
    h = jnp.maximum(h + b1_ref[...], 0.0)
    # Padded lanes of h are exactly 0 (zero-padded w1/b1 + ReLU), so they are
    # numerically inert in conv2.  Keep h in bf16 as the conv2 LHS.
    h = h.astype(jnp.bfloat16).reshape(Bt, H1, W1, Cp)

    # ---- conv2 + bias + ReLU: per-tap shift-and-accumulate on lane-dense h ----
    # 9 matmuls of (M2, Cp) @ (Cp, Cp); never materializes the (M2, 9*Cp) slab.
    acc = jnp.zeros((M2, Cp), jnp.float32)
    for tap in range(9):                 # static unroll (== fori_loop unroll=True)
        ky, kx = tap // 3, tap % 3
        lhs = h[:, ky:ky + H2, kx:kx + W2, :].reshape(M2, Cp)
        acc = acc + jnp.dot(lhs, w2_ref[tap],
                            preferred_element_type=jnp.float32)
    # TODO(synk): on v6e/v7x (256x256 MXU) pack 2 taps per matmul (K=2*Cp) and,
    # for large spatial sizes, use W-strips that are multiples of 8 with
    # pltpu.roll for the kx shifts instead of sublane-offset slices.

    out = jnp.maximum(acc + b2_ref[...], 0.0)
    o_ref[...] = out.reshape(Bt, H2, W2, Cp)[..., :Cout].astype(o_ref.dtype)


def _prep_params(w1, b1, w2, b2, cin, cout, cp, wdtype):
    """HWIO weights -> lane-aligned bf16 slabs; biases -> padded f32 rows."""
    # conv1: row (ky*3+kx)*Cin + c  <->  w1[ky, kx, c, :]  (matches patch concat order)
    w1_slab = jnp.zeros((9 * cin, cp), wdtype).at[:, :cout].set(
        w1.reshape(9 * cin, cout).astype(wdtype))
    # conv2: one (Cp, Cp) slab per tap, zero on padded channels.
    w2_taps = jnp.zeros((9, cp, cp), wdtype).at[:, :cout, :cout].set(
        w2.reshape(9, cout, cout).astype(wdtype))
    b1_p = jnp.zeros((1, cp), jnp.float32).at[0, :cout].set(b1.astype(jnp.float32))
    b2_p = jnp.zeros((1, cp), jnp.float32).at[0, :cout].set(b2.astype(jnp.float32))
    return w1_slab, b1_p, w2_taps, b2_p


@functools.partial(jax.jit, static_argnames=("batch_tile",))
def block_forward_nhwc(x_nhwc, w1, b1, w2, b2, batch_tile=None):
    """x_nhwc: (B, H, W, Cin); w*: HWIO (3,3,in,out); b*: (out,). Returns NHWC."""
    B, H, W, Cin = x_nhwc.shape
    Cout = w1.shape[-1]
    H1, W1 = H - 2, W - 2
    H2, W2 = H - 4, W - 4
    Cp = pl.cdiv(Cout, LANE) * LANE
    cdt = jnp.bfloat16                      # matmul operand dtype (MXU native)

    # Batch tiling: >=2 grid steps by default (v7x megacore + pipeline overlap),
    # ~8 steps for larger batches so DMA prefetch/writeback hides HBM traffic.
    if batch_tile is None:
        bt = max(1, B // 8)
        while B % bt:
            bt -= 1
    else:
        bt = batch_tile
        assert B % bt == 0, "batch must be divisible by batch_tile"

    # Pre-pack conv1 im2col patches in the wrapper (cheap HBM-side XLA op) so
    # the kernel avoids the lane-sparse 9-way channel concat on Cin=4 data.
    patches = jnp.concatenate(
        [x_nhwc[:, ky:ky + H1, kx:kx + W1, :]
         for ky in range(3) for kx in range(3)], axis=-1).astype(cdt)

    w1_slab, b1_p, w2_taps, b2_p = _prep_params(w1, b1, w2, b2,
                                                Cin, Cout, Cp, cdt)

    # Explicit per-step VMEM budget (double-buffered I/O + weights + temps).
    m1, m2 = bt * H1 * W1, bt * H2 * W2
    est = (2 * m1 * 9 * Cin * 2                          # input patches (bf16) x2 bufs
           + 2 * m2 * Cout * x_nhwc.dtype.itemsize       # output block x2 bufs
           + 2 * (9 * Cin * Cp + 9 * Cp * Cp) * 2        # weight slabs (bf16) x2 bufs
           + 2 * 2 * Cp * 4                              # biases (f32) x2 bufs
           + m1 * Cp * (4 + 2)                           # h (f32 epilogue + bf16 copy)
           + m2 * Cp * (4 + 4 + 2))                      # acc + out + per-tap lhs
    vmem_limit = min(64 * 1024 * 1024, max(int(1.25 * est), 16 * 1024 * 1024))

    out = pl.pallas_call(
        _block_kernel,
        out_shape=jax.ShapeDtypeStruct((B, H2, W2, Cout), x_nhwc.dtype),
        grid=(B // bt,),
        in_specs=[
            pl.BlockSpec((bt, H1, W1, 9 * Cin), lambda b: (b, 0, 0, 0)),
            pl.BlockSpec((9 * Cin, Cp), lambda b: (0, 0)),
            pl.BlockSpec((1, Cp), lambda b: (0, 0)),
            pl.BlockSpec((9, Cp, Cp), lambda b: (0, 0, 0)),
            pl.BlockSpec((1, Cp), lambda b: (0, 0)),
        ],
        out_specs=pl.BlockSpec((bt, H2, W2, Cout), lambda b: (b, 0, 0, 0)),
        compiler_params=pltpu.CompilerParams(
            dimension_semantics=("parallel",),
            vmem_limit_bytes=vmem_limit),
        # TODO(synk): for large H/W, add a second "parallel" grid axis over H
        # with a 4-row halo so the per-step working set fits v7x's 64 MiB VMEM.
    )(patches, w1_slab, b1_p, w2_taps, b2_p)
    return out


def block_forward(x_nchw, w1, b1, w2, b2, batch_tile=None):
    """PyTorch-layout entry point: x (B, Cin, H, W) -> (B, Cout, H-4, W-4)."""
    x = jnp.transpose(x_nchw, (0, 2, 3, 1))               # NHWC
    out = block_forward_nhwc(x, w1, b1, w2, b2, batch_tile=batch_tile)
    return jnp.transpose(out, (0, 3, 1, 2))               # back to NCHW


def reference_forward(x_nchw, w1, b1, w2, b2):
    """Pure-JAX f32 reference for correctness checking."""
    x = jnp.transpose(x_nchw, (0, 2, 3, 1))
    dn = ("NHWC", "HWIO", "NHWC")
    h = lax.conv_general_dilated(x, w1, (1, 1), "VALID", dimension_numbers=dn,
                                 precision=lax.Precision.HIGHEST)
    h = jnp.maximum(h + b1, 0.0)
    o = lax.conv_general_dilated(h, w2, (1, 1), "VALID", dimension_numbers=dn,
                                 precision=lax.Precision.HIGHEST)
    o = jnp.maximum(o + b2, 0.0)
    return jnp.transpose(o, (0, 3, 1, 2))


def init_params(key, in_channels, out_channels):
    """Deterministic init mirroring nn.Conv2d default (uniform +/-1/sqrt(fan_in))."""
    k1, k2, k3, k4 = jax.random.split(key, 4)
    bnd1 = 1.0 / jnp.sqrt(in_channels * 9)
    bnd2 = 1.0 / jnp.sqrt(out_channels * 9)
    w1 = jax.random.uniform(k1, (3, 3, in_channels, out_channels),
                            jnp.float32, -bnd1, bnd1)
    b1 = jax.random.uniform(k2, (out_channels,), jnp.float32, -bnd1, bnd1)
    w2 = jax.random.uniform(k3, (3, 3, out_channels, out_channels),
                            jnp.float32, -bnd2, bnd2)
    b2 = jax.random.uniform(k4, (out_channels,), jnp.float32, -bnd2, bnd2)
    return w1, b1, w2, b2


if __name__ == "__main__":
    key = jax.random.PRNGKey(0)
    kx, kp = jax.random.split(key)

    B, Cin, H, W = 2, 4, 16, 16
    Cout = 8

    x = jax.random.normal(kx, (B, Cin, H, W), jnp.float32)
    w1, b1, w2, b2 = init_params(kp, Cin, Cout)

    out = jax.block_until_ready(block_forward(x, w1, b1, w2, b2))
    ref = jax.block_until_ready(reference_forward(x, w1, b1, w2, b2))

    assert out.shape == (B, Cout, H - 4, W - 4), out.shape
    # Tolerance loosened vs. the f32 version: matmul operands are bf16 (MXU
    # native) with f32 accumulation / epilogue.
    assert jnp.allclose(out, ref, atol=3e-2, rtol=3e-2), \
        float(jnp.max(jnp.abs(out - ref)))

    print("KERNEL_OK")
</pallas_src>

<mosaic_0001>
module attributes {stable_mosaic.version = 11 : i64} {
  func.func @_block_kernel(%arg0: i32, %arg1: memref<1x14x14x36xbf16, #tpu.memory_space<vmem>>, %arg2: memref<36x128xbf16, #tpu.memory_space<vmem>>, %arg3: memref<1x128xf32, #tpu.memory_space<vmem>>, %arg4: memref<9x128x128xbf16, #tpu.memory_space<vmem>>, %arg5: memref<1x128xf32, #tpu.memory_space<vmem>>, %arg6: memref<1x12x12x8xf32, #tpu.memory_space<vmem>>) attributes {dimension_semantics = [#tpu.dimension_semantics<parallel>], iteration_bounds = array<i64: 2>, scalar_prefetch = 0 : i64, scratch_operands = 0 : i64, tpu.core_type = #tpu.core_type<tc>, window_params = [{transform_indices = @transform_0, window_bounds = array<i64: 1, 14, 14, 36>}, {pipeline_mode = #tpu.pipeline_mode<synchronous>, transform_indices = @transform_1, window_bounds = array<i64: 36, 128>}, {pipeline_mode = #tpu.pipeline_mode<synchronous>, transform_indices = @transform_2, window_bounds = array<i64: 1, 128>}, {pipeline_mode = #tpu.pipeline_mode<synchronous>, transform_indices = @transform_3, window_bounds = array<i64: 9, 128, 128>}, {pipeline_mode = #tpu.pipeline_mode<synchronous>, transform_indices = @transform_4, window_bounds = array<i64: 1, 128>}, {transform_indices = @transform_5, window_bounds = array<i64: 1, 12, 12, 8>}]} {
    %c0 = arith.constant 0 : index
    %c0_0 = arith.constant 0 : index
    %c0_1 = arith.constant 0 : index
    %c0_2 = arith.constant 0 : index
    %0 = vector.load %arg1[%c0, %c0_0, %c0_1, %c0_2] : memref<1x14x14x36xbf16, #tpu.memory_space<vmem>>, vector<1x14x14x36xbf16>
    %1 = vector.shape_cast %0 : vector<1x14x14x36xbf16> to vector<196x36xbf16>
    %c0_3 = arith.constant 0 : index
    %c0_4 = arith.constant 0 : index
    %2 = vector.load %arg2[%c0_3, %c0_4] : memref<36x128xbf16, #tpu.memory_space<vmem>>, vector<36x128xbf16>
    %cst = arith.constant dense<0.000000e+00> : vector<196x128xf32>
    %3 = tpu.matmul %1, %2, %cst {dimension_numbers = #tpu.dot_dimension_numbers<[1], [0], [0], [1], [0, 0, 1, 1], [], []>} : vector<196x36xbf16>, vector<36x128xbf16>, vector<196x128xf32> -> vector<196x128xf32>
    %c0_5 = arith.constant 0 : index
    %c0_6 = arith.constant 0 : index
    %4 = vector.load %arg3[%c0_5, %c0_6] : memref<1x128xf32, #tpu.memory_space<vmem>>, vector<1x128xf32>
    %5 = vector.broadcast %4 : vector<1x128xf32> to vector<196x128xf32>
    %6 = arith.addf %3, %5 : vector<196x128xf32>
    %cst_7 = arith.constant 0.000000e+00 : f32
    %7 = vector.broadcast %cst_7 : f32 to vector<196x128xf32>
    %8 = arith.maximumf %6, %7 : vector<196x128xf32>
    %9 = arith.truncf %8 : vector<196x128xf32> to vector<196x128xbf16>
    %10 = vector.shape_cast %9 : vector<196x128xbf16> to vector<1x14x14x128xbf16>
    %cst_8 = arith.constant 0.000000e+00 : f32
    %11 = vector.broadcast %cst_8 : f32 to vector<144x128xf32>
    %12 = vector.extract_strided_slice %10 {offsets = [0, 0, 0, 0], sizes = [1, 12, 12, 128], strides = [1, 1, 1, 1]} : vector<1x14x14x128xbf16> to vector<1x12x12x128xbf16>
    %13 = vector.shape_cast %12 : vector<1x12x12x128xbf16> to vector<144x128xbf16>
    %c0_9 = arith.constant 0 : index
    %c0_10 = arith.constant 0 : index
    %c0_11 = arith.constant 0 : index
    %14 = vector.load %arg4[%c0_9, %c0_10, %c0_11] : memref<9x128x128xbf16, #tpu.memory_space<vmem>>, vector<1x128x128xbf16>
    %15 = vector.shape_cast %14 : vector<1x128x128xbf16> to vector<128x128xbf16>
    %cst_12 = arith.constant dense<0.000000e+00> : vector<144x128xf32>
    %16 = tpu.matmul %13, %15, %cst_12 {dimension_numbers = #tpu.dot_dimension_numbers<[1], [0], [0], [1], [0, 0, 1, 1], [], []>} : vector<144x128xbf16>, vector<128x128xbf16>, vector<144x128xf32> -> vector<144x128xf32>
    %17 = arith.addf %11, %16 : vector<144x128xf32>
    %18 = vector.extract_strided_slice %10 {offsets = [0, 0, 1, 0], sizes = [1, 12, 12, 128], strides = [1, 1, 1, 1]} : vector<1x14x14x128xbf16> to vector<1x12x12x128xbf16>
    %19 = vector.shape_cast %18 : vector<1x12x12x128xbf16> to vector<144x128xbf16>
    %c1 = arith.constant 1 : index
    %c0_13 = arith.constant 0 : index
    %c0_14 = arith.constant 0 : index
    %20 = vector.load %arg4[%c1, %c0_13, %c0_14] : memref<9x128x128xbf16, #tpu.memory_space<vmem>>, vector<1x128x128xbf16>
    %21 = vector.shape_cast %20 : vector<1x128x128xbf16> to vector<128x128xbf16>
    %cst_15 = arith.constant dense<0.000000e+00> : vector<144x128xf32>
    %22 = tpu.matmul %19, %21, %cst_15 {dimension_numbers = #tpu.dot_dimension_numbers<[1], [0], [0], [1], [0, 0, 1, 1], [], []>} : vector<144x128xbf16>, vector<128x128xbf16>, vector<144x128xf32> -> vector<144x128xf32>
    %23 = arith.addf %17, %22 : vector<144x128xf32>
    %24 = vector.extract_strided_slice %10 {offsets = [0, 0, 2, 0], sizes = [1, 12, 12, 128], strides = [1, 1, 1, 1]} : vector<1x14x14x128xbf16> to vector<1x12x12x128xbf16>
    %25 = vector.shape_cast %24 : vector<1x12x12x128xbf16> to vector<144x128xbf16>
    %c2 = arith.constant 2 : index
    %c0_16 = arith.constant 0 : index
    %c0_17 = arith.constant 0 : index
    %26 = vector.load %arg4[%c2, %c0_16, %c0_17] : memref<9x128x128xbf16, #tpu.memory_space<vmem>>, vector<1x128x128xbf16>
    %27 = vector.shape_cast %26 : vector<1x128x128xbf16> to vector<128x128xbf16>
    %cst_18 = arith.constant dense<0.000000e+00> : vector<144x128xf32>
    %28 = tpu.matmul %25, %27, %cst_18 {dimension_numbers = #tpu.dot_dimension_numbers<[1], [0], [0], [1], [0, 0, 1, 1], [], []>} : vector<144x128xbf16>, vector<128x128xbf16>, vector<144x128xf32> -> vector<144x128xf32>
    %29 = arith.addf %23, %28 : vector<144x128xf32>
    %30 = vector.extract_strided_slice %10 {offsets = [0, 1, 0, 0], sizes = [1, 12, 12, 128], strides = [1, 1, 1, 1]} : vector<1x14x14x128xbf16> to vector<1x12x12x128xbf16>
    %31 = vector.shape_cast %30 : vector<1x12x12x128xbf16> to vector<144x128xbf16>
    %c3 = arith.constant 3 : index
    %c0_19 = arith.constant 0 : index
    %c0_20 = arith.constant 0 : index
    %32 = vector.load %arg4[%c3, %c0_19, %c0_20] : memref<9x128x128xbf16, #tpu.memory_space<vmem>>, vector<1x128x128xbf16>
    %33 = vector.shape_cast %32 : vector<1x128x128xbf16> to vector<128x128xbf16>
    %cst_21 = arith.constant dense<0.000000e+00> : vector<144x128xf32>
    %34 = tpu.matmul %31, %33, %cst_21 {dimension_numbers = #tpu.dot_dimension_numbers<[1], [0], [0], [1], [0, 0, 1, 1], [], []>} : vector<144x128xbf16>, vector<128x128xbf16>, vector<144x128xf32> -> vector<144x128xf32>
    %35 = arith.addf %29, %34 : vector<144x128xf32>
    %36 = vector.extract_strided_slice %10 {offsets = [0, 1, 1, 0], sizes = [1, 12, 12, 128], strides = [1, 1, 1, 1]} : vector<1x14x14x128xbf16> to vector<1x12x12x128xbf16>
    %37 = vector.shape_cast %36 : vector<1x12x12x128xbf16> to vector<144x128xbf16>
    %c4 = arith.constant 4 : index
    %c0_22 = arith.constant 0 : index
    %c0_23 = arith.constant 0 : index
    %38 = vector.load %arg4[%c4, %c0_22, %c0_23] : memref<9x128x128xbf16, #tpu.memory_space<vmem>>, vector<1x128x128xbf16>
    %39 = vector.shape_cast %38 : vector<1x128x128xbf16> to vector<128x128xbf16>
    %cst_24 = arith.constant dense<0.000000e+00> : vector<144x128xf32>
    %40 = tpu.matmul %37, %39, %cst_24 {dimension_numbers = #tpu.dot_dimension_numbers<[1], [0], [0], [1], [0, 0, 1, 1], [], []>} : vector<144x128xbf16>, vector<128x128xbf16>, vector<144x128xf32> -> vector<144x128xf32>
    %41 = arith.addf %35, %40 : vector<144x128xf32>
    %42 = vector.extract_strided_slice %10 {offsets = [0, 1, 2, 0], sizes = [1, 12, 12, 128], strides = [1, 1, 1, 1]} : vector<1x14x14x128xbf16> to vector<1x12x12x128xbf16>
    %43 = vector.shape_cast %42 : vector<1x12x12x128xbf16> to vector<144x128xbf16>
    %c5 = arith.constant 5 : index
    %c0_25 = arith.constant 0 : index
    %c0_26 = arith.constant 0 : index
    %44 = vector.load %arg4[%c5, %c0_25, %c0_26] : memref<9x128x128xbf16, #tpu.memory_space<vmem>>, vector<1x128x128xbf16>
    %45 = vector.shape_cast %44 : vector<1x128x128xbf16> to vector<128x128xbf16>
    %cst_27 = arith.constant dense<0.000000e+00> : vector<144x128xf32>
    %46 = tpu.matmul %43, %45, %cst_27 {dimension_numbers = #tpu.dot_dimension_numbers<[1], [0], [0], [1], [0, 0, 1, 1], [], []>} : vector<144x128xbf16>, vector<128x128xbf16>, vector<144x128xf32> -> vector<144x128xf32>
    %47 = arith.addf %41, %46 : vector<144x128xf32>
    %48 = vector.extract_strided_slice %10 {offsets = [0, 2, 0, 0], sizes = [1, 12, 12, 128], strides = [1, 1, 1, 1]} : vector<1x14x14x128xbf16> to vector<1x12x12x128xbf16>
    %49 = vector.shape_cast %48 : vector<1x12x12x128xbf16> to vector<144x128xbf16>
    %c6 = arith.constant 6 : index
    %c0_28 = arith.constant 0 : index
    %c0_29 = arith.constant 0 : index
    %50 = vector.load %arg4[%c6, %c0_28, %c0_29] : memref<9x128x128xbf16, #tpu.memory_space<vmem>>, vector<1x128x128xbf16>
    %51 = vector.shape_cast %50 : vector<1x128x128xbf16> to vector<128x128xbf16>
    %cst_30 = arith.constant dense<0.000000e+00> : vector<144x128xf32>
    %52 = tpu.matmul %49, %51, %cst_30 {dimension_numbers = #tpu.dot_dimension_numbers<[1], [0], [0], [1], [0, 0, 1, 1], [], []>} : vector<144x128xbf16>, vector<128x128xbf16>, vector<144x128xf32> -> vector<144x128xf32>
    %53 = arith.addf %47, %52 : vector<144x128xf32>
    %54 = vector.extract_strided_slice %10 {offsets = [0, 2, 1, 0], sizes = [1, 12, 12, 128], strides = [1, 1, 1, 1]} : vector<1x14x14x128xbf16> to vector<1x12x12x128xbf16>
    %55 = vector.shape_cast %54 : vector<1x12x12x128xbf16> to vector<144x128xbf16>
    %c7 = arith.constant 7 : index
    %c0_31 = arith.constant 0 : index
    %c0_32 = arith.constant 0 : index
    %56 = vector.load %arg4[%c7, %c0_31, %c0_32] : memref<9x128x128xbf16, #tpu.memory_space<vmem>>, vector<1x128x128xbf16>
    %57 = vector.shape_cast %56 : vector<1x128x128xbf16> to vector<128x128xbf16>
    %cst_33 = arith.constant dense<0.000000e+00> : vector<144x128xf32>
    %58 = tpu.matmul %55, %57, %cst_33 {dimension_numbers = #tpu.dot_dimension_numbers<[1], [0], [0], [1], [0, 0, 1, 1], [], []>} : vector<144x128xbf16>, vector<128x128xbf16>, vector<144x128xf32> -> vector<144x128xf32>
    %59 = arith.addf %53, %58 : vector<144x128xf32>
    %60 = vector.extract_strided_slice %10 {offsets = [0, 2, 2, 0], sizes = [1, 12, 12, 128], strides = [1, 1, 1, 1]} : vector<1x14x14x128xbf16> to vector<1x12x12x128xbf16>
    %61 = vector.shape_cast %60 : vector<1x12x12x128xbf16> to vector<144x128xbf16>
    %c8 = arith.constant 8 : index
    %c0_34 = arith.constant 0 : index
    %c0_35 = arith.constant 0 : index
    %62 = vector.load %arg4[%c8, %c0_34, %c0_35] : memref<9x128x128xbf16, #tpu.memory_space<vmem>>, vector<1x128x128xbf16>
    %63 = vector.shape_cast %62 : vector<1x128x128xbf16> to vector<128x128xbf16>
    %cst_36 = arith.constant dense<0.000000e+00> : vector<144x128xf32>
    %64 = tpu.matmul %61, %63, %cst_36 {dimension_numbers = #tpu.dot_dimension_numbers<[1], [0], [0], [1], [0, 0, 1, 1], [], []>} : vector<144x128xbf16>, vector<128x128xbf16>, vector<144x128xf32> -> vector<144x128xf32>
    %65 = arith.addf %59, %64 : vector<144x128xf32>
    %c0_37 = arith.constant 0 : index
    %c0_38 = arith.constant 0 : index
    %66 = vector.load %arg5[%c0_37, %c0_38] : memref<1x128xf32, #tpu.memory_space<vmem>>, vector<1x128xf32>
    %67 = vector.broadcast %66 : vector<1x128xf32> to vector<144x128xf32>
    %68 = arith.addf %65, %67 : vector<144x128xf32>
    %cst_39 = arith.constant 0.000000e+00 : f32
    %69 = vector.broadcast %cst_39 : f32 to vector<144x128xf32>
    %70 = arith.maximumf %68, %69 : vector<144x128xf32>
    %71 = vector.shape_cast %70 : vector<144x128xf32> to vector<1x12x12x128xf32>
    %72 = vector.extract_strided_slice %71 {offsets = [0, 0, 0, 0], sizes = [1, 12, 12, 8], strides = [1, 1, 1, 1]} : vector<1x12x12x128xf32> to vector<1x12x12x8xf32>
    %c0_40 = arith.constant 0 : index
    %c0_41 = arith.constant 0 : index
    %c0_42 = arith.constant 0 : index
    %c0_43 = arith.constant 0 : index
    %73 = vector.load %arg6[%c0_40, %c0_41, %c0_42, %c0_43] : memref<1x12x12x8xf32, #tpu.memory_space<vmem>>, vector<1x12x12x8xf32>
    tpu.vector_store %arg6[%c0_40, %c0_41, %c0_42, %c0_43], %72 {strides = array<i32>} : memref<1x12x12x8xf32, #tpu.memory_space<vmem>>, vector<1x12x12x8xf32>,
    return
  }
  func.func @transform_0(%arg0: i32) -> (i32, i32, i32, i32) {
    %c0_i32 = arith.constant 0 : i32
    %c0_i32_0 = arith.constant 0 : i32
    %c0_i32_1 = arith.constant 0 : i32
    %c0_i32_2 = arith.constant 0 : i32
    return %arg0, %c0_i32, %c0_i32_0, %c0_i32_1 : i32, i32, i32, i32
  }
  func.func @transform_1(%arg0: i32) -> (i32, i32) {
    %c0_i32 = arith.constant 0 : i32
    %c0_i32_0 = arith.constant 0 : i32
    %c0_i32_1 = arith.constant 0 : i32
    return %c0_i32, %c0_i32_0 : i32, i32
  }
  func.func @transform_2(%arg0: i32) -> (i32, i32) {
    %c0_i32 = arith.constant 0 : i32
    %c0_i32_0 = arith.constant 0 : i32
    %c0_i32_1 = arith.constant 0 : i32
    return %c0_i32, %c0_i32_0 : i32, i32
  }
  func.func @transform_3(%arg0: i32) -> (i32, i32, i32) {
    %c0_i32 = arith.constant 0 : i32
    %c0_i32_0 = arith.constant 0 : i32
    %c0_i32_1 = arith.constant 0 : i32
    %c0_i32_2 = arith.constant 0 : i32
    return %c0_i32, %c0_i32_0, %c0_i32_1 : i32, i32, i32
  }
  func.func @transform_4(%arg0: i32) -> (i32, i32) {
    %c0_i32 = arith.constant 0 : i32
    %c0_i32_0 = arith.constant 0 : i32
    %c0_i32_1 = arith.constant 0 : i32
    return %c0_i32, %c0_i32_0 : i32, i32
  }
  func.func @transform_5(%arg0: i32) -> (i32, i32, i32, i32) {
    %c0_i32 = arith.constant 0 : i32
    %c0_i32_0 = arith.constant 0 : i32
    %c0_i32_1 = arith.constant 0 : i32
    %c0_i32_2 = arith.constant 0 : i32
    return %arg0, %c0_i32, %c0_i32_0, %c0_i32_1 : i32, i32, i32, i32
  }
}

</mosaic_0001>

<llo_original>
// kernel: block_forward_nhwc.1
$region0: #{block_forward_nhwc.1}
  #allocation0 [shape = 'u32[]', space=smem, size = 0x4, offset = 0x4, fixed_abs, tag = 'smem constant byte address 0x4 - core index']
  #allocation1 [shape = 'u32[72,128]{1,0:T(1,128)}', space=vmem, size = 0x9000, scoped, tag = 'internal scratch']
  %s0 = inlined_call_operand.vmem [shape: bf16[2,14,14,36], index: 0, kind: input, shape index: {}]
  %s1 = inlined_call_operand.vmem [shape: bf16[36,128], index: 1, kind: input, shape index: {}]
  %s2 = inlined_call_operand.vmem [shape: f32[1,128], index: 2, kind: input, shape index: {}]
  %s3 = inlined_call_operand.vmem [shape: bf16[9,128,128], index: 3, kind: input, shape index: {}]
  %s4 = inlined_call_operand.vmem [shape: f32[1,128], index: 4, kind: input, shape index: {}]
  %s5 = inlined_call_operand.vmem [shape: f32[2,12,12,8], index: 5, kind: output, shape index: {}]
  %s6 = sld [smem:[#allocation0]]
  $region53: #{block_forward_nhwc.1} parent=0
    _
  %s8 = ssub.s32 1, %s6
  %s9 = scalar_select 0, %s8, %s6
  loop: start=0, step=1, limit=4
  $region2: #{block_forward_nhwc.1} parent=0 // loop_pre_header
    _
  $region3: #{block_forward_nhwc.1} parent=0 // loop_header
    %s11 = sphi 0, %s15
    %p12 = scmp.ge.s32.totalorder %s11, 4
    %s21 = sphi 0, %s23
    %s24 = sphi 0, %s21
    %s25 = sphi 0, %s24
    %s41 = sphi 0, %s25
    %s45 = sphi 0, %s45
    %s47 = sphi 0, %s45
    %s48 = sphi 0, %s47
    %s62 = sphi 0, %s48
    %s66 = sphi 0, %s66
    %s68 = sphi 0, %s66
    %s69 = sphi 0, %s68
    %s83 = sphi 0, %s69
    %s87 = sphi 0, %s87
    %s89 = sphi 0, %s87
    %s90 = sphi 0, %s89
    %s104 = sphi 0, %s90
    %s108 = sphi 0, %s108
    %s110 = sphi 0, %s108
    %s111 = sphi 0, %s110
    %s125 = sphi 0, %s111
    %s131 = sphi 0, %s133
    %s134 = sphi 0, %s131
    %s135 = sphi 0, %s134
    %s151 = sphi 0, %s135
  $region4: #{block_forward_nhwc.1} parent=0 // loop_header_branch
    %14 = sbr.rel (%p12) target = $region8
  $region5: #{block_forward_nhwc.1} parent=0 // loop_body
    %s16 = ssub.s32 %s11, 1
    %s17 = ssub.s32 %s11, 2
    %s18 = sadd.s32 %s11, 1
    %s19 = ssub.s32 %s11, %s18
    %p20 = scmp.eq.s32.totalorder %s19, 0
    %s22 = sadd.s32 %s21, 1
    %s23 = scalar_select %p20, %s21, %s22
    %p26 = pneg %p20
    %p27 = scmp.eq.s32.totalorder %s11, 1
    %p28 = por %p26, %p27
    %p29 = scmp.ne.s32.totalorder %s21, %s24
    %p30 = scmp.eq.s32.totalorder %s11, 0
    %p31 = por %p29, %p30
    %p32 = scmp.ne.s32.totalorder %s21, %s24
    %p33 = scmp.eq.s32.totalorder %s16, 1
    %p34 = por %p32, %p33
    %p35 = scmp.ne.s32.totalorder %s24, %s25
    %p36 = scmp.eq.s32.totalorder %s16, 0
    %p37 = por %p35, %p36
    %p38 = scmp.ne.s32.totalorder %s24, %s25
    %p39 = scmp.eq.s32.totalorder %s17, 1
    %p40 = por %p38, %p39
    %p42 = scmp.ne.s32.totalorder %s25, %s41
    %p43 = scmp.eq.s32.totalorder %s17, 0
    %p44 = por %p42, %p43
    %s46 = sadd.s32 %s45, 1
    %p49 = scmp.eq.s32.totalorder %s11, 1
    %p50 = scmp.ne.s32.totalorder %s45, %s47
    %p51 = scmp.eq.s32.totalorder %s11, 0
    %p52 = por %p50, %p51
    %p53 = scmp.ne.s32.totalorder %s45, %s47
    %p54 = scmp.eq.s32.totalorder %s16, 1
    %p55 = por %p53, %p54
    %p56 = scmp.ne.s32.totalorder %s47, %s48
    %p57 = scmp.eq.s32.totalorder %s16, 0
    %p58 = por %p56, %p57
    %p59 = scmp.ne.s32.totalorder %s47, %s48
    %p60 = scmp.eq.s32.totalorder %s17, 1
    %p61 = por %p59, %p60
    %p63 = scmp.ne.s32.totalorder %s48, %s62
    %p64 = scmp.eq.s32.totalorder %s17, 0
    %p65 = por %p63, %p64
    %s67 = sadd.s32 %s66, 1
    %p70 = scmp.eq.s32.totalorder %s11, 1
    %p71 = scmp.ne.s32.totalorder %s66, %s68
    %p72 = scmp.eq.s32.totalorder %s11, 0
    %p73 = por %p71, %p72
    %p74 = scmp.ne.s32.totalorder %s66, %s68
    %p75 = scmp.eq.s32.totalorder %s16, 1
    %p76 = por %p74, %p75
    %p77 = scmp.ne.s32.totalorder %s68, %s69
    %p78 = scmp.eq.s32.totalorder %s16, 0
    %p79 = por %p77, %p78
    %p80 = scmp.ne.s32.totalorder %s68, %s69
    %p81 = scmp.eq.s32.totalorder %s17, 1
    %p82 = por %p80, %p81
    %p84 = scmp.ne.s32.totalorder %s69, %s83
    %p85 = scmp.eq.s32.totalorder %s17, 0
    %p86 = por %p84, %p85
    %s88 = sadd.s32 %s87, 1
    %p91 = scmp.eq.s32.totalorder %s11, 1
    %p92 = scmp.ne.s32.totalorder %s87, %s89
    %p93 = scmp.eq.s32.totalorder %s11, 0
    %p94 = por %p92, %p93
    %p95 = scmp.ne.s32.totalorder %s87, %s89
    %p96 = scmp.eq.s32.totalorder %s16, 1
    %p97 = por %p95, %p96
    %p98 = scmp.ne.s32.totalorder %s89, %s90
    %p99 = scmp.eq.s32.totalorder %s16, 0
    %p100 = por %p98, %p99
    %p101 = scmp.ne.s32.totalorder %s89, %s90
    %p102 = scmp.eq.s32.totalorder %s17, 1
    %p103 = por %p101, %p102
    %p105 = scmp.ne.s32.totalorder %s90, %s104
    %p106 = scmp.eq.s32.totalorder %s17, 0
    %p107 = por %p105, %p106
    %s109 = sadd.s32 %s108, 1
    %p112 = scmp.eq.s32.totalorder %s11, 1
    %p113 = scmp.ne.s32.totalorder %s108, %s110
    %p114 = scmp.eq.s32.totalorder %s11, 0
    %p115 = por %p113, %p114
    %p116 = scmp.ne.s32.totalorder %s108, %s110
    %p117 = scmp.eq.s32.totalorder %s16, 1
    %p118 = por %p116, %p117
    %p119 = scmp.ne.s32.totalorder %s110, %s111
    %p120 = scmp.eq.s32.totalorder %s16, 0
    %p121 = por %p119, %p120
    %p122 = scmp.ne.s32.totalorder %s110, %s111
    %p123 = scmp.eq.s32.totalorder %s17, 1
    %p124 = por %p122, %p123
    %p126 = scmp.ne.s32.totalorder %s111, %s125
    %p127 = scmp.eq.s32.totalorder %s17, 0
    %p128 = por %p126, %p127
    %s129 = ssub.s32 %s11, %s18
    %p130 = scmp.eq.s32.totalorder %s129, 0
    %s132 = sadd.s32 %s131, 1
    %s133 = scalar_select %p130, %s131, %s132
    %p136 = pneg %p130
    %p137 = scmp.eq.s32.totalorder %s11, 1
    %p138 = por %p136, %p137
    %p139 = scmp.ne.s32.totalorder %s131, %s134
    %p140 = scmp.eq.s32.totalorder %s11, 0
    %p141 = por %p139, %p140
    %p142 = scmp.ne.s32.totalorder %s131, %s134
    %p143 = scmp.eq.s32.totalorder %s16, 1
    %p144 = por %p142, %p143
    %p145 = scmp.ne.s32.totalorder %s134, %s135
    %p146 = scmp.eq.s32.totalorder %s16, 0
    %p147 = por %p145, %p146
    %p148 = scmp.ne.s32.totalorder %s134, %s135
    %p149 = scmp.eq.s32.totalorder %s17, 1
    %p150 = por %p148, %p149
    %p152 = scmp.ne.s32.totalorder %s135, %s151
    %p153 = scmp.eq.s32.totalorder %s17, 0
    %p154 = por %p152, %p153
    %p155 = scmp.le.s32.totalorder 1, %s11
    %p156 = scmp.lt.s32.totalorder %s11, 3
    %p157 = pnand %p155, %p156
    %p158 = pneg %p157
    // Predicated region
    $region9: #{block_forward_nhwc.1} parent=5 // pred_check
      _
    $region10: #{block_forward_nhwc.1} parent=5 // pred_check_branch
      %160 = sbr.rel (%p157) target = $region12
    $region11: #{block_forward_nhwc.1} parent=5 // pred_region
      %s161 = ssub.s32 %s11, 1
      // Predicated region
      $region13: #{block_forward_nhwc.1} parent=11 // pred_check
        %p162 = pneg %p58
      $region14: #{block_forward_nhwc.1} parent=11 // pred_check_branch
        %164 = sbr.rel (%p162) target = $region16
      $region15: #{block_forward_nhwc.1} parent=11 // pred_region
        _
      $region16: #{block_forward_nhwc.1} parent=11 // pred_fallthru
        _
      // Predicated region
      $region17: #{block_forward_nhwc.1} parent=11 // pred_check
        %p165 = pneg %p79
      $region18: #{block_forward_nhwc.1} parent=11 // pred_check_branch
        %167 = sbr.rel (%p165) target = $region20
      $region19: #{block_forward_nhwc.1} parent=11 // pred_region
        _
      $region20: #{block_forward_nhwc.1} parent=11 // pred_fallthru
        _
      // Predicated region
      $region21: #{block_forward_nhwc.1} parent=11 // pred_check
        %p168 = pneg %p100
      $region22: #{block_forward_nhwc.1} parent=11 // pred_check_branch
        %170 = sbr.rel (%p168) target = $region24
      $region23: #{block_forward_nhwc.1} parent=11 // pred_region
        _
      $region24: #{block_forward_nhwc.1} parent=11 // pred_fallthru
        _
      // Predicated region
      $region25: #{block_forward_nhwc.1} parent=11 // pred_check
        %p171 = pneg %p121
      $region26: #{block_forward_nhwc.1} parent=11 // pred_check_branch
        %173 = sbr.rel (%p171) target = $region28
      $region27: #{block_forward_nhwc.1} parent=11 // pred_region
        _
      $region28: #{block_forward_nhwc.1} parent=11 // pred_fallthru
        _
    $region12: #{block_forward_nhwc.1} parent=5 // pred_fallthru
      _
    %p174 = scmp.lt.s32.totalorder %s11, 2
    // Predicated region
    $region29: #{block_forward_nhwc.1} parent=5 // pred_check
      %p175 = pneg %p174
    $region30: #{block_forward_nhwc.1} parent=5 // pred_check_branch
      %177 = sbr.rel (%p175) target = $region32
    $region31: #{block_forward_nhwc.1} parent=5 // pred_region
      // Predicated region
      $region33: #{block_forward_nhwc.1} parent=31 // pred_check
        %p178 = pneg %p31
      $region34: #{block_forward_nhwc.1} parent=31 // pred_check_branch
        %180 = sbr.rel (%p178) target = $region36
      $region35: #{block_forward_nhwc.1} parent=31 // pred_region
        %p181 = scmp.lt.s32.totalorder %s11, 1
        %s182 = scalar_select %p181, %s11, 1
        %s183 = smul.addr %s182, 28
        %s184 = smul.addr %s183, 4
        %s185 = scalar_lea.vmem %s0, %s184
      $region36: #{block_forward_nhwc.1} parent=31 // pred_fallthru
        _
    $region32: #{block_forward_nhwc.1} parent=5 // pred_fallthru
      _
    %p186 = scmp.le.s32.totalorder 1, %s11
    %p187 = scmp.lt.s32.totalorder %s11, 3
    %p188 = pnand %p186, %p187
    %p189 = pneg %p188
    // Predicated region
    $region37: #{block_forward_nhwc.1} parent=5 // pred_check
      _
    $region38: #{block_forward_nhwc.1} parent=5 // pred_check_branch
      %191 = sbr.rel (%p188) target = $region40
    $region39: #{block_forward_nhwc.1} parent=5 // pred_region
      %s192 = ssub.s32 %s11, 1
      %p193 = scmp.lt.s32.totalorder %s16, 1
      %s194 = scalar_select %p193, %s16, 1
      %s195 = smul.addr %s194, 28
      %s196 = smul.addr %s195, 4
      %s197 = scalar_lea.vmem %s0, %s196
      %p198 = pneg %p37
      %p199 = pneg %p34
      %p200 = pneg %p58
      %p201 = pneg %p55
      %p202 = pneg %p79
      %p203 = pneg %p76
      %p204 = pneg %p100
      %p205 = pneg %p97
      %p206 = pneg %p121
      %p207 = pneg %p118
      %p208 = pneg %p147
      %p209 = pneg %p144
      %p210 = scmp.lt.s32.totalorder %s16, 1
      %s211 = scalar_select %p210, %s16, 1
      %s212 = smul.addr %s211, 24
      %s213 = smul.addr %s212, 8
      %s214 = scalar_lea.vmem %s5, %s213
      %p215 = scmp.lt.s32.totalorder %s16, 1
      %s216 = scalar_select %p215, %s16, 1
      %s217 = smul.addr %s216, 28
      %s218 = smul.addr %s217, 4
      %s219 = scalar_lea.vmem %s0, %s218
      %p220 = scmp.lt.s32.totalorder %s16, 1
      %s221 = scalar_select %p220, %s16, 1
      %s222 = smul.addr %s221, 24
      %s223 = smul.addr %s222, 8
      %s224 = scalar_lea.vmem %s5, %s223
      %v226 = vld [vmem:[%s219] sm:$0xf]
      %v227 = vld [vmem:[%s219 + $0x4] sm:$0x7]
      %v228 = vld [vmem:[%s219 + $0x8] sm:$0xf]
      %v229 = vld [vmem:[%s219 + $0xc] sm:$0x7]
      %v230 = vld [vmem:[%s219 + $0x10] sm:$0xf]
      %v231 = vld [vmem:[%s219 + $0x14] sm:$0x7]
      %v232 = vld [vmem:[%s219 + $0x18] sm:$0xf]
      %v233 = vld [vmem:[%s219 + $0x1c] sm:$0x7]
      %v234 = vld [vmem:[%s219 + $0x20] sm:$0xf]
      %v235 = vld [vmem:[%s219 + $0x24] sm:$0x7]
      %v236 = vld [vmem:[%s219 + $0x28] sm:$0xf]
      %v237 = vld [vmem:[%s219 + $0x2c] sm:$0x7]
      %v238 = vld [vmem:[%s219 + $0x30] sm:$0xf]
      %v239 = vld [vmem:[%s219 + $0x34] sm:$0x7]
      %v240 = vld [vmem:[%s219 + $0x38] sm:$0xf]
      %v241 = vld [vmem:[%s219 + $0x3c] sm:$0x7]
      %v242 = vld [vmem:[%s219 + $0x40] sm:$0xf]
      %v243 = vld [vmem:[%s219 + $0x44] sm:$0x7]
      %v244 = vld [vmem:[%s219 + $0x48] sm:$0xf]
      %v245 = vld [vmem:[%s219 + $0x4c] sm:$0x7]
      %v246 = vld [vmem:[%s219 + $0x50] sm:$0xf]
      %v247 = vld [vmem:[%s219 + $0x54] sm:$0x7]
      %v248 = vld [vmem:[%s219 + $0x58] sm:$0xf]
      %v249 = vld [vmem:[%s219 + $0x5c] sm:$0x7]
      %v250 = vld [vmem:[%s219 + $0x60] sm:$0xf]
      %v251 = vld [vmem:[%s219 + $0x64] sm:$0x7]
      %v252 = vld [vmem:[%s219 + $0x68] sm:$0xf]
      %v253 = vld [vmem:[%s219 + $0x6c] sm:$0x7]
      %v282 = vrot.slane %v226, 3
      %v283 = vrot.slane %v227, 3
      %v284 = vrot.slane %v228, 3
      %v285 = vrot.slane %v229, 3
      %v286 = vrot.slane %v230, 3
      %v287 = vrot.slane %v231, 3
      %v288 = vrot.slane %v232, 3
      %v289 = vrot.slane %v233, 3
      %v290 = vrot.slane %v234, 3
      %v291 = vrot.slane %v235, 3
      %v292 = vrot.slane %v236, 3
      %v293 = vrot.slane %v237, 3
      %v294 = vrot.slane %v238, 3
      %v295 = vrot.slane %v239, 3
      %v296 = vrot.slane %v240, 3
      %v297 = vrot.slane %v241, 3
      %v298 = vrot.slane %v242, 3
      %v299 = vrot.slane %v243, 3
      %v300 = vrot.slane %v244, 3
      %v301 = vrot.slane %v245, 3
      %v302 = vrot.slane %v246, 3
      %v303 = vrot.slane %v247, 3
      %v304 = vrot.slane %v248, 3
      %v305 = vrot.slane %v249, 3
      %v306 = vrot.slane %v250, 3
      %v307 = vrot.slane %v251, 3
      %v308 = vrot.slane %v252, 3
      %v309 = vrot.slane %v253, 3
      %vm310 = vcmask 1040384
      %v313 = vsel %vm310, %v226, %v282
      %vm314 = vcmask 1041409
      %v315 = vsel %vm314, %v226, %v282
      %v317 = vrot.slane %v315, 1
      %vm318 = vcmask 1042434
      %v319 = vsel %vm318, %v226, %v282
      %v321 = vrot.slane %v319, 2
      %vm322 = vcmask 1043459
      %v323 = vsel %vm322, %v226, %v282
      %v325 = vrot.slane %v323, 3
      %v328 = vsel %vm310, %v227, %v283
      %v329 = vsel %vm314, %v227, %v283
      %v331 = vrot.slane %v329, 1
      %v332 = vsel %vm318, %v227, %v283
      %v334 = vrot.slane %v332, 2
      %v337 = vsel %vm310, %v228, %v284
      %v338 = vsel %vm314, %v228, %v284
      %v340 = vrot.slane %v338, 1
      %v341 = vsel %vm318, %v228, %v284
      %v343 = vrot.slane %v341, 2
      %v344 = vsel %vm322, %v228, %v284
      %v346 = vrot.slane %v344, 3
      %v349 = vsel %vm310, %v229, %v285
      %v350 = vsel %vm314, %v229, %v285
      %v352 = vrot.slane %v350, 1
      %v353 = vsel %vm318, %v229, %v285
      %v355 = vrot.slane %v353, 2
      %v358 = vsel %vm310, %v230, %v286
      %v359 = vsel %vm314, %v230, %v286
      %v361 = vrot.slane %v359, 1
      %v362 = vsel %vm318, %v230, %v286
      %v364 = vrot.slane %v362, 2
      %v365 = vsel %vm322, %v230, %v286
      %v367 = vrot.slane %v365, 3
      %v370 = vsel %vm310, %v231, %v287
      %v371 = vsel %vm314, %v231, %v287
      %v373 = vrot.slane %v371, 1
      %v374 = vsel %vm318, %v231, %v287
      %v376 = vrot.slane %v374, 2
      %v379 = vsel %vm310, %v232, %v288
      %v380 = vsel %vm314, %v232, %v288
      %v382 = vrot.slane %v380, 1
      %v383 = vsel %vm318, %v232, %v288
      %v385 = vrot.slane %v383, 2
      %v386 = vsel %vm322, %v232, %v288
      %v388 = vrot.slane %v386, 3
      %v391 = vsel %vm310, %v233, %v289
      %v392 = vsel %vm314, %v233, %v289
      %v394 = vrot.slane %v392, 1
      %v395 = vsel %vm318, %v233, %v289
      %v397 = vrot.slane %v395, 2
      %v400 = vsel %vm310, %v234, %v290
      %v401 = vsel %vm314, %v234, %v290
      %v403 = vrot.slane %v401, 1
      %v404 = vsel %vm318, %v234, %v290
      %v406 = vrot.slane %v404, 2
      %v407 = vsel %vm322, %v234, %v290
      %v409 = vrot.slane %v407, 3
      %v412 = vsel %vm310, %v235, %v291
      %v413 = vsel %vm314, %v235, %v291
      %v415 = vrot.slane %v413, 1
      %v416 = vsel %vm318, %v235, %v291
      %v418 = vrot.slane %v416, 2
      %v421 = vsel %vm310, %v236, %v292
      %v422 = vsel %vm314, %v236, %v292
      %v424 = vrot.slane %v422, 1
      %v425 = vsel %vm318, %v236, %v292
      %v427 = vrot.slane %v425, 2
      %v428 = vsel %vm322, %v236, %v292
      %v430 = vrot.slane %v428, 3
      %v433 = vsel %vm310, %v237, %v293
      %v434 = vsel %vm314, %v237, %v293
      %v436 = vrot.slane %v434, 1
      %v437 = vsel %vm318, %v237, %v293
      %v439 = vrot.slane %v437, 2
      %v442 = vsel %vm310, %v238, %v294
      %v443 = vsel %vm314, %v238, %v294
      %v445 = vrot.slane %v443, 1
      %v446 = vsel %vm318, %v238, %v294
      %v448 = vrot.slane %v446, 2
      %v449 = vsel %vm322, %v238, %v294
      %v451 = vrot.slane %v449, 3
      %v454 = vsel %vm310, %v239, %v295
      %v455 = vsel %vm314, %v239, %v295
      %v457 = vrot.slane %v455, 1
      %v458 = vsel %vm318, %v239, %v295
      %v460 = vrot.slane %v458, 2
      %v463 = vsel %vm310, %v240, %v296
      %v464 = vsel %vm314, %v240, %v296
      %v466 = vrot.slane %v464, 1
      %v467 = vsel %vm318, %v240, %v296
      %v469 = vrot.slane %v467, 2
      %v470 = vsel %vm322, %v240, %v296
      %v472 = vrot.slane %v470, 3
      %v475 = vsel %vm310, %v241, %v297
      %v476 = vsel %vm314, %v241, %v297
      %v478 = vrot.slane %v476, 1
      %v479 = vsel %vm318, %v241, %v297
      %v481 = vrot.slane %v479, 2
      %v484 = vsel %vm310, %v242, %v298
      %v485 = vsel %vm314, %v242, %v298
      %v487 = vrot.slane %v485, 1
      %v488 = vsel %vm318, %v242, %v298
      %v490 = vrot.slane %v488, 2
      %v491 = vsel %vm322, %v242, %v298
      %v493 = vrot.slane %v491, 3
      %v496 = vsel %vm310, %v243, %v299
      %v497 = vsel %vm314, %v243, %v299
      %v499 = vrot.slane %v497, 1
      %v500 = vsel %vm318, %v243, %v299
      %v502 = vrot.slane %v500, 2
      %v505 = vsel %vm310, %v244, %v300
      %v506 = vsel %vm314, %v244, %v300
      %v508 = vrot.slane %v506, 1
      %v509 = vsel %vm318, %v244, %v300
      %v511 = vrot.slane %v509, 2
      %v512 = vsel %vm322, %v244, %v300
      %v514 = vrot.slane %v512, 3
      %v517 = vsel %vm310, %v245, %v301
      %v518 = vsel %vm314, %v245, %v301
      %v520 = vrot.slane %v518, 1
      %v521 = vsel %vm318, %v245, %v301
      %v523 = vrot.slane %v521, 2
      %v526 = vsel %vm310, %v246, %v302
      %v527 = vsel %vm314, %v246, %v302
      %v529 = vrot.slane %v527, 1
      %v530 = vsel %vm318, %v246, %v302
      %v532 = vrot.slane %v530, 2
      %v533 = vsel %vm322, %v246, %v302
      %v535 = vrot.slane %v533, 3
      %v538 = vsel %vm310, %v247, %v303
      %v539 = vsel %vm314, %v247, %v303
      %v541 = vrot.slane %v539, 1
      %v542 = vsel %vm318, %v247, %v303
      %v544 = vrot.slane %v542, 2
      %v547 = vsel %vm310, %v248, %v304
      %v548 = vsel %vm314, %v248, %v304
      %v550 = vrot.slane %v548, 1
      %v551 = vsel %vm318, %v248, %v304
      %v553 = vrot.slane %v551, 2
      %v554 = vsel %vm322, %v248, %v304
      %v556 = vrot.slane %v554, 3
      %v559 = vsel %vm310, %v249, %v305
      %v560 = vsel %vm314, %v249, %v305
      %v562 = vrot.slane %v560, 1
      %v563 = vsel %vm318, %v249, %v305
      %v565 = vrot.slane %v563, 2
      %v568 = vsel %vm310, %v250, %v306
      %v569 = vsel %vm314, %v250, %v306
      %v571 = vrot.slane %v569, 1
      %v572 = vsel %vm318, %v250, %v306
      %v574 = vrot.slane %v572, 2
      %v575 = vsel %vm322, %v250, %v306
      %v577 = vrot.slane %v575, 3
      %v580 = vsel %vm310, %v251, %v307
      %v581 = vsel %vm314, %v251, %v307
      %v583 = vrot.slane %v581, 1
      %v584 = vsel %vm318, %v251, %v307
      %v586 = vrot.slane %v584, 2
      %v589 = vsel %vm310, %v252, %v308
      %v590 = vsel %vm314, %v252, %v308
      %v592 = vrot.slane %v590, 1
      %v593 = vsel %vm318, %v252, %v308
      %v595 = vrot.slane %v593, 2
      %v596 = vsel %vm322, %v252, %v308
      %v598 = vrot.slane %v596, 3
      %v601 = vsel %vm310, %v253, %v309
      %v602 = vsel %vm314, %v253, %v309
      %v604 = vrot.slane %v602, 1
      %v605 = vsel %vm318, %v253, %v309
      %v607 = vrot.slane %v605, 2
      %v608 = vld [vmem:[%s1] sm:$0xf]
      %v609 = vld [vmem:[%s1 + $0x4] sm:$0xf]
      %v610 = vld [vmem:[%s1 + $0x8] sm:$0xf]
      %v611 = vld [vmem:[%s1 + $0xc] sm:$0xf]
      %v612 = vld [vmem:[%s1 + $0x10] sm:$0x3]
      %v613 = vld [vmem:[%s2] sm:$0x1]
      %v615 = vperm.slane %v613, 0
      %617 = vst [vmem:[#allocation1] ss:$9 sm:$0xff] %v313
      %s619 = scalar_lea.vmem [#allocation1], 1
      %620 = vst [vmem:[%s619] ss:$9 sm:$0xff] %v317
      %s622 = scalar_lea.vmem [#allocation1], 2
      %623 = vst [vmem:[%s622] ss:$9 sm:$0xff] %v321
      %s625 = scalar_lea.vmem [#allocation1], 3
      %626 = vst [vmem:[%s625] ss:$9 sm:$0xff] %v325
      %s627 = scalar_lea.vmem [#allocation1], 4
      %628 = vst [vmem:[%s627] ss:$9 sm:$0xff] %v328
      %s630 = scalar_lea.vmem [#allocation1], 5
      %631 = vst [vmem:[%s630] ss:$9 sm:$0xff] %v331
      %s633 = scalar_lea.vmem [#allocation1], 6
      %634 = vst [vmem:[%s633] ss:$9 sm:$0xff] %v334
      %s635 = scalar_lea.vmem [#allocation1], 7
      %636 = vst [vmem:[%s635] ss:$9 sm:$0xff] %v337
      %v637 = vld [vmem:[#allocation1] sm:$0xff]
      %639 = vst [vmem:[#allocation1] ss:$9 sm:$0xff] %v340
      %641 = vst [vmem:[%s619] ss:$9 sm:$0xff] %v343
      %643 = vst [vmem:[%s622] ss:$9 sm:$0xff] %v346
      %644 = vst [vmem:[%s625] ss:$9 sm:$0xff] %v349
      %646 = vst [vmem:[%s627] ss:$9 sm:$0xff] %v352
      %648 = vst [vmem:[%s630] ss:$9 sm:$0xff] %v355
      %649 = vst [vmem:[%s633] ss:$9 sm:$0xff] %v358
      %651 = vst [vmem:[%s635] ss:$9 sm:$0xff] %v361
      %v652 = vld [vmem:[#allocation1] sm:$0xff]
      %654 = vst [vmem:[#allocation1] ss:$9 sm:$0xff] %v364
      %656 = vst [vmem:[%s619] ss:$9 sm:$0xff] %v367
      %657 = vst [vmem:[%s622] ss:$9 sm:$0xff] %v370
      %659 = vst [vmem:[%s625] ss:$9 sm:$0xff] %v373
      %661 = vst [vmem:[%s627] ss:$9 sm:$0xff] %v376
      %662 = vst [vmem:[%s630] ss:$9 sm:$0xff] %v379
      %664 = vst [vmem:[%s633] ss:$9 sm:$0xff] %v382
      %666 = vst [vmem:[%s635] ss:$9 sm:$0xff] %v385
      %v667 = vld [vmem:[#allocation1] sm:$0xff]
      %669 = vst [vmem:[#allocation1] ss:$9 sm:$0xff] %v388
      %670 = vst [vmem:[%s619] ss:$9 sm:$0xff] %v391
      %672 = vst [vmem:[%s622] ss:$9 sm:$0xff] %v394
      %674 = vst [vmem:[%s625] ss:$9 sm:$0xff] %v397
      %675 = vst [vmem:[%s627] ss:$9 sm:$0xff] %v400
      %677 = vst [vmem:[%s630] ss:$9 sm:$0xff] %v403
      %679 = vst [vmem:[%s633] ss:$9 sm:$0xff] %v406
      %681 = vst [vmem:[%s635] ss:$9 sm:$0xff] %v409
      %v682 = vld [vmem:[#allocation1] sm:$0xff]
      %683 = vst [vmem:[#allocation1] ss:$9 sm:$0xff] %v412
      %685 = vst [vmem:[%s619] ss:$9 sm:$0xff] %v415
      %687 = vst [vmem:[%s622] ss:$9 sm:$0xff] %v418
      %688 = vst [vmem:[%s625] ss:$9 sm:$0xff] %v421
      %690 = vst [vmem:[%s627] ss:$9 sm:$0xff] %v424
      %692 = vst [vmem:[%s630] ss:$9 sm:$0xff] %v427
      %694 = vst [vmem:[%s633] ss:$9 sm:$0xff] %v430
      %695 = vst [vmem:[%s635] ss:$9 sm:$0xff] %v433
      %v696 = vld [vmem:[#allocation1] sm:$0xff]
      %698 = vst [vmem:[#allocation1] ss:$9 sm:$0xff] %v436
      %700 = vst [vmem:[%s619] ss:$9 sm:$0xff] %v439
      %701 = vst [vmem:[%s622] ss:$9 sm:$0xff] %v442
      %703 = vst [vmem:[%s625] ss:$9 sm:$0xff] %v445
      %705 = vst [vmem:[%s627] ss:$9 sm:$0xff] %v448
      %707 = vst [vmem:[%s630] ss:$9 sm:$0xff] %v451
      %708 = vst [vmem:[%s633] ss:$9 sm:$0xff] %v454
      %710 = vst [vmem:[%s635] ss:$9 sm:$0xff] %v457
      %v711 = vld [vmem:[#allocation1] sm:$0xff]
      %713 = vst [vmem:[#allocation1] ss:$9 sm:$0xff] %v460
      %714 = vst [vmem:[%s619] ss:$9 sm:$0xff] %v463
      %716 = vst [vmem:[%s622] ss:$9 sm:$0xff] %v466
      %718 = vst [vmem:[%s625] ss:$9 sm:$0xff] %v469
      %720 = vst [vmem:[%s627] ss:$9 sm:$0xff] %v472
      %721 = vst [vmem:[%s630] ss:$9 sm:$0xff] %v475
      %723 = vst [vmem:[%s633] ss:$9 sm:$0xff] %v478
      %725 = vst [vmem:[%s635] ss:$9 sm:$0xff] %v481
      %v726 = vld [vmem:[#allocation1] sm:$0xff]
      %727 = vst [vmem:[#allocation1] ss:$9 sm:$0xff] %v484
      %729 = vst [vmem:[%s619] ss:$9 sm:$0xff] %v487
      %731 = vst [vmem:[%s622] ss:$9 sm:$0xff] %v490
      %733 = vst [vmem:[%s625] ss:$9 sm:$0xff] %v493
      %734 = vst [vmem:[%s627] ss:$9 sm:$0xff] %v496
      %736 = vst [vmem:[%s630] ss:$9 sm:$0xff] %v499
      %738 = vst [vmem:[%s633] ss:$9 sm:$0xff] %v502
      %739 = vst [vmem:[%s635] ss:$9 sm:$0xff] %v505
      %v740 = vld [vmem:[#allocation1] sm:$0xff]
      %742 = vst [vmem:[#allocation1] ss:$9 sm:$0xff] %v508
      %744 = vst [vmem:[%s619] ss:$9 sm:$0xff] %v511
      %746 = vst [vmem:[%s622] ss:$9 sm:$0xff] %v514
      %747 = vst [vmem:[%s625] ss:$9 sm:$0xff] %v517
      %749 = vst [vmem:[%s627] ss:$9 sm:$0xff] %v520
      %751 = vst [vmem:[%s630] ss:$9 sm:$0xff] %v523
      %752 = vst [vmem:[%s633] ss:$9 sm:$0xff] %v526
      %754 = vst [vmem:[%s635] ss:$9 sm:$0xff] %v529
      %v755 = vld [vmem:[#allocation1] sm:$0xff]
      %757 = vst [vmem:[#allocation1] ss:$9 sm:$0xff] %v532
      %759 = vst [vmem:[%s619] ss:$9 sm:$0xff] %v535
      %760 = vst [vmem:[%s622] ss:$9 sm:$0xff] %v538
      %762 = vst [vmem:[%s625] ss:$9 sm:$0xff] %v541
      %764 = vst [vmem:[%s627] ss:$9 sm:$0xff] %v544
      %765 = vst [vmem:[%s630] ss:$9 sm:$0xff] %v547
      %767 = vst [vmem:[%s633] ss:$9 sm:$0xff] %v550
      %769 = vst [vmem:[%s635] ss:$9 sm:$0xff] %v553
      %v770 = vld [vmem:[#allocation1] sm:$0xff]
      %772 = vst [vmem:[#allocation1] ss:$9 sm:$0xff] %v556
      %773 = vst [vmem:[%s619] ss:$9 sm:$0xff] %v559
      %775 = vst [vmem:[%s622] ss:$9 sm:$0xff] %v562
      %777 = vst [vmem:[%s625] ss:$9 sm:$0xff] %v565
      %778 = vst [vmem:[%s627] ss:$9 sm:$0xff] %v568
      %780 = vst [vmem:[%s630] ss:$9 sm:$0xff] %v571
      %782 = vst [vmem:[%s633] ss:$9 sm:$0xff] %v574
      %784 = vst [vmem:[%s635] ss:$9 sm:$0xff] %v577
      %v785 = vld [vmem:[#allocation1] sm:$0xff]
      %786 = vst [vmem:[#allocation1] ss:$9 sm:$0xff] %v580
      %788 = vst [vmem:[%s619] ss:$9 sm:$0xff] %v583
      %790 = vst [vmem:[%s622] ss:$9 sm:$0xff] %v586
      %791 = vst [vmem:[%s625] ss:$9 sm:$0xff] %v589
      %793 = vst [vmem:[%s627] ss:$9 sm:$0xff] %v592
      %795 = vst [vmem:[%s630] ss:$9 sm:$0xff] %v595
      %797 = vst [vmem:[%s633] ss:$9 sm:$0xff] %v598
      %798 = vst [vmem:[%s635] ss:$9 sm:$0xff] %v601
      %v799 = vld [vmem:[#allocation1] sm:$0xff]
      %801 = vst [vmem:[#allocation1] ss:$9 sm:$0xff] %v604
      %803 = vst [vmem:[%s619] ss:$9 sm:$0xff] %v607
      %v804 = vld [vmem:[#allocation1] sm:$0xff]
      %v810 = vunpack.c.l.b16 %v608
      %v811 = vunpack.c.l.b16 %v609
      %v812 = vunpack.c.l.b16 %v610
      %v813 = vunpack.c.l.b16 %v611
      %v814 = vunpack.c.l.b16 %v612
      %v815 = vpack.c.b16 %v811, %v810
      %v816 = vpack.c.b16 %v813, %v812
      %v817 = vpack.c.b16 %v814, %v814
      %vm820 = vcmask 293888
      %v821 = vsel %vm820, %v637, 0
      %v823 = vsel %vm820, %v652, 0
      %v825 = vsel %vm820, %v667, 0
      %v827 = vsel %vm820, %v682, 0
      %v829 = vsel %vm820, %v696, 0
      %v831 = vsel %vm820, %v711, 0
      %v833 = vsel %vm820, %v726, 0
      %v835 = vsel %vm820, %v740, 0
      %v837 = vsel %vm820, %v755, 0
      %v839 = vsel %vm820, %v770, 0
      %v841 = vsel %vm820, %v785, 0
      %v843 = vsel %vm820, %v799, 0
      %v845 = vsel %vm820, %v804, 0
      %vm847 = vcmask 1041408
      %v849 = vsel %vm847, %v817, 0
      %851 = vmatpush.bf16.msra.mxu0 0
      %852 = vmatpush.bf16.msra.mxu0 0
      %853 = vmatpush.bf16.msra.mxu0 0
      %854 = vmatpush.bf16.msra.mxu0 0
      %855 = vmatpush.bf16.msra.mxu0 0
      %856 = vmatpush.bf16.msra.mxu0 %v849
      %857 = vmatpush.bf16.msra.mxu0 %v816
      %858 = vmatpush.bf16.msra.mxu0 %v815
      %859 = vmatmul.bf16.gmra.mxu0 %v821
      %v860 = vpop.f32.mrf.mxu0
      %v861 = vadd.f32 %v615, %v860
      %v862 = vpop.f32.mrf.mxu0
      %v863 = vadd.f32 %v615, %v862
      %864 = vmatmul.bf16.gmra.mxu0 %v823
      %v865 = vpop.f32.mrf.mxu0
      %v866 = vadd.f32 %v615, %v865
      %v867 = vpop.f32.mrf.mxu0
      %v868 = vadd.f32 %v615, %v867
      %869 = vmatmul.bf16.gmra.mxu0 %v825
      %v870 = vpop.f32.mrf.mxu0
      %v871 = vadd.f32 %v615, %v870
      %v872 = vpop.f32.mrf.mxu0
      %v873 = vadd.f32 %v615, %v872
      %874 = vmatmul.bf16.gmra.mxu0 %v827
      %v875 = vpop.f32.mrf.mxu0
      %v876 = vadd.f32 %v615, %v875
      %v877 = vpop.f32.mrf.mxu0
      %v878 = vadd.f32 %v615, %v877
      %879 = vmatmul.bf16.gmra.mxu0 %v829
      %v880 = vpop.f32.mrf.mxu0
      %v881 = vadd.f32 %v615, %v880
      %v882 = vpop.f32.mrf.mxu0
      %v883 = vadd.f32 %v615, %v882
      %884 = vmatmul.bf16.gmra.mxu0 %v831
      %v885 = vpop.f32.mrf.mxu0
      %v886 = vadd.f32 %v615, %v885
      %v887 = vpop.f32.mrf.mxu0
      %v888 = vadd.f32 %v615, %v887
      %889 = vmatmul.bf16.gmra.mxu0 %v833
      %v890 = vpop.f32.mrf.mxu0
      %v891 = vadd.f32 %v615, %v890
      %v892 = vpop.f32.mrf.mxu0
      %v893 = vadd.f32 %v615, %v892
      %894 = vmatmul.bf16.gmra.mxu0 %v835
      %v895 = vpop.f32.mrf.mxu0
      %v896 = vadd.f32 %v615, %v895
      %v897 = vpop.f32.mrf.mxu0
      %v898 = vadd.f32 %v615, %v897
      %899 = vmatmul.bf16.gmra.mxu0 %v837
      %v900 = vpop.f32.mrf.mxu0
      %v901 = vadd.f32 %v615, %v900
      %v902 = vpop.f32.mrf.mxu0
      %v903 = vadd.f32 %v615, %v902
      %904 = vmatmul.bf16.gmra.mxu0 %v839
      %v905 = vpop.f32.mrf.mxu0
      %v906 = vadd.f32 %v615, %v905
      %v907 = vpop.f32.mrf.mxu0
      %v908 = vadd.f32 %v615, %v907
      %909 = vmatmul.bf16.gmra.mxu0 %v841
      %v910 = vpop.f32.mrf.mxu0
      %v911 = vadd.f32 %v615, %v910
      %v912 = vpop.f32.mrf.mxu0
      %v913 = vadd.f32 %v615, %v912
      %914 = vmatmul.bf16.gmra.mxu0 %v843
      %v915 = vpop.f32.mrf.mxu0
      %v916 = vadd.f32 %v615, %v915
      %v917 = vpop.f32.mrf.mxu0
      %v918 = vadd.f32 %v615, %v917
      %919 = vmatmul.bf16.gmra.mxu0 %v845
      %v920 = vpop.f32.mrf.mxu0
      %v921 = vadd.f32 %v615, %v920
      %v922 = vpop.f32.mrf.mxu0
      %923 = vdwg.mxu0
      %v924 = vmax.f32 %v861, 0.0
      %v925 = vmax.f32 %v863, 0.0
      %v926 = vmax.f32 %v866, 0.0
      %v927 = vmax.f32 %v868, 0.0
      %v928 = vmax.f32 %v871, 0.0
      %v929 = vmax.f32 %v873, 0.0
      %v930 = vmax.f32 %v876, 0.0
      %v931 = vmax.f32 %v878, 0.0
      %v932 = vmax.f32 %v881, 0.0
      %v933 = vmax.f32 %v883, 0.0
      %v934 = vmax.f32 %v886, 0.0
      %v935 = vmax.f32 %v888, 0.0
      %v936 = vmax.f32 %v891, 0.0
      %v937 = vmax.f32 %v893, 0.0
      %v938 = vmax.f32 %v896, 0.0
      %v939 = vmax.f32 %v898, 0.0
      %v940 = vmax.f32 %v901, 0.0
      %v941 = vmax.f32 %v903, 0.0
      %v942 = vmax.f32 %v906, 0.0
      %v943 = vmax.f32 %v908, 0.0
      %v944 = vmax.f32 %v911, 0.0
      %v945 = vmax.f32 %v913, 0.0
      %v946 = vmax.f32 %v916, 0.0
      %v947 = vmax.f32 %v918, 0.0
      %v948 = vmax.f32 %v921, 0.0
      %v949 = vpack.c.bf16 %v924, %v924
      %v950 = vpack.c.bf16 %v925, %v925
      %v951 = vpack.c.bf16 %v926, %v926
      %v952 = vpack.c.bf16 %v927, %v927
      %v953 = vpack.c.bf16 %v928, %v928
      %v954 = vpack.c.bf16 %v929, %v929
      %v955 = vpack.c.bf16 %v930, %v930
      %v956 = vpack.c.bf16 %v931, %v931
      %v957 = vpack.c.bf16 %v932, %v932
      %v958 = vpack.c.bf16 %v933, %v933
      %v959 = vpack.c.bf16 %v934, %v934
      %v960 = vpack.c.bf16 %v935, %v935
      %v961 = vpack.c.bf16 %v936, %v936
      %v962 = vpack.c.bf16 %v937, %v937
      %v963 = vpack.c.bf16 %v938, %v938
      %v964 = vpack.c.bf16 %v939, %v939
      %v965 = vpack.c.bf16 %v940, %v940
      %v966 = vpack.c.bf16 %v941, %v941
      %v967 = vpack.c.bf16 %v942, %v942
      %v968 = vpack.c.bf16 %v943, %v943
      %v969 = vpack.c.bf16 %v944, %v944
      %v970 = vpack.c.bf16 %v945, %v945
      %v971 = vpack.c.bf16 %v946, %v946
      %v972 = vpack.c.bf16 %v947, %v947
      %v973 = vpack.c.bf16 %v948, %v948
      %v999 = vrot.slane %v949, 3
      %v1000 = vrot.slane %v950, 3
      %v1001 = vrot.slane %v951, 3
      %v1002 = vrot.slane %v952, 3
      %v1003 = vrot.slane %v953, 3
      %v1004 = vrot.slane %v954, 3
      %v1005 = vrot.slane %v955, 3
      %v1006 = vrot.slane %v956, 3
      %v1007 = vrot.slane %v957, 3
      %v1008 = vrot.slane %v958, 3
      %v1009 = vrot.slane %v959, 3
      %v1010 = vrot.slane %v960, 3
      %v1011 = vrot.slane %v961, 3
      %v1012 = vrot.slane %v962, 3
      %v1013 = vrot.slane %v963, 3
      %v1014 = vrot.slane %v964, 3
      %v1015 = vrot.slane %v965, 3
      %v1016 = vrot.slane %v966, 3
      %v1017 = vrot.slane %v967, 3
      %v1018 = vrot.slane %v968, 3
      %v1019 = vrot.slane %v969, 3
      %v1020 = vrot.slane %v970, 3
      %v1021 = vrot.slane %v971, 3
      %v1022 = vrot.slane %v972, 3
      %v1023 = vrot.slane %v973, 3
      %v1026 = vsel %vm310, %v949, %v999
      %v1027 = vsel %vm314, %v949, %v999
      %v1029 = vrot.slane %v1027, 1
      %v1030 = vsel %vm318, %v949, %v999
      %v1032 = vrot.slane %v1030, 2
      %v1033 = vsel %vm322, %v949, %v999
      %v1035 = vrot.slane %v1033, 3
      %v1038 = vsel %vm310, %v950, %v1000
      %v1039 = vsel %vm314, %v950, %v1000
      %v1041 = vrot.slane %v1039, 1
      %v1042 = vsel %vm318, %v950, %v1000
      %v1044 = vrot.slane %v1042, 2
      %v1045 = vsel %vm322, %v950, %v1000
      %v1047 = vrot.slane %v1045, 3
      %v1050 = vsel %vm310, %v951, %v1001
      %v1051 = vsel %vm314, %v951, %v1001
      %v1053 = vrot.slane %v1051, 1
      %v1054 = vsel %vm318, %v951, %v1001
      %v1056 = vrot.slane %v1054, 2
      %v1057 = vsel %vm322, %v951, %v1001
      %v1059 = vrot.slane %v1057, 3
      %v1062 = vsel %vm310, %v952, %v1002
      %v1063 = vsel %vm314, %v952, %v1002
      %v1065 = vrot.slane %v1063, 1
      %v1066 = vsel %vm318, %v952, %v1002
      %v1068 = vrot.slane %v1066, 2
      %v1069 = vsel %vm322, %v952, %v1002
      %v1071 = vrot.slane %v1069, 3
      %v1074 = vsel %vm310, %v953, %v1003
      %v1075 = vsel %vm314, %v953, %v1003
      %v1077 = vrot.slane %v1075, 1
      %v1078 = vsel %vm318, %v953, %v1003
      %v1080 = vrot.slane %v1078, 2
      %v1081 = vsel %vm322, %v953, %v1003
      %v1083 = vrot.slane %v1081, 3
      %v1086 = vsel %vm310, %v954, %v1004
      %v1087 = vsel %vm314, %v954, %v1004
      %v1089 = vrot.slane %v1087, 1
      %v1090 = vsel %vm318, %v954, %v1004
      %v1092 = vrot.slane %v1090, 2
      %v1093 = vsel %vm322, %v954, %v1004
      %v1095 = vrot.slane %v1093, 3
      %v1098 = vsel %vm310, %v955, %v1005
      %v1099 = vsel %vm314, %v955, %v1005
      %v1101 = vrot.slane %v1099, 1
      %v1102 = vsel %vm318, %v955, %v1005
      %v1104 = vrot.slane %v1102, 2
      %v1105 = vsel %vm322, %v955, %v1005
      %v1107 = vrot.slane %v1105, 3
      %v1110 = vsel %vm310, %v956, %v1006
      %v1111 = vsel %vm314, %v956, %v1006
      %v1113 = vrot.slane %v1111, 1
      %v1114 = vsel %vm318, %v956, %v1006
      %v1116 = vrot.slane %v1114, 2
      %v1117 = vsel %vm322, %v956, %v1006
      %v1119 = vrot.slane %v1117, 3
      %v1122 = vsel %vm310, %v957, %v1007
      %v1123 = vsel %vm314, %v957, %v1007
      %v1125 = vrot.slane %v1123, 1
      %v1126 = vsel %vm318, %v957, %v1007
      %v1128 = vrot.slane %v1126, 2
      %v1129 = vsel %vm322, %v957, %v1007
      %v1131 = vrot.slane %v1129, 3
      %v1134 = vsel %vm310, %v958, %v1008
      %v1135 = vsel %vm314, %v958, %v1008
      %v1137 = vrot.slane %v1135, 1
      %v1138 = vsel %vm318, %v958, %v1008
      %v1140 = vrot.slane %v1138, 2
      %v1141 = vsel %vm322, %v958, %v1008
      %v1143 = vrot.slane %v1141, 3
      %v1146 = vsel %vm310, %v959, %v1009
      %v1147 = vsel %vm314, %v959, %v1009
      %v1149 = vrot.slane %v1147, 1
      %v1150 = vsel %vm318, %v959, %v1009
      %v1152 = vrot.slane %v1150, 2
      %v1153 = vsel %vm322, %v959, %v1009
      %v1155 = vrot.slane %v1153, 3
      %v1158 = vsel %vm310, %v960, %v1010
      %v1159 = vsel %vm314, %v960, %v1010
      %v1161 = vrot.slane %v1159, 1
      %v1162 = vsel %vm318, %v960, %v1010
      %v1164 = vrot.slane %v1162, 2
      %v1165 = vsel %vm322, %v960, %v1010
      %v1167 = vrot.slane %v1165, 3
      %v1170 = vsel %vm310, %v961, %v1011
      %v1171 = vsel %vm314, %v961, %v1011
      %v1173 = vrot.slane %v1171, 1
      %v1174 = vsel %vm318, %v961, %v1011
      %v1176 = vrot.slane %v1174, 2
      %v1177 = vsel %vm322, %v961, %v1011
      %v1179 = vrot.slane %v1177, 3
      %v1182 = vsel %vm310, %v962, %v1012
      %v1183 = vsel %vm314, %v962, %v1012
      %v1185 = vrot.slane %v1183, 1
      %v1186 = vsel %vm318, %v962, %v1012
      %v1188 = vrot.slane %v1186, 2
      %v1189 = vsel %vm322, %v962, %v1012
      %v1191 = vrot.slane %v1189, 3
      %v1194 = vsel %vm310, %v963, %v1013
      %v1195 = vsel %vm314, %v963, %v1013
      %v1197 = vrot.slane %v1195, 1
      %v1198 = vsel %vm318, %v963, %v1013
      %v1200 = vrot.slane %v1198, 2
      %v1201 = vsel %vm322, %v963, %v1013
      %v1203 = vrot.slane %v1201, 3
      %v1206 = vsel %vm310, %v964, %v1014
      %v1207 = vsel %vm314, %v964, %v1014
      %v1209 = vrot.slane %v1207, 1
      %v1210 = vsel %vm318, %v964, %v1014
      %v1212 = vrot.slane %v1210, 2
      %v1213 = vsel %vm322, %v964, %v1014
      %v1215 = vrot.slane %v1213, 3
      %v1218 = vsel %vm310, %v965, %v1015
      %v1219 = vsel %vm314, %v965, %v1015
      %v1221 = vrot.slane %v1219, 1
      %v1222 = vsel %vm318, %v965, %v1015
      %v1224 = vrot.slane %v1222, 2
      %v1225 = vsel %vm322, %v965, %v1015
      %v1227 = vrot.slane %v1225, 3
      %v1230 = vsel %vm310, %v966, %v1016
      %v1231 = vsel %vm314, %v966, %v1016
      %v1233 = vrot.slane %v1231, 1
      %v1234 = vsel %vm318, %v966, %v1016
      %v1236 = vrot.slane %v1234, 2
      %v1237 = vsel %vm322, %v966, %v1016
      %v1239 = vrot.slane %v1237, 3
      %v1242 = vsel %vm310, %v967, %v1017
      %v1243 = vsel %vm314, %v967, %v1017
      %v1245 = vrot.slane %v1243, 1
      %v1246 = vsel %vm318, %v967, %v1017
      %v1248 = vrot.slane %v1246, 2
      %v1249 = vsel %vm322, %v967, %v1017
      %v1251 = vrot.slane %v1249, 3
      %v1254 = vsel %vm310, %v968, %v1018
      %v1255 = vsel %vm314, %v968, %v1018
      %v1257 = vrot.slane %v1255, 1
      %v1258 = vsel %vm318, %v968, %v1018
      %v1260 = vrot.slane %v1258, 2
      %v1261 = vsel %vm322, %v968, %v1018
      %v1263 = vrot.slane %v1261, 3
      %v1266 = vsel %vm310, %v969, %v1019
      %v1267 = vsel %vm314, %v969, %v1019
      %v1269 = vrot.slane %v1267, 1
      %v1270 = vsel %vm318, %v969, %v1019
      %v1272 = vrot.slane %v1270, 2
      %v1273 = vsel %vm322, %v969, %v1019
      %v1275 = vrot.slane %v1273, 3
      %v1278 = vsel %vm310, %v970, %v1020
      %v1279 = vsel %vm314, %v970, %v1020
      %v1281 = vrot.slane %v1279, 1
      %v1282 = vsel %vm318, %v970, %v1020
      %v1284 = vrot.slane %v1282, 2
      %v1285 = vsel %vm322, %v970, %v1020
      %v1287 = vrot.slane %v1285, 3
      %v1290 = vsel %vm310, %v971, %v1021
      %v1291 = vsel %vm314, %v971, %v1021
      %v1293 = vrot.slane %v1291, 1
      %v1294 = vsel %vm318, %v971, %v1021
      %v1296 = vrot.slane %v1294, 2
      %v1297 = vsel %vm322, %v971, %v1021
      %v1299 = vrot.slane %v1297, 3
      %v1302 = vsel %vm310, %v972, %v1022
      %v1303 = vsel %vm314, %v972, %v1022
      %v1305 = vrot.slane %v1303, 1
      %v1306 = vsel %vm318, %v972, %v1022
      %v1308 = vrot.slane %v1306, 2
      %v1309 = vsel %vm322, %v972, %v1022
      %v1311 = vrot.slane %v1309, 3
      %v1314 = vsel %vm310, %v973, %v1023
      %v1315 = vsel %vm314, %v973, %v1023
      %v1317 = vrot.slane %v1315, 1
      %v1318 = vld [vmem:[%s3] sm:$0xf]
      %v1319 = vld [vmem:[%s3 + $0x4] sm:$0xf]
      %v1320 = vld [vmem:[%s3 + $0x8] sm:$0xf]
      %v1321 = vld [vmem:[%s3 + $0xc] sm:$0xf]
      %v1322 = vld [vmem:[%s3 + $0x10] sm:$0xf]
      %v1323 = vld [vmem:[%s3 + $0x14] sm:$0xf]
      %v1324 = vld [vmem:[%s3 + $0x18] sm:$0xf]
      %v1325 = vld [vmem:[%s3 + $0x1c] sm:$0xf]
      %v1326 = vld [vmem:[%s3 + $0x20] sm:$0xf]
      %v1327 = vld [vmem:[%s3 + $0x24] sm:$0xf]
      %v1328 = vld [vmem:[%s3 + $0x28] sm:$0xf]
      %v1329 = vld [vmem:[%s3 + $0x2c] sm:$0xf]
      %v1330 = vld [vmem:[%s3 + $0x30] sm:$0xf]
      %v1331 = vld [vmem:[%s3 + $0x34] sm:$0xf]
      %v1332 = vld [vmem:[%s3 + $0x38] sm:$0xf]
      %v1333 = vld [vmem:[%s3 + $0x3c] sm:$0xf]
      %vm1334 = vsmask.f32 256
      %vm1335 = vsmask.f32 1284
      %vm1336 = vmor %vm1334, %vm1335
      %vm1337 = vsmask.f32 2312
      %vm1338 = vmor %vm1336, %vm1337
      %vm1339 = vsmask.f32 3340
      %vm1340 = vmor %vm1338, %vm1339
      %vm1341 = vsmask.f32 4368
      %vm1342 = vmor %vm1340, %vm1341
      %vm1343 = vsmask.f32 5396
      %vm1344 = vmor %vm1342, %vm1343
      %vm1345 = vsmask.f32 6424
      %vm1346 = vmor %vm1344, %vm1345
      %vm1347 = vsmask.f32 7452
      %vm1348 = vmor %vm1346, %vm1347
      %v1349 = vshrl.u32 %v1026, 16
      %v1351 = vrot.slane %v1349, 7
      %v1352 = vrot.slane %v1351, 1
      %v1354 = vshll.u32 %v1029, 16
      %v1356 = vsel %vm1348, %v1352, %v1354
      %v1357 = vshrl.u32 %v1029, 16
      %v1359 = vrot.slane %v1357, 7
      %v1360 = vrot.slane %v1359, 1
      %v1362 = vshll.u32 %v1032, 16
      %v1364 = vsel %vm1348, %v1360, %v1362
      %v1365 = vshrl.u32 %v1032, 16
      %v1367 = vrot.slane %v1365, 7
      %v1368 = vrot.slane %v1367, 1
      %v1370 = vshll.u32 %v1035, 16
      %v1372 = vsel %vm1348, %v1368, %v1370
      %v1373 = vshrl.u32 %v1035, 16
      %v1375 = vrot.slane %v1373, 7
      %v1376 = vrot.slane %v1375, 1
      %v1377 = vshll.u32 %v1038, 16
      %v1379 = vsel %vm1348, %v1376, %v1377
      %v1380 = vshrl.u32 %v1038, 16
      %v1382 = vrot.slane %v1380, 7
      %v1383 = vrot.slane %v1382, 1
      %v1385 = vshll.u32 %v1041, 16
      %v1387 = vsel %vm1348, %v1383, %v1385
      %v1388 = vshrl.u32 %v1041, 16
      %v1390 = vrot.slane %v1388, 7
      %v1391 = vrot.slane %v1390, 1
      %v1393 = vshll.u32 %v1044, 16
      %v1395 = vsel %vm1348, %v1391, %v1393
      %v1397 = vshrl.u32 %v1047, 16
      %v1399 = vrot.slane %v1397, 7
      %v1400 = vrot.slane %v1399, 1
      %v1401 = vshll.u32 %v1050, 16
      %v1403 = vsel %vm1348, %v1400, %v1401
      %v1404 = vshrl.u32 %v1050, 16
      %v1406 = vrot.slane %v1404, 7
      %v1407 = vrot.slane %v1406, 1
      %v1409 = vshll.u32 %v1053, 16
      %v1411 = vsel %vm1348, %v1407, %v1409
      %v1412 = vshrl.u32 %v1053, 16
      %v1414 = vrot.slane %v1412, 7
      %v1415 = vrot.slane %v1414, 1
      %v1417 = vshll.u32 %v1056, 16
      %v1419 = vsel %vm1348, %v1415, %v1417
      %v1420 = vshrl.u32 %v1056, 16
      %v1422 = vrot.slane %v1420, 7
      %v1423 = vrot.slane %v1422, 1
      %v1425 = vshll.u32 %v1059, 16
      %v1427 = vsel %vm1348, %v1423, %v1425
      %v1428 = vshrl.u32 %v1059, 16
      %v1430 = vrot.slane %v1428, 7
      %v1431 = vrot.slane %v1430, 1
      %v1432 = vshll.u32 %v1062, 16
      %v1434 = vsel %vm1348, %v1431, %v1432
      %v1435 = vshrl.u32 %v1062, 16
      %v1437 = vrot.slane %v1435, 7
      %v1438 = vrot.slane %v1437, 1
      %v1440 = vshll.u32 %v1065, 16
      %v1442 = vsel %vm1348, %v1438, %v1440
      %v1444 = vshrl.u32 %v1068, 16
      %v1446 = vrot.slane %v1444, 7
      %v1447 = vrot.slane %v1446, 1
      %v1449 = vshll.u32 %v1071, 16
      %v1451 = vsel %vm1348, %v1447, %v1449
      %v1452 = vshrl.u32 %v1071, 16
      %v1454 = vrot.slane %v1452, 7
      %v1455 = vrot.slane %v1454, 1
      %v1456 = vshll.u32 %v1074, 16
      %v1458 = vsel %vm1348, %v1455, %v1456
      %v1459 = vshrl.u32 %v1074, 16
      %v1461 = vrot.slane %v1459, 7
      %v1462 = vrot.slane %v1461, 1
      %v1464 = vshll.u32 %v1077, 16
      %v1466 = vsel %vm1348, %v1462, %v1464
      %v1467 = vshrl.u32 %v1077, 16
      %v1469 = vrot.slane %v1467, 7
      %v1470 = vrot.slane %v1469, 1
      %v1472 = vshll.u32 %v1080, 16
      %v1474 = vsel %vm1348, %v1470, %v1472
      %v1475 = vshrl.u32 %v1080, 16
      %v1477 = vrot.slane %v1475, 7
      %v1478 = vrot.slane %v1477, 1
      %v1480 = vshll.u32 %v1083, 16
      %v1482 = vsel %vm1348, %v1478, %v1480
      %v1483 = vshrl.u32 %v1083, 16
      %v1485 = vrot.slane %v1483, 7
      %v1486 = vrot.slane %v1485, 1
      %v1487 = vshll.u32 %v1086, 16
      %v1489 = vsel %vm1348, %v1486, %v1487
      %v1491 = vshrl.u32 %v1089, 16
      %v1493 = vrot.slane %v1491, 7
      %v1494 = vrot.slane %v1493, 1
      %v1496 = vshll.u32 %v1092, 16
      %v1498 = vsel %vm1348, %v1494, %v1496
      %v1499 = vshrl.u32 %v1092, 16
      %v1501 = vrot.slane %v1499, 7
      %v1502 = vrot.slane %v1501, 1
      %v1504 = vshll.u32 %v1095, 16
      %v1506 = vsel %vm1348, %v1502, %v1504
      %v1507 = vshrl.u32 %v1095, 16
      %v1509 = vrot.slane %v1507, 7
      %v1510 = vrot.slane %v1509, 1
      %v1511 = vshll.u32 %v1098, 16
      %v1513 = vsel %vm1348, %v1510, %v1511
      %v1514 = vshrl.u32 %v1098, 16
      %v1516 = vrot.slane %v1514, 7
      %v1517 = vrot.slane %v1516, 1
      %v1519 = vshll.u32 %v1101, 16
      %v1521 = vsel %vm1348, %v1517, %v1519
      %v1522 = vshrl.u32 %v1101, 16
      %v1524 = vrot.slane %v1522, 7
      %v1525 = vrot.slane %v1524, 1
      %v1527 = vshll.u32 %v1104, 16
      %v1529 = vsel %vm1348, %v1525, %v1527
      %v1530 = vshrl.u32 %v1104, 16
      %v1532 = vrot.slane %v1530, 7
      %v1533 = vrot.slane %v1532, 1
      %v1535 = vshll.u32 %v1107, 16
      %v1537 = vsel %vm1348, %v1533, %v1535
      %v1538 = vshrl.u32 %v1110, 16
      %v1540 = vrot.slane %v1538, 7
      %v1541 = vrot.slane %v1540, 1
      %v1543 = vshll.u32 %v1113, 16
      %v1545 = vsel %vm1348, %v1541, %v1543
      %v1546 = vshrl.u32 %v1113, 16
      %v1548 = vrot.slane %v1546, 7
      %v1549 = vrot.slane %v1548, 1
      %v1551 = vshll.u32 %v1116, 16
      %v1553 = vsel %vm1348, %v1549, %v1551
      %v1554 = vshrl.u32 %v1116, 16
      %v1556 = vrot.slane %v1554, 7
      %v1557 = vrot.slane %v1556, 1
      %v1559 = vshll.u32 %v1119, 16
      %v1561 = vsel %vm1348, %v1557, %v1559
      %v1562 = vshrl.u32 %v1119, 16
      %v1564 = vrot.slane %v1562, 7
      %v1565 = vrot.slane %v1564, 1
      %v1566 = vshll.u32 %v1122, 16
      %v1568 = vsel %vm1348, %v1565, %v1566
      %v1569 = vshrl.u32 %v1122, 16
      %v1571 = vrot.slane %v1569, 7
      %v1572 = vrot.slane %v1571, 1
      %v1574 = vshll.u32 %v1125, 16
      %v1576 = vsel %vm1348, %v1572, %v1574
      %v1577 = vshrl.u32 %v1125, 16
      %v1579 = vrot.slane %v1577, 7
      %v1580 = vrot.slane %v1579, 1
      %v1582 = vshll.u32 %v1128, 16
      %v1584 = vsel %vm1348, %v1580, %v1582
      %v1586 = vshrl.u32 %v1131, 16
      %v1588 = vrot.slane %v1586, 7
      %v1589 = vrot.slane %v1588, 1
      %v1590 = vshll.u32 %v1134, 16
      %v1592 = vsel %vm1348, %v1589, %v1590
      %v1593 = vshrl.u32 %v1134, 16
      %v1595 = vrot.slane %v1593, 7
      %v1596 = vrot.slane %v1595, 1
      %v1598 = vshll.u32 %v1137, 16
      %v1600 = vsel %vm1348, %v1596, %v1598
      %v1601 = vshrl.u32 %v1137, 16
      %v1603 = vrot.slane %v1601, 7
      %v1604 = vrot.slane %v1603, 1
      %v1606 = vshll.u32 %v1140, 16
      %v1608 = vsel %vm1348, %v1604, %v1606
      %v1609 = vshrl.u32 %v1140, 16
      %v1611 = vrot.slane %v1609, 7
      %v1612 = vrot.slane %v1611, 1
      %v1614 = vshll.u32 %v1143, 16
      %v1616 = vsel %vm1348, %v1612, %v1614
      %v1617 = vshrl.u32 %v1143, 16
      %v1619 = vrot.slane %v1617, 7
      %v1620 = vrot.slane %v1619, 1
      %v1621 = vshll.u32 %v1146, 16
      %v1623 = vsel %vm1348, %v1620, %v1621
      %v1624 = vshrl.u32 %v1146, 16
      %v1626 = vrot.slane %v1624, 7
      %v1627 = vrot.slane %v1626, 1
      %v1629 = vshll.u32 %v1149, 16
      %v1631 = vsel %vm1348, %v1627, %v1629
      %v1633 = vshrl.u32 %v1152, 16
      %v1635 = vrot.slane %v1633, 7
      %v1636 = vrot.slane %v1635, 1
      %v1638 = vshll.u32 %v1155, 16
      %v1640 = vsel %vm1348, %v1636, %v1638
      %v1641 = vshrl.u32 %v1155, 16
      %v1643 = vrot.slane %v1641, 7
      %v1644 = vrot.slane %v1643, 1
      %v1645 = vshll.u32 %v1158, 16
      %v1647 = vsel %vm1348, %v1644, %v1645
      %v1648 = vshrl.u32 %v1158, 16
      %v1650 = vrot.slane %v1648, 7
      %v1651 = vrot.slane %v1650, 1
      %v1653 = vshll.u32 %v1161, 16
      %v1655 = vsel %vm1348, %v1651, %v1653
      %v1656 = vshrl.u32 %v1161, 16
      %v1658 = vrot.slane %v1656, 7
      %v1659 = vrot.slane %v1658, 1
      %v1661 = vshll.u32 %v1164, 16
      %v1663 = vsel %vm1348, %v1659, %v1661
      %v1664 = vshrl.u32 %v1164, 16
      %v1666 = vrot.slane %v1664, 7
      %v1667 = vrot.slane %v1666, 1
      %v1669 = vshll.u32 %v1167, 16
      %v1671 = vsel %vm1348, %v1667, %v1669
      %v1672 = vshrl.u32 %v1167, 16
      %v1674 = vrot.slane %v1672, 7
      %v1675 = vrot.slane %v1674, 1
      %v1676 = vshll.u32 %v1170, 16
      %v1678 = vsel %vm1348, %v1675, %v1676
      %v1680 = vshrl.u32 %v1173, 16
      %v1682 = vrot.slane %v1680, 7
      %v1683 = vrot.slane %v1682, 1
      %v1685 = vshll.u32 %v1176, 16
      %v1687 = vsel %vm1348, %v1683, %v1685
      %v1688 = vshrl.u32 %v1176, 16
      %v1690 = vrot.slane %v1688, 7
      %v1691 = vrot.slane %v1690, 1
      %v1693 = vshll.u32 %v1179, 16
      %v1695 = vsel %vm1348, %v1691, %v1693
      %v1696 = vshrl.u32 %v1179, 16
      %v1698 = vrot.slane %v1696, 7
      %v1699 = vrot.slane %v1698, 1
      %v1700 = vshll.u32 %v1182, 16
      %v1702 = vsel %vm1348, %v1699, %v1700
      %v1703 = vshrl.u32 %v1182, 16
      %v1705 = vrot.slane %v1703, 7
      %v1706 = vrot.slane %v1705, 1
      %v1708 = vshll.u32 %v1185, 16
      %v1710 = vsel %vm1348, %v1706, %v1708
      %v1711 = vshrl.u32 %v1185, 16
      %v1713 = vrot.slane %v1711, 7
      %v1714 = vrot.slane %v1713, 1
      %v1716 = vshll.u32 %v1188, 16
      %v1718 = vsel %vm1348, %v1714, %v1716
      %v1719 = vshrl.u32 %v1188, 16
      %v1721 = vrot.slane %v1719, 7
      %v1722 = vrot.slane %v1721, 1
      %v1724 = vshll.u32 %v1191, 16
      %v1726 = vsel %vm1348, %v1722, %v1724
      %v1727 = vshrl.u32 %v1194, 16
      %v1729 = vrot.slane %v1727, 7
      %v1730 = vrot.slane %v1729, 1
      %v1732 = vshll.u32 %v1197, 16
      %v1734 = vsel %vm1348, %v1730, %v1732
      %v1735 = vshrl.u32 %v1197, 16
      %v1737 = vrot.slane %v1735, 7
      %v1738 = vrot.slane %v1737, 1
      %v1740 = vshll.u32 %v1200, 16
      %v1742 = vsel %vm1348, %v1738, %v1740
      %v1743 = vshrl.u32 %v1200, 16
      %v1745 = vrot.slane %v1743, 7
      %v1746 = vrot.slane %v1745, 1
      %v1748 = vshll.u32 %v1203, 16
      %v1750 = vsel %vm1348, %v1746, %v1748
      %v1751 = vshrl.u32 %v1203, 16
      %v1753 = vrot.slane %v1751, 7
      %v1754 = vrot.slane %v1753, 1
      %v1755 = vshll.u32 %v1206, 16
      %v1757 = vsel %vm1348, %v1754, %v1755
      %v1758 = vshrl.u32 %v1206, 16
      %v1760 = vrot.slane %v1758, 7
      %v1761 = vrot.slane %v1760, 1
      %v1763 = vshll.u32 %v1209, 16
      %v1765 = vsel %vm1348, %v1761, %v1763
      %v1766 = vshrl.u32 %v1209, 16
      %v1768 = vrot.slane %v1766, 7
      %v1769 = vrot.slane %v1768, 1
      %v1771 = vshll.u32 %v1212, 16
      %v1773 = vsel %vm1348, %v1769, %v1771
      %v1775 = vshrl.u32 %v1215, 16
      %v1777 = vrot.slane %v1775, 7
      %v1778 = vrot.slane %v1777, 1
      %v1779 = vshll.u32 %v1218, 16
      %v1781 = vsel %vm1348, %v1778, %v1779
      %v1782 = vshrl.u32 %v1218, 16
      %v1784 = vrot.slane %v1782, 7
      %v1785 = vrot.slane %v1784, 1
      %v1787 = vshll.u32 %v1221, 16
      %v1789 = vsel %vm1348, %v1785, %v1787
      %v1790 = vshrl.u32 %v1221, 16
      %v1792 = vrot.slane %v1790, 7
      %v1793 = vrot.slane %v1792, 1
      %v1795 = vshll.u32 %v1224, 16
      %v1797 = vsel %vm1348, %v1793, %v1795
      %v1798 = vshrl.u32 %v1224, 16
      %v1800 = vrot.slane %v1798, 7
      %v1801 = vrot.slane %v1800, 1
      %v1803 = vshll.u32 %v1227, 16
      %v1805 = vsel %vm1348, %v1801, %v1803
      %v1806 = vshrl.u32 %v1227, 16
      %v1808 = vrot.slane %v1806, 7
      %v1809 = vrot.slane %v1808, 1
      %v1810 = vshll.u32 %v1230, 16
      %v1812 = vsel %vm1348, %v1809, %v1810
      %v1813 = vshrl.u32 %v1230, 16
      %v1815 = vrot.slane %v1813, 7
      %v1816 = vrot.slane %v1815, 1
      %v1818 = vshll.u32 %v1233, 16
      %v1820 = vsel %vm1348, %v1816, %v1818
      %v1822 = vshrl.u32 %v1236, 16
      %v1824 = vrot.slane %v1822, 7
      %v1825 = vrot.slane %v1824, 1
      %v1827 = vshll.u32 %v1239, 16
      %v1829 = vsel %vm1348, %v1825, %v1827
      %v1830 = vshrl.u32 %v1239, 16
      %v1832 = vrot.slane %v1830, 7
      %v1833 = vrot.slane %v1832, 1
      %v1834 = vshll.u32 %v1242, 16
      %v1836 = vsel %vm1348, %v1833, %v1834
      %v1837 = vshrl.u32 %v1242, 16
      %v1839 = vrot.slane %v1837, 7
      %v1840 = vrot.slane %v1839, 1
      %v1842 = vshll.u32 %v1245, 16
      %v1844 = vsel %vm1348, %v1840, %v1842
      %v1845 = vshrl.u32 %v1245, 16
      %v1847 = vrot.slane %v1845, 7
      %v1848 = vrot.slane %v1847, 1
      %v1850 = vshll.u32 %v1248, 16
      %v1852 = vsel %vm1348, %v1848, %v1850
      %v1853 = vshrl.u32 %v1248, 16
      %v1855 = vrot.slane %v1853, 7
      %v1856 = vrot.slane %v1855, 1
      %v1858 = vshll.u32 %v1251, 16
      %v1860 = vsel %vm1348, %v1856, %v1858
      %v1861 = vshrl.u32 %v1251, 16
      %v1863 = vrot.slane %v1861, 7
      %v1864 = vrot.slane %v1863, 1
      %v1865 = vshll.u32 %v1254, 16
      %v1867 = vsel %vm1348, %v1864, %v1865
      %v1869 = vshrl.u32 %v1257, 16
      %v1871 = vrot.slane %v1869, 7
      %v1872 = vrot.slane %v1871, 1
      %v1874 = vshll.u32 %v1260, 16
      %v1876 = vsel %vm1348, %v1872, %v1874
      %v1877 = vshrl.u32 %v1260, 16
      %v1879 = vrot.slane %v1877, 7
      %v1880 = vrot.slane %v1879, 1
      %v1882 = vshll.u32 %v1263, 16
      %v1884 = vsel %vm1348, %v1880, %v1882
      %v1885 = vshrl.u32 %v1263, 16
      %v1887 = vrot.slane %v1885, 7
      %v1888 = vrot.slane %v1887, 1
      %v1889 = vshll.u32 %v1266, 16
      %v1891 = vsel %vm1348, %v1888, %v1889
      %v1892 = vshrl.u32 %v1266, 16
      %v1894 = vrot.slane %v1892, 7
      %v1895 = vrot.slane %v1894, 1
      %v1897 = vshll.u32 %v1269, 16
      %v1899 = vsel %vm1348, %v1895, %v1897
      %v1900 = vshrl.u32 %v1269, 16
      %v1902 = vrot.slane %v1900, 7
      %v1903 = vrot.slane %v1902, 1
      %v1905 = vshll.u32 %v1272, 16
      %v1907 = vsel %vm1348, %v1903, %v1905
      %v1908 = vshrl.u32 %v1272, 16
      %v1910 = vrot.slane %v1908, 7
      %v1911 = vrot.slane %v1910, 1
      %v1913 = vshll.u32 %v1275, 16
      %v1915 = vsel %vm1348, %v1911, %v1913
      %s1916 = scalar_lea.vmem %s3, 64
      %v1917 = vld [vmem:[%s1916] sm:$0xf]
      %v1918 = vld [vmem:[%s1916 + $0x4] sm:$0xf]
      %v1919 = vld [vmem:[%s1916 + $0x8] sm:$0xf]
      %v1920 = vld [vmem:[%s1916 + $0xc] sm:$0xf]
      %v1921 = vld [vmem:[%s1916 + $0x10] sm:$0xf]
      %v1922 = vld [vmem:[%s1916 + $0x14] sm:$0xf]
      %v1923 = vld [vmem:[%s1916 + $0x18] sm:$0xf]
      %v1924 = vld [vmem:[%s1916 + $0x1c] sm:$0xf]
      %v1925 = vld [vmem:[%s1916 + $0x20] sm:$0xf]
      %v1926 = vld [vmem:[%s1916 + $0x24] sm:$0xf]
      %v1927 = vld [vmem:[%s1916 + $0x28] sm:$0xf]
      %v1928 = vld [vmem:[%s1916 + $0x2c] sm:$0xf]
      %v1929 = vld [vmem:[%s1916 + $0x30] sm:$0xf]
      %v1930 = vld [vmem:[%s1916 + $0x34] sm:$0xf]
      %v1931 = vld [vmem:[%s1916 + $0x38] sm:$0xf]
      %v1932 = vld [vmem:[%s1916 + $0x3c] sm:$0xf]
      %1934 = vst [vmem:[#allocation1] ss:$9 sm:$0xff] %v1356
      %s1936 = scalar_lea.vmem [#allocation1], 1
      %1937 = vst [vmem:[%s1936] ss:$9 sm:$0xff] %v1364
      %s1939 = scalar_lea.vmem [#allocation1], 2
      %1940 = vst [vmem:[%s1939] ss:$9 sm:$0xff] %v1372
      %s1942 = scalar_lea.vmem [#allocation1], 3
      %1943 = vst [vmem:[%s1942] ss:$9 sm:$0xff] %v1379
      %s1945 = scalar_lea.vmem [#allocation1], 4
      %1946 = vst [vmem:[%s1945] ss:$9 sm:$0xff] %v1387
      %s1948 = scalar_lea.vmem [#allocation1], 5
      %1949 = vst [vmem:[%s1948] ss:$9 sm:$0xff] %v1395
      %s1951 = scalar_lea.vmem [#allocation1], 6
      %1952 = vst [vmem:[%s1951] ss:$9 sm:$0xff] %v1403
      %s1954 = scalar_lea.vmem [#allocation1], 7
      %1955 = vst [vmem:[%s1954] ss:$9 sm:$0xff] %v1411
      %v1956 = vld [vmem:[#allocation1] sm:$0xff]
      %1958 = vst [vmem:[#allocation1] ss:$9 sm:$0xff] %v1419
      %1960 = vst [vmem:[%s1936] ss:$9 sm:$0xff] %v1427
      %1962 = vst [vmem:[%s1939] ss:$9 sm:$0xff] %v1434
      %1964 = vst [vmem:[%s1942] ss:$9 sm:$0xff] %v1442
      %1966 = vst [vmem:[%s1945] ss:$9 sm:$0xff] %v1451
      %1968 = vst [vmem:[%s1948] ss:$9 sm:$0xff] %v1458
      %1970 = vst [vmem:[%s1951] ss:$9 sm:$0xff] %v1466
      %1972 = vst [vmem:[%s1954] ss:$9 sm:$0xff] %v1474
      %v1973 = vld [vmem:[#allocation1] sm:$0xff]
      %1975 = vst [vmem:[#allocation1] ss:$9 sm:$0xff] %v1482
      %1977 = vst [vmem:[%s1936] ss:$9 sm:$0xff] %v1489
      %1979 = vst [vmem:[%s1939] ss:$9 sm:$0xff] %v1498
      %1981 = vst [vmem:[%s1942] ss:$9 sm:$0xff] %v1506
      %1983 = vst [vmem:[%s1945] ss:$9 sm:$0xff] %v1513
      %1985 = vst [vmem:[%s1948] ss:$9 sm:$0xff] %v1521
      %1987 = vst [vmem:[%s1951] ss:$9 sm:$0xff] %v1529
      %1989 = vst [vmem:[%s1954] ss:$9 sm:$0xff] %v1537
      %v1990 = vld [vmem:[#allocation1] sm:$0xff]
      %1992 = vst [vmem:[#allocation1] ss:$9 sm:$0xff] %v1545
      %1994 = vst [vmem:[%s1936] ss:$9 sm:$0xff] %v1553
      %1996 = vst [vmem:[%s1939] ss:$9 sm:$0xff] %v1561
      %1998 = vst [vmem:[%s1942] ss:$9 sm:$0xff] %v1568
      %2000 = vst [vmem:[%s1945] ss:$9 sm:$0xff] %v1576
      %2002 = vst [vmem:[%s1948] ss:$9 sm:$0xff] %v1584
      %2004 = vst [vmem:[%s1951] ss:$9 sm:$0xff] %v1592
      %2006 = vst [vmem:[%s1954] ss:$9 sm:$0xff] %v1600
      %v2007 = vld [vmem:[#allocation1] sm:$0xff]
      %2009 = vst [vmem:[#allocation1] ss:$9 sm:$0xff] %v1608
      %2011 = vst [vmem:[%s1936] ss:$9 sm:$0xff] %v1616
      %2013 = vst [vmem:[%s1939] ss:$9 sm:$0xff] %v1623
      %2015 = vst [vmem:[%s1942] ss:$9 sm:$0xff] %v1631
      %2017 = vst [vmem:[%s1945] ss:$9 sm:$0xff] %v1640
      %2019 = vst [vmem:[%s1948] ss:$9 sm:$0xff] %v1647
      %2021 = vst [vmem:[%s1951] ss:$9 sm:$0xff] %v1655
      %2023 = vst [vmem:[%s1954] ss:$9 sm:$0xff] %v1663
      %v2024 = vld [vmem:[#allocation1] sm:$0xff]
      %2026 = vst [vmem:[#allocation1] ss:$9 sm:$0xff] %v1671
      %2028 = vst [vmem:[%s1936] ss:$9 sm:$0xff] %v1678
      %2030 = vst [vmem:[%s1939] ss:$9 sm:$0xff] %v1687
      %2032 = vst [vmem:[%s1942] ss:$9 sm:$0xff] %v1695
      %2034 = vst [vmem:[%s1945] ss:$9 sm:$0xff] %v1702
      %2036 = vst [vmem:[%s1948] ss:$9 sm:$0xff] %v1710
      %2038 = vst [vmem:[%s1951] ss:$9 sm:$0xff] %v1718
      %2040 = vst [vmem:[%s1954] ss:$9 sm:$0xff] %v1726
      %v2041 = vld [vmem:[#allocation1] sm:$0xff]
      %2043 = vst [vmem:[#allocation1] ss:$9 sm:$0xff] %v1734
      %2045 = vst [vmem:[%s1936] ss:$9 sm:$0xff] %v1742
      %2047 = vst [vmem:[%s1939] ss:$9 sm:$0xff] %v1750
      %2049 = vst [vmem:[%s1942] ss:$9 sm:$0xff] %v1757
      %2051 = vst [vmem:[%s1945] ss:$9 sm:$0xff] %v1765
      %2053 = vst [vmem:[%s1948] ss:$9 sm:$0xff] %v1773
      %2055 = vst [vmem:[%s1951] ss:$9 sm:$0xff] %v1781
      %2057 = vst [vmem:[%s1954] ss:$9 sm:$0xff] %v1789
      %v2058 = vld [vmem:[#allocation1] sm:$0xff]
      %2060 = vst [vmem:[#allocation1] ss:$9 sm:$0xff] %v1797
      %2062 = vst [vmem:[%s1936] ss:$9 sm:$0xff] %v1805
      %2064 = vst [vmem:[%s1939] ss:$9 sm:$0xff] %v1812
      %2066 = vst [vmem:[%s1942] ss:$9 sm:$0xff] %v1820
      %2068 = vst [vmem:[%s1945] ss:$9 sm:$0xff] %v1829
      %2070 = vst [vmem:[%s1948] ss:$9 sm:$0xff] %v1836
      %2072 = vst [vmem:[%s1951] ss:$9 sm:$0xff] %v1844
      %2074 = vst [vmem:[%s1954] ss:$9 sm:$0xff] %v1852
      %v2075 = vld [vmem:[#allocation1] sm:$0xff]
      %2077 = vst [vmem:[#allocation1] ss:$9 sm:$0xff] %v1860
      %2079 = vst [vmem:[%s1936] ss:$9 sm:$0xff] %v1867
      %2081 = vst [vmem:[%s1939] ss:$9 sm:$0xff] %v1876
      %2083 = vst [vmem:[%s1942] ss:$9 sm:$0xff] %v1884
      %2085 = vst [vmem:[%s1945] ss:$9 sm:$0xff] %v1891
      %2087 = vst [vmem:[%s1948] ss:$9 sm:$0xff] %v1899
      %2089 = vst [vmem:[%s1951] ss:$9 sm:$0xff] %v1907
      %2091 = vst [vmem:[%s1954] ss:$9 sm:$0xff] %v1915
      %v2092 = vld [vmem:[#allocation1] sm:$0xff]
      %v2118 = vunpack.c.l.b16 %v1917
      %v2119 = vunpack.c.l.b16 %v1918
      %v2120 = vunpack.c.l.b16 %v1919
      %v2121 = vunpack.c.l.b16 %v1920
      %v2122 = vunpack.c.l.b16 %v1921
      %v2123 = vunpack.c.l.b16 %v1922
      %v2124 = vunpack.c.l.b16 %v1923
      %v2125 = vunpack.c.l.b16 %v1924
      %v2126 = vunpack.c.l.b16 %v1925
      %v2127 = vunpack.c.l.b16 %v1926
      %v2128 = vunpack.c.l.b16 %v1927
      %v2129 = vunpack.c.l.b16 %v1928
      %v2130 = vunpack.c.l.b16 %v1929
      %v2131 = vunpack.c.l.b16 %v1930
      %v2132 = vunpack.c.l.b16 %v1931
      %v2133 = vunpack.c.l.b16 %v1932
      %v2134 = vpack.c.b16 %v2119, %v2118
      %v2135 = vpack.c.b16 %v2121, %v2120
      %v2136 = vpack.c.b16 %v2123, %v2122
      %v2137 = vpack.c.b16 %v2125, %v2124
      %v2138 = vpack.c.b16 %v2127, %v2126
      %v2139 = vpack.c.b16 %v2129, %v2128
      %v2140 = vpack.c.b16 %v2131, %v2130
      %v2141 = vpack.c.b16 %v2133, %v2132
      %2150 = vmatpush.bf16.msra.mxu0 %v2141
      %2151 = vmatpush.bf16.msra.mxu0 %v2140
      %2152 = vmatpush.bf16.msra.mxu0 %v2139
      %2153 = vmatpush.bf16.msra.mxu0 %v2138
      %2154 = vmatpush.bf16.msra.mxu0 %v2137
      %2155 = vmatpush.bf16.msra.mxu0 %v2136
      %2156 = vmatpush.bf16.msra.mxu0 %v2135
      %2157 = vmatpush.bf16.msra.mxu0 %v2134
      %2158 = vmatmul.bf16.gmra.mxu0 %v1956
      %v2159 = vpop.f32.mrf.mxu0
      %v2160 = vadd.f32 0.0, %v2159
      %v2161 = vpop.f32.mrf.mxu0
      %v2162 = vadd.f32 0.0, %v2161
      %2163 = vmatmul.bf16.gmra.mxu0 %v1973
      %v2164 = vpop.f32.mrf.mxu0
      %v2165 = vadd.f32 0.0, %v2164
      %v2166 = vpop.f32.mrf.mxu0
      %v2167 = vadd.f32 0.0, %v2166
      %2168 = vmatmul.bf16.gmra.mxu0 %v1990
      %v2169 = vpop.f32.mrf.mxu0
      %v2170 = vadd.f32 0.0, %v2169
      %v2171 = vpop.f32.mrf.mxu0
      %v2172 = vadd.f32 0.0, %v2171
      %2173 = vmatmul.bf16.gmra.mxu0 %v2007
      %v2174 = vpop.f32.mrf.mxu0
      %v2175 = vadd.f32 0.0, %v2174
      %v2176 = vpop.f32.mrf.mxu0
      %v2177 = vadd.f32 0.0, %v2176
      %2178 = vmatmul.bf16.gmra.mxu0 %v2024
      %v2179 = vpop.f32.mrf.mxu0
      %v2180 = vadd.f32 0.0, %v2179
      %v2181 = vpop.f32.mrf.mxu0
      %v2182 = vadd.f32 0.0, %v2181
      %2183 = vmatmul.bf16.gmra.mxu0 %v2041
      %v2184 = vpop.f32.mrf.mxu0
      %v2185 = vadd.f32 0.0, %v2184
      %v2186 = vpop.f32.mrf.mxu0
      %v2187 = vadd.f32 0.0, %v2186
      %2188 = vmatmul.bf16.gmra.mxu0 %v2058
      %v2189 = vpop.f32.mrf.mxu0
      %v2190 = vadd.f32 0.0, %v2189
      %v2191 = vpop.f32.mrf.mxu0
      %v2192 = vadd.f32 0.0, %v2191
      %2193 = vmatmul.bf16.gmra.mxu0 %v2075
      %v2194 = vpop.f32.mrf.mxu0
      %v2195 = vadd.f32 0.0, %v2194
      %v2196 = vpop.f32.mrf.mxu0
      %v2197 = vadd.f32 0.0, %v2196
      %2198 = vmatmul.bf16.gmra.mxu0 %v2092
      %v2199 = vpop.f32.mrf.mxu0
      %v2200 = vadd.f32 0.0, %v2199
      %v2201 = vpop.f32.mrf.mxu0
      %v2202 = vadd.f32 0.0, %v2201
      %2203 = vdwg.mxu0
      %2204 = vst [vmem:[#allocation1] ss:$9 sm:$0xff] %v1026
      %s2205 = scalar_lea.vmem [#allocation1], 1
      %2206 = vst [vmem:[%s2205] ss:$9 sm:$0xff] %v1029
      %s2207 = scalar_lea.vmem [#allocation1], 2
      %2208 = vst [vmem:[%s2207] ss:$9 sm:$0xff] %v1032
      %s2209 = scalar_lea.vmem [#allocation1], 3
      %2210 = vst [vmem:[%s2209] ss:$9 sm:$0xff] %v1035
      %s2211 = scalar_lea.vmem [#allocation1], 4
      %2212 = vst [vmem:[%s2211] ss:$9 sm:$0xff] %v1038
      %s2213 = scalar_lea.vmem [#allocation1], 5
      %2214 = vst [vmem:[%s2213] ss:$9 sm:$0xff] %v1041
      %s2215 = scalar_lea.vmem [#allocation1], 6
      %2216 = vst [vmem:[%s2215] ss:$9 sm:$0xff] %v1047
      %s2217 = scalar_lea.vmem [#allocation1], 7
      %2218 = vst [vmem:[%s2217] ss:$9 sm:$0xff] %v1050
      %v2219 = vld [vmem:[#allocation1] sm:$0xff]
      %2220 = vst [vmem:[#allocation1] ss:$9 sm:$0xff] %v1053
      %2221 = vst [vmem:[%s2205] ss:$9 sm:$0xff] %v1056
      %2222 = vst [vmem:[%s2207] ss:$9 sm:$0xff] %v1059
      %2223 = vst [vmem:[%s2209] ss:$9 sm:$0xff] %v1062
      %2224 = vst [vmem:[%s2211] ss:$9 sm:$0xff] %v1068
      %2225 = vst [vmem:[%s2213] ss:$9 sm:$0xff] %v1071
      %2226 = vst [vmem:[%s2215] ss:$9 sm:$0xff] %v1074
      %2227 = vst [vmem:[%s2217] ss:$9 sm:$0xff] %v1077
      %v2228 = vld [vmem:[#allocation1] sm:$0xff]
      %2229 = vst [vmem:[#allocation1] ss:$9 sm:$0xff] %v1080
      %2230 = vst [vmem:[%s2205] ss:$9 sm:$0xff] %v1083
      %2231 = vst [vmem:[%s2207] ss:$9 sm:$0xff] %v1089
      %2232 = vst [vmem:[%s2209] ss:$9 sm:$0xff] %v1092
      %2233 = vst [vmem:[%s2211] ss:$9 sm:$0xff] %v1095
      %2234 = vst [vmem:[%s2213] ss:$9 sm:$0xff] %v1098
      %2235 = vst [vmem:[%s2215] ss:$9 sm:$0xff] %v1101
      %2236 = vst [vmem:[%s2217] ss:$9 sm:$0xff] %v1104
      %v2237 = vld [vmem:[#allocation1] sm:$0xff]
      %2238 = vst [vmem:[#allocation1] ss:$9 sm:$0xff] %v1110
      %2239 = vst [vmem:[%s2205] ss:$9 sm:$0xff] %v1113
      %2240 = vst [vmem:[%s2207] ss:$9 sm:$0xff] %v1116
      %2241 = vst [vmem:[%s2209] ss:$9 sm:$0xff] %v1119
      %2242 = vst [vmem:[%s2211] ss:$9 sm:$0xff] %v1122
      %2243 = vst [vmem:[%s2213] ss:$9 sm:$0xff] %v1125
      %2244 = vst [vmem:[%s2215] ss:$9 sm:$0xff] %v1131
      %2245 = vst [vmem:[%s2217] ss:$9 sm:$0xff] %v1134
      %v2246 = vld [vmem:[#allocation1] sm:$0xff]
      %2247 = vst [vmem:[#allocation1] ss:$9 sm:$0xff] %v1137
      %2248 = vst [vmem:[%s2205] ss:$9 sm:$0xff] %v1140
      %2249 = vst [vmem:[%s2207] ss:$9 sm:$0xff] %v1143
      %2250 = vst [vmem:[%s2209] ss:$9 sm:$0xff] %v1146
      %2251 = vst [vmem:[%s2211] ss:$9 sm:$0xff] %v1152
      %2252 = vst [vmem:[%s2213] ss:$9 sm:$0xff] %v1155
      %2253 = vst [vmem:[%s2215] ss:$9 sm:$0xff] %v1158
      %2254 = vst [vmem:[%s2217] ss:$9 sm:$0xff] %v1161
      %v2255 = vld [vmem:[#allocation1] sm:$0xff]
      %2256 = vst [vmem:[#allocation1] ss:$9 sm:$0xff] %v1164
      %2257 = vst [vmem:[%s2205] ss:$9 sm:$0xff] %v1167
      %2258 = vst [vmem:[%s2207] ss:$9 sm:$0xff] %v1173
      %2259 = vst [vmem:[%s2209] ss:$9 sm:$0xff] %v1176
      %2260 = vst [vmem:[%s2211] ss:$9 sm:$0xff] %v1179
      %2261 = vst [vmem:[%s2213] ss:$9 sm:$0xff] %v1182
      %2262 = vst [vmem:[%s2215] ss:$9 sm:$0xff] %v1185
      %2263 = vst [vmem:[%s2217] ss:$9 sm:$0xff] %v1188
      %v2264 = vld [vmem:[#allocation1] sm:$0xff]
      %2265 = vst [vmem:[#allocation1] ss:$9 sm:$0xff] %v1194
      %2266 = vst [vmem:[%s2205] ss:$9 sm:$0xff] %v1197
      %2267 = vst [vmem:[%s2207] ss:$9 sm:$0xff] %v1200
      %2268 = vst [vmem:[%s2209] ss:$9 sm:$0xff] %v1203
      %2269 = vst [vmem:[%s2211] ss:$9 sm:$0xff] %v1206
      %2270 = vst [vmem:[%s2213] ss:$9 sm:$0xff] %v1209
      %2271 = vst [vmem:[%s2215] ss:$9 sm:$0xff] %v1215
      %2272 = vst [vmem:[%s2217] ss:$9 sm:$0xff] %v1218
      %v2273 = vld [vmem:[#allocation1] sm:$0xff]
      %2274 = vst [vmem:[#allocation1] ss:$9 sm:$0xff] %v1221
      %2275 = vst [vmem:[%s2205] ss:$9 sm:$0xff] %v1224
      %2276 = vst [vmem:[%s2207] ss:$9 sm:$0xff] %v1227
      %2277 = vst [vmem:[%s2209] ss:$9 sm:$0xff] %v1230
      %2278 = vst [vmem:[%s2211] ss:$9 sm:$0xff] %v1236
      %2279 = vst [vmem:[%s2213] ss:$9 sm:$0xff] %v1239
      %2280 = vst [vmem:[%s2215] ss:$9 sm:$0xff] %v1242
      %2281 = vst [vmem:[%s2217] ss:$9 sm:$0xff] %v1245
      %v2282 = vld [vmem:[#allocation1] sm:$0xff]
      %2283 = vst [vmem:[#allocation1] ss:$9 sm:$0xff] %v1248
      %2284 = vst [vmem:[%s2205] ss:$9 sm:$0xff] %v1251
      %2285 = vst [vmem:[%s2207] ss:$9 sm:$0xff] %v1257
      %2286 = vst [vmem:[%s2209] ss:$9 sm:$0xff] %v1260
      %2287 = vst [vmem:[%s2211] ss:$9 sm:$0xff] %v1263
      %2288 = vst [vmem:[%s2213] ss:$9 sm:$0xff] %v1266
      %2289 = vst [vmem:[%s2215] ss:$9 sm:$0xff] %v1269
      %2290 = vst [vmem:[%s2217] ss:$9 sm:$0xff] %v1272
      %v2291 = vld [vmem:[#allocation1] sm:$0xff]
      %v2317 = vunpack.c.l.b16 %v1318
      %v2318 = vunpack.c.l.b16 %v1319
      %v2319 = vunpack.c.l.b16 %v1320
      %v2320 = vunpack.c.l.b16 %v1321
      %v2321 = vunpack.c.l.b16 %v1322
      %v2322 = vunpack.c.l.b16 %v1323
      %v2323 = vunpack.c.l.b16 %v1324
      %v2324 = vunpack.c.l.b16 %v1325
      %v2325 = vunpack.c.l.b16 %v1326
      %v2326 = vunpack.c.l.b16 %v1327
      %v2327 = vunpack.c.l.b16 %v1328
      %v2328 = vunpack.c.l.b16 %v1329
      %v2329 = vunpack.c.l.b16 %v1330
      %v2330 = vunpack.c.l.b16 %v1331
      %v2331 = vunpack.c.l.b16 %v1332
      %v2332 = vunpack.c.l.b16 %v1333
      %v2333 = vpack.c.b16 %v2318, %v2317
      %v2334 = vpack.c.b16 %v2320, %v2319
      %v2335 = vpack.c.b16 %v2322, %v2321
      %v2336 = vpack.c.b16 %v2324, %v2323
      %v2337 = vpack.c.b16 %v2326, %v2325
      %v2338 = vpack.c.b16 %v2328, %v2327
      %v2339 = vpack.c.b16 %v2330, %v2329
      %v2340 = vpack.c.b16 %v2332, %v2331
      %2349 = vmatpush.bf16.msra.mxu0 %v2340
      %2350 = vmatpush.bf16.msra.mxu0 %v2339
      %2351 = vmatpush.bf16.msra.mxu0 %v2338
      %2352 = vmatpush.bf16.msra.mxu0 %v2337
      %2353 = vmatpush.bf16.msra.mxu0 %v2336
      %2354 = vmatpush.bf16.msra.mxu0 %v2335
      %2355 = vmatpush.bf16.msra.mxu0 %v2334
      %2356 = vmatpush.bf16.msra.mxu0 %v2333
      %2357 = vmatmul.bf16.gmra.mxu0 %v2219
      %v2358 = vpop.f32.mrf.mxu0
      %v2359 = vadd.f32 %v2160, %v2358
      %v2360 = vpop.f32.mrf.mxu0
      %v2361 = vadd.f32 %v2162, %v2360
      %2362 = vmatmul.bf16.gmra.mxu0 %v2228
      %v2363 = vpop.f32.mrf.mxu0
      %v2364 = vadd.f32 %v2165, %v2363
      %v2365 = vpop.f32.mrf.mxu0
      %v2366 = vadd.f32 %v2167, %v2365
      %2367 = vmatmul.bf16.gmra.mxu0 %v2237
      %v2368 = vpop.f32.mrf.mxu0
      %v2369 = vadd.f32 %v2170, %v2368
      %v2370 = vpop.f32.mrf.mxu0
      %v2371 = vadd.f32 %v2172, %v2370
      %2372 = vmatmul.bf16.gmra.mxu0 %v2246
      %v2373 = vpop.f32.mrf.mxu0
      %v2374 = vadd.f32 %v2175, %v2373
      %v2375 = vpop.f32.mrf.mxu0
      %v2376 = vadd.f32 %v2177, %v2375
      %2377 = vmatmul.bf16.gmra.mxu0 %v2255
      %v2378 = vpop.f32.mrf.mxu0
      %v2379 = vadd.f32 %v2180, %v2378
      %v2380 = vpop.f32.mrf.mxu0
      %v2381 = vadd.f32 %v2182, %v2380
      %2382 = vmatmul.bf16.gmra.mxu0 %v2264
      %v2383 = vpop.f32.mrf.mxu0
      %v2384 = vadd.f32 %v2185, %v2383
      %v2385 = vpop.f32.mrf.mxu0
      %v2386 = vadd.f32 %v2187, %v2385
      %2387 = vmatmul.bf16.gmra.mxu0 %v2273
      %v2388 = vpop.f32.mrf.mxu0
      %v2389 = vadd.f32 %v2190, %v2388
      %v2390 = vpop.f32.mrf.mxu0
      %v2391 = vadd.f32 %v2192, %v2390
      %2392 = vmatmul.bf16.gmra.mxu0 %v2282
      %v2393 = vpop.f32.mrf.mxu0
      %v2394 = vadd.f32 %v2195, %v2393
      %v2395 = vpop.f32.mrf.mxu0
      %v2396 = vadd.f32 %v2197, %v2395
      %2397 = vmatmul.bf16.gmra.mxu0 %v2291
      %v2398 = vpop.f32.mrf.mxu0
      %v2399 = vadd.f32 %v2200, %v2398
      %v2400 = vpop.f32.mrf.mxu0
      %v2401 = vadd.f32 %v2202, %v2400
      %2402 = vdwg.mxu0
      %s2403 = scalar_lea.vmem %s3, 128
      %v2404 = vld [vmem:[%s2403] sm:$0xf]
      %v2405 = vld [vmem:[%s2403 + $0x4] sm:$0xf]
      %v2406 = vld [vmem:[%s2403 + $0x8] sm:$0xf]
      %v2407 = vld [vmem:[%s2403 + $0xc] sm:$0xf]
      %v2408 = vld [vmem:[%s2403 + $0x10] sm:$0xf]
      %v2409 = vld [vmem:[%s2403 + $0x14] sm:$0xf]
      %v2410 = vld [vmem:[%s2403 + $0x18] sm:$0xf]
      %v2411 = vld [vmem:[%s2403 + $0x1c] sm:$0xf]
      %v2412 = vld [vmem:[%s2403 + $0x20] sm:$0xf]
      %v2413 = vld [vmem:[%s2403 + $0x24] sm:$0xf]
      %v2414 = vld [vmem:[%s2403 + $0x28] sm:$0xf]
      %v2415 = vld [vmem:[%s2403 + $0x2c] sm:$0xf]
      %v2416 = vld [vmem:[%s2403 + $0x30] sm:$0xf]
      %v2417 = vld [vmem:[%s2403 + $0x34] sm:$0xf]
      %v2418 = vld [vmem:[%s2403 + $0x38] sm:$0xf]
      %v2419 = vld [vmem:[%s2403 + $0x3c] sm:$0xf]
      %2420 = vst [vmem:[#allocation1] ss:$9 sm:$0xff] %v1029
      %s2421 = scalar_lea.vmem [#allocation1], 1
      %2422 = vst [vmem:[%s2421] ss:$9 sm:$0xff] %v1032
      %s2423 = scalar_lea.vmem [#allocation1], 2
      %2424 = vst [vmem:[%s2423] ss:$9 sm:$0xff] %v1035
      %s2425 = scalar_lea.vmem [#allocation1], 3
      %2426 = vst [vmem:[%s2425] ss:$9 sm:$0xff] %v1038
      %s2427 = scalar_lea.vmem [#allocation1], 4
      %2428 = vst [vmem:[%s2427] ss:$9 sm:$0xff] %v1041
      %s2429 = scalar_lea.vmem [#allocation1], 5
      %2430 = vst [vmem:[%s2429] ss:$9 sm:$0xff] %v1044
      %s2431 = scalar_lea.vmem [#allocation1], 6
      %2432 = vst [vmem:[%s2431] ss:$9 sm:$0xff] %v1050
      %s2433 = scalar_lea.vmem [#allocation1], 7
      %2434 = vst [vmem:[%s2433] ss:$9 sm:$0xff] %v1053
      %v2435 = vld [vmem:[#allocation1] sm:$0xff]
      %2436 = vst [vmem:[#allocation1] ss:$9 sm:$0xff] %v1056
      %2437 = vst [vmem:[%s2421] ss:$9 sm:$0xff] %v1059
      %2438 = vst [vmem:[%s2423] ss:$9 sm:$0xff] %v1062
      %2439 = vst [vmem:[%s2425] ss:$9 sm:$0xff] %v1065
      %2440 = vst [vmem:[%s2427] ss:$9 sm:$0xff] %v1071
      %2441 = vst [vmem:[%s2429] ss:$9 sm:$0xff] %v1074
      %2442 = vst [vmem:[%s2431] ss:$9 sm:$0xff] %v1077
      %2443 = vst [vmem:[%s2433] ss:$9 sm:$0xff] %v1080
      %v2444 = vld [vmem:[#allocation1] sm:$0xff]
      %2445 = vst [vmem:[#allocation1] ss:$9 sm:$0xff] %v1083
      %2446 = vst [vmem:[%s2421] ss:$9 sm:$0xff] %v1086
      %2447 = vst [vmem:[%s2423] ss:$9 sm:$0xff] %v1092
      %2448 = vst [vmem:[%s2425] ss:$9 sm:$0xff] %v1095
      %2449 = vst [vmem:[%s2427] ss:$9 sm:$0xff] %v1098
      %2450 = vst [vmem:[%s2429] ss:$9 sm:$0xff] %v1101
      %2451 = vst [vmem:[%s2431] ss:$9 sm:$0xff] %v1104
      %2452 = vst [vmem:[%s2433] ss:$9 sm:$0xff] %v1107
      %v2453 = vld [vmem:[#allocation1] sm:$0xff]
      %2454 = vst [vmem:[#allocation1] ss:$9 sm:$0xff] %v1113
      %2455 = vst [vmem:[%s2421] ss:$9 sm:$0xff] %v1116
      %2456 = vst [vmem:[%s2423] ss:$9 sm:$0xff] %v1119
      %2457 = vst [vmem:[%s2425] ss:$9 sm:$0xff] %v1122
      %2458 = vst [vmem:[%s2427] ss:$9 sm:$0xff] %v1125
      %2459 = vst [vmem:[%s2429] ss:$9 sm:$0xff] %v1128
      %2460 = vst [vmem:[%s2431] ss:$9 sm:$0xff] %v1134
      %2461 = vst [vmem:[%s2433] ss:$9 sm:$0xff] %v1137
      %v2462 = vld [vmem:[#allocation1] sm:$0xff]
      %2463 = vst [vmem:[#allocation1] ss:$9 sm:$0xff] %v1140
      %2464 = vst [vmem:[%s2421] ss:$9 sm:$0xff] %v1143
      %2465 = vst [vmem:[%s2423] ss:$9 sm:$0xff] %v1146
      %2466 = vst [vmem:[%s2425] ss:$9 sm:$0xff] %v1149
      %2467 = vst [vmem:[%s2427] ss:$9 sm:$0xff] %v1155
      %2468 = vst [vmem:[%s2429] ss:$9 sm:$0xff] %v1158
      %2469 = vst [vmem:[%s2431] ss:$9 sm:$0xff] %v1161
      %2470 = vst [vmem:[%s2433] ss:$9 sm:$0xff] %v1164
      %v2471 = vld [vmem:[#allocation1] sm:$0xff]
      %2472 = vst [vmem:[#allocation1] ss:$9 sm:$0xff] %v1167
      %2473 = vst [vmem:[%s2421] ss:$9 sm:$0xff] %v1170
      %2474 = vst [vmem:[%s2423] ss:$9 sm:$0xff] %v1176
      %2475 = vst [vmem:[%s2425] ss:$9 sm:$0xff] %v1179
      %2476 = vst [vmem:[%s2427] ss:$9 sm:$0xff] %v1182
      %2477 = vst [vmem:[%s2429] ss:$9 sm:$0xff] %v1185
      %2478 = vst [vmem:[%s2431] ss:$9 sm:$0xff] %v1188
      %2479 = vst [vmem:[%s2433] ss:$9 sm:$0xff] %v1191
      %v2480 = vld [vmem:[#allocation1] sm:$0xff]
      %2481 = vst [vmem:[#allocation1] ss:$9 sm:$0xff] %v1197
      %2482 = vst [vmem:[%s2421] ss:$9 sm:$0xff] %v1200
      %2483 = vst [vmem:[%s2423] ss:$9 sm:$0xff] %v1203
      %2484 = vst [vmem:[%s2425] ss:$9 sm:$0xff] %v1206
      %2485 = vst [vmem:[%s2427] ss:$9 sm:$0xff] %v1209
      %2486 = vst [vmem:[%s2429] ss:$9 sm:$0xff] %v1212
      %2487 = vst [vmem:[%s2431] ss:$9 sm:$0xff] %v1218
      %2488 = vst [vmem:[%s2433] ss:$9 sm:$0xff] %v1221
      %v2489 = vld [vmem:[#allocation1] sm:$0xff]
      %2490 = vst [vmem:[#allocation1] ss:$9 sm:$0xff] %v1224
      %2491 = vst [vmem:[%s2421] ss:$9 sm:$0xff] %v1227
      %2492 = vst [vmem:[%s2423] ss:$9 sm:$0xff] %v1230
      %2493 = vst [vmem:[%s2425] ss:$9 sm:$0xff] %v1233
      %2494 = vst [vmem:[%s2427] ss:$9 sm:$0xff] %v1239
      %2495 = vst [vmem:[%s2429] ss:$9 sm:$0xff] %v1242
      %2496 = vst [vmem:[%s2431] ss:$9 sm:$0xff] %v1245
      %2497 = vst [vmem:[%s2433] ss:$9 sm:$0xff] %v1248
      %v2498 = vld [vmem:[#allocation1] sm:$0xff]
      %2499 = vst [vmem:[#allocation1] ss:$9 sm:$0xff] %v1251
      %2500 = vst [vmem:[%s2421] ss:$9 sm:$0xff] %v1254
      %2501 = vst [vmem:[%s2423] ss:$9 sm:$0xff] %v1260
      %2502 = vst [vmem:[%s2425] ss:$9 sm:$0xff] %v1263
      %2503 = vst [vmem:[%s2427] ss:$9 sm:$0xff] %v1266
      %2504 = vst [vmem:[%s2429] ss:$9 sm:$0xff] %v1269
      %2505 = vst [vmem:[%s2431] ss:$9 sm:$0xff] %v1272
      %2506 = vst [vmem:[%s2433] ss:$9 sm:$0xff] %v1275
      %v2507 = vld [vmem:[#allocation1] sm:$0xff]
      %v2533 = vunpack.c.l.b16 %v2404
      %v2534 = vunpack.c.l.b16 %v2405
      %v2535 = vunpack.c.l.b16 %v2406
      %v2536 = vunpack.c.l.b16 %v2407
      %v2537 = vunpack.c.l.b16 %v2408
      %v2538 = vunpack.c.l.b16 %v2409
      %v2539 = vunpack.c.l.b16 %v2410
      %v2540 = vunpack.c.l.b16 %v2411
      %v2541 = vunpack.c.l.b16 %v2412
      %v2542 = vunpack.c.l.b16 %v2413
      %v2543 = vunpack.c.l.b16 %v2414
      %v2544 = vunpack.c.l.b16 %v2415
      %v2545 = vunpack.c.l.b16 %v2416
      %v2546 = vunpack.c.l.b16 %v2417
      %v2547 = vunpack.c.l.b16 %v2418
      %v2548 = vunpack.c.l.b16 %v2419
      %v2549 = vpack.c.b16 %v2534, %v2533
      %v2550 = vpack.c.b16 %v2536, %v2535
      %v2551 = vpack.c.b16 %v2538, %v2537
      %v2552 = vpack.c.b16 %v2540, %v2539
      %v2553 = vpack.c.b16 %v2542, %v2541
      %v2554 = vpack.c.b16 %v2544, %v2543
      %v2555 = vpack.c.b16 %v2546, %v2545
      %v2556 = vpack.c.b16 %v2548, %v2547
      %2565 = vmatpush.bf16.msra.mxu0 %v2556
      %2566 = vmatpush.bf16.msra.mxu0 %v2555
      %2567 = vmatpush.bf16.msra.mxu0 %v2554
      %2568 = vmatpush.bf16.msra.mxu0 %v2553
      %2569 = vmatpush.bf16.msra.mxu0 %v2552
      %2570 = vmatpush.bf16.msra.mxu0 %v2551
      %2571 = vmatpush.bf16.msra.mxu0 %v2550
      %2572 = vmatpush.bf16.msra.mxu0 %v2549
      %2573 = vmatmul.bf16.gmra.mxu0 %v2435
      %v2574 = vpop.f32.mrf.mxu0
      %v2575 = vadd.f32 0.0, %v2574
      %v2576 = vpop.f32.mrf.mxu0
      %v2577 = vadd.f32 0.0, %v2576
      %2578 = vmatmul.bf16.gmra.mxu0 %v2444
      %v2579 = vpop.f32.mrf.mxu0
      %v2580 = vadd.f32 0.0, %v2579
      %v2581 = vpop.f32.mrf.mxu0
      %v2582 = vadd.f32 0.0, %v2581
      %2583 = vmatmul.bf16.gmra.mxu0 %v2453
      %v2584 = vpop.f32.mrf.mxu0
      %v2585 = vadd.f32 0.0, %v2584
      %v2586 = vpop.f32.mrf.mxu0
      %v2587 = vadd.f32 0.0, %v2586
      %2588 = vmatmul.bf16.gmra.mxu0 %v2462
      %v2589 = vpop.f32.mrf.mxu0
      %v2590 = vadd.f32 0.0, %v2589
      %v2591 = vpop.f32.mrf.mxu0
      %v2592 = vadd.f32 0.0, %v2591
      %2593 = vmatmul.bf16.gmra.mxu0 %v2471
      %v2594 = vpop.f32.mrf.mxu0
      %v2595 = vadd.f32 0.0, %v2594
      %v2596 = vpop.f32.mrf.mxu0
      %v2597 = vadd.f32 0.0, %v2596
      %2598 = vmatmul.bf16.gmra.mxu0 %v2480
      %v2599 = vpop.f32.mrf.mxu0
      %v2600 = vadd.f32 0.0, %v2599
      %v2601 = vpop.f32.mrf.mxu0
      %v2602 = vadd.f32 0.0, %v2601
      %2603 = vmatmul.bf16.gmra.mxu0 %v2489
      %v2604 = vpop.f32.mrf.mxu0
      %v2605 = vadd.f32 0.0, %v2604
      %v2606 = vpop.f32.mrf.mxu0
      %v2607 = vadd.f32 0.0, %v2606
      %2608 = vmatmul.bf16.gmra.mxu0 %v2498
      %v2609 = vpop.f32.mrf.mxu0
      %v2610 = vadd.f32 0.0, %v2609
      %v2611 = vpop.f32.mrf.mxu0
      %v2612 = vadd.f32 0.0, %v2611
      %2613 = vmatmul.bf16.gmra.mxu0 %v2507
      %v2614 = vpop.f32.mrf.mxu0
      %v2615 = vadd.f32 0.0, %v2614
      %v2616 = vpop.f32.mrf.mxu0
      %v2617 = vadd.f32 0.0, %v2616
      %2618 = vdwg.mxu0
      %v2619 = vadd.f32 %v2359, %v2575
      %v2620 = vadd.f32 %v2361, %v2577
      %v2621 = vadd.f32 %v2364, %v2580
      %v2622 = vadd.f32 %v2366, %v2582
      %v2623 = vadd.f32 %v2369, %v2585
      %v2624 = vadd.f32 %v2371, %v2587
      %v2625 = vadd.f32 %v2374, %v2590
      %v2626 = vadd.f32 %v2376, %v2592
      %v2627 = vadd.f32 %v2379, %v2595
      %v2628 = vadd.f32 %v2381, %v2597
      %v2629 = vadd.f32 %v2384, %v2600
      %v2630 = vadd.f32 %v2386, %v2602
      %v2631 = vadd.f32 %v2389, %v2605
      %v2632 = vadd.f32 %v2391, %v2607
      %v2633 = vadd.f32 %v2394, %v2610
      %v2634 = vadd.f32 %v2396, %v2612
      %v2635 = vadd.f32 %v2399, %v2615
      %v2636 = vadd.f32 %v2401, %v2617
      %s2637 = scalar_lea.vmem %s3, 192
      %v2638 = vld [vmem:[%s2637] sm:$0xf]
      %v2639 = vld [vmem:[%s2637 + $0x4] sm:$0xf]
      %v2640 = vld [vmem:[%s2637 + $0x8] sm:$0xf]
      %v2641 = vld [vmem:[%s2637 + $0xc] sm:$0xf]
      %v2642 = vld [vmem:[%s2637 + $0x10] sm:$0xf]
      %v2643 = vld [vmem:[%s2637 + $0x14] sm:$0xf]
      %v2644 = vld [vmem:[%s2637 + $0x18] sm:$0xf]
      %v2645 = vld [vmem:[%s2637 + $0x1c] sm:$0xf]
      %v2646 = vld [vmem:[%s2637 + $0x20] sm:$0xf]
      %v2647 = vld [vmem:[%s2637 + $0x24] sm:$0xf]
      %v2648 = vld [vmem:[%s2637 + $0x28] sm:$0xf]
      %v2649 = vld [vmem:[%s2637 + $0x2c] sm:$0xf]
      %v2650 = vld [vmem:[%s2637 + $0x30] sm:$0xf]
      %v2651 = vld [vmem:[%s2637 + $0x34] sm:$0xf]
      %v2652 = vld [vmem:[%s2637 + $0x38] sm:$0xf]
      %v2653 = vld [vmem:[%s2637 + $0x3c] sm:$0xf]
      %2654 = vst [vmem:[#allocation1] ss:$9 sm:$0xff] %v1047
      %s2655 = scalar_lea.vmem [#allocation1], 1
      %2656 = vst [vmem:[%s2655] ss:$9 sm:$0xff] %v1050
      %s2657 = scalar_lea.vmem [#allocation1], 2
      %2658 = vst [vmem:[%s2657] ss:$9 sm:$0xff] %v1053
      %s2659 = scalar_lea.vmem [#allocation1], 3
      %2660 = vst [vmem:[%s2659] ss:$9 sm:$0xff] %v1056
      %s2661 = scalar_lea.vmem [#allocation1], 4
      %2662 = vst [vmem:[%s2661] ss:$9 sm:$0xff] %v1059
      %s2663 = scalar_lea.vmem [#allocation1], 5
      %2664 = vst [vmem:[%s2663] ss:$9 sm:$0xff] %v1062
      %s2665 = scalar_lea.vmem [#allocation1], 6
      %2666 = vst [vmem:[%s2665] ss:$9 sm:$0xff] %v1068
      %s2667 = scalar_lea.vmem [#allocation1], 7
      %2668 = vst [vmem:[%s2667] ss:$9 sm:$0xff] %v1071
      %v2669 = vld [vmem:[#allocation1] sm:$0xff]
      %2670 = vst [vmem:[#allocation1] ss:$9 sm:$0xff] %v1074
      %2671 = vst [vmem:[%s2655] ss:$9 sm:$0xff] %v1077
      %2672 = vst [vmem:[%s2657] ss:$9 sm:$0xff] %v1080
      %2673 = vst [vmem:[%s2659] ss:$9 sm:$0xff] %v1083
      %2674 = vst [vmem:[%s2661] ss:$9 sm:$0xff] %v1089
      %2675 = vst [vmem:[%s2663] ss:$9 sm:$0xff] %v1092
      %2676 = vst [vmem:[%s2665] ss:$9 sm:$0xff] %v1095
      %2677 = vst [vmem:[%s2667] ss:$9 sm:$0xff] %v1098
      %v2678 = vld [vmem:[#allocation1] sm:$0xff]
      %2679 = vst [vmem:[#allocation1] ss:$9 sm:$0xff] %v1101
      %2680 = vst [vmem:[%s2655] ss:$9 sm:$0xff] %v1104
      %2681 = vst [vmem:[%s2657] ss:$9 sm:$0xff] %v1110
      %2682 = vst [vmem:[%s2659] ss:$9 sm:$0xff] %v1113
      %2683 = vst [vmem:[%s2661] ss:$9 sm:$0xff] %v1116
      %2684 = vst [vmem:[%s2663] ss:$9 sm:$0xff] %v1119
      %2685 = vst [vmem:[%s2665] ss:$9 sm:$0xff] %v1122
      %2686 = vst [vmem:[%s2667] ss:$9 sm:$0xff] %v1125
      %v2687 = vld [vmem:[#allocation1] sm:$0xff]
      %2688 = vst [vmem:[#allocation1] ss:$9 sm:$0xff] %v1131
      %2689 = vst [vmem:[%s2655] ss:$9 sm:$0xff] %v1134
      %2690 = vst [vmem:[%s2657] ss:$9 sm:$0xff] %v1137
      %2691 = vst [vmem:[%s2659] ss:$9 sm:$0xff] %v1140
      %2692 = vst [vmem:[%s2661] ss:$9 sm:$0xff] %v1143
      %2693 = vst [vmem:[%s2663] ss:$9 sm:$0xff] %v1146
      %2694 = vst [vmem:[%s2665] ss:$9 sm:$0xff] %v1152
      %2695 = vst [vmem:[%s2667] ss:$9 sm:$0xff] %v1155
      %v2696 = vld [vmem:[#allocation1] sm:$0xff]
      %2697 = vst [vmem:[#allocation1] ss:$9 sm:$0xff] %v1158
      %2698 = vst [vmem:[%s2655] ss:$9 sm:$0xff] %v1161
      %2699 = vst [vmem:[%s2657] ss:$9 sm:$0xff] %v1164
      %2700 = vst [vmem:[%s2659] ss:$9 sm:$0xff] %v1167
      %2701 = vst [vmem:[%s2661] ss:$9 sm:$0xff] %v1173
      %2702 = vst [vmem:[%s2663] ss:$9 sm:$0xff] %v1176
      %2703 = vst [vmem:[%s2665] ss:$9 sm:$0xff] %v1179
      %2704 = vst [vmem:[%s2667] ss:$9 sm:$0xff] %v1182
      %v2705 = vld [vmem:[#allocation1] sm:$0xff]
      %2706 = vst [vmem:[#allocation1] ss:$9 sm:$0xff] %v1185
      %2707 = vst [vmem:[%s2655] ss:$9 sm:$0xff] %v1188
      %2708 = vst [vmem:[%s2657] ss:$9 sm:$0xff] %v1194
      %2709 = vst [vmem:[%s2659] ss:$9 sm:$0xff] %v1197
      %2710 = vst [vmem:[%s2661] ss:$9 sm:$0xff] %v1200
      %2711 = vst [vmem:[%s2663] ss:$9 sm:$0xff] %v1203
      %2712 = vst [vmem:[%s2665] ss:$9 sm:$0xff] %v1206
      %2713 = vst [vmem:[%s2667] ss:$9 sm:$0xff] %v1209
      %v2714 = vld [vmem:[#allocation1] sm:$0xff]
      %2715 = vst [vmem:[#allocation1] ss:$9 sm:$0xff] %v1215
      %2716 = vst [vmem:[%s2655] ss:$9 sm:$0xff] %v1218
      %2717 = vst [vmem:[%s2657] ss:$9 sm:$0xff] %v1221
      %2718 = vst [vmem:[%s2659] ss:$9 sm:$0xff] %v1224
      %2719 = vst [vmem:[%s2661] ss:$9 sm:$0xff] %v1227
      %2720 = vst [vmem:[%s2663] ss:$9 sm:$0xff] %v1230
      %2721 = vst [vmem:[%s2665] ss:$9 sm:$0xff] %v1236
      %2722 = vst [vmem:[%s2667] ss:$9 sm:$0xff] %v1239
      %v2723 = vld [vmem:[#allocation1] sm:$0xff]
      %2724 = vst [vmem:[#allocation1] ss:$9 sm:$0xff] %v1242
      %2725 = vst [vmem:[%s2655] ss:$9 sm:$0xff] %v1245
      %2726 = vst [vmem:[%s2657] ss:$9 sm:$0xff] %v1248
      %2727 = vst [vmem:[%s2659] ss:$9 sm:$0xff] %v1251
      %2728 = vst [vmem:[%s2661] ss:$9 sm:$0xff] %v1257
      %2729 = vst [vmem:[%s2663] ss:$9 sm:$0xff] %v1260
      %2730 = vst [vmem:[%s2665] ss:$9 sm:$0xff] %v1263
      %2731 = vst [vmem:[%s2667] ss:$9 sm:$0xff] %v1266
      %v2732 = vld [vmem:[#allocation1] sm:$0xff]
      %2733 = vst [vmem:[#allocation1] ss:$9 sm:$0xff] %v1269
      %2734 = vst [vmem:[%s2655] ss:$9 sm:$0xff] %v1272
      %2735 = vst [vmem:[%s2657] ss:$9 sm:$0xff] %v1278
      %2737 = vst [vmem:[%s2659] ss:$9 sm:$0xff] %v1281
      %2739 = vst [vmem:[%s2661] ss:$9 sm:$0xff] %v1284
      %2741 = vst [vmem:[%s2663] ss:$9 sm:$0xff] %v1287
      %2742 = vst [vmem:[%s2665] ss:$9 sm:$0xff] %v1290
      %2744 = vst [vmem:[%s2667] ss:$9 sm:$0xff] %v1293
      %v2745 = vld [vmem:[#allocation1] sm:$0xff]
      %v2771 = vunpack.c.l.b16 %v2638
      %v2772 = vunpack.c.l.b16 %v2639
      %v2773 = vunpack.c.l.b16 %v2640
      %v2774 = vunpack.c.l.b16 %v2641
      %v2775 = vunpack.c.l.b16 %v2642
      %v2776 = vunpack.c.l.b16 %v2643
      %v2777 = vunpack.c.l.b16 %v2644
      %v2778 = vunpack.c.l.b16 %v2645
      %v2779 = vunpack.c.l.b16 %v2646
      %v2780 = vunpack.c.l.b16 %v2647
      %v2781 = vunpack.c.l.b16 %v2648
      %v2782 = vunpack.c.l.b16 %v2649
      %v2783 = vunpack.c.l.b16 %v2650
      %v2784 = vunpack.c.l.b16 %v2651
      %v2785 = vunpack.c.l.b16 %v2652
      %v2786 = vunpack.c.l.b16 %v2653
      %v2787 = vpack.c.b16 %v2772, %v2771
      %v2788 = vpack.c.b16 %v2774, %v2773
      %v2789 = vpack.c.b16 %v2776, %v2775
      %v2790 = vpack.c.b16 %v2778, %v2777
      %v2791 = vpack.c.b16 %v2780, %v2779
      %v2792 = vpack.c.b16 %v2782, %v2781
      %v2793 = vpack.c.b16 %v2784, %v2783
      %v2794 = vpack.c.b16 %v2786, %v2785
      %2803 = vmatpush.bf16.msra.mxu0 %v2794
      %2804 = vmatpush.bf16.msra.mxu0 %v2793
      %2805 = vmatpush.bf16.msra.mxu0 %v2792
      %2806 = vmatpush.bf16.msra.mxu0 %v2791
      %2807 = vmatpush.bf16.msra.mxu0 %v2790
      %2808 = vmatpush.bf16.msra.mxu0 %v2789
      %2809 = vmatpush.bf16.msra.mxu0 %v2788
      %2810 = vmatpush.bf16.msra.mxu0 %v2787
      %2811 = vmatmul.bf16.gmra.mxu0 %v2669
      %v2812 = vpop.f32.mrf.mxu0
      %v2813 = vadd.f32 0.0, %v2812
      %v2814 = vpop.f32.mrf.mxu0
      %v2815 = vadd.f32 0.0, %v2814
      %2816 = vmatmul.bf16.gmra.mxu0 %v2678
      %v2817 = vpop.f32.mrf.mxu0
      %v2818 = vadd.f32 0.0, %v2817
      %v2819 = vpop.f32.mrf.mxu0
      %v2820 = vadd.f32 0.0, %v2819
      %2821 = vmatmul.bf16.gmra.mxu0 %v2687
      %v2822 = vpop.f32.mrf.mxu0
      %v2823 = vadd.f32 0.0, %v2822
      %v2824 = vpop.f32.mrf.mxu0
      %v2825 = vadd.f32 0.0, %v2824
      %2826 = vmatmul.bf16.gmra.mxu0 %v2696
      %v2827 = vpop.f32.mrf.mxu0
      %v2828 = vadd.f32 0.0, %v2827
      %v2829 = vpop.f32.mrf.mxu0
      %v2830 = vadd.f32 0.0, %v2829
      %2831 = vmatmul.bf16.gmra.mxu0 %v2705
      %v2832 = vpop.f32.mrf.mxu0
      %v2833 = vadd.f32 0.0, %v2832
      %v2834 = vpop.f32.mrf.mxu0
      %v2835 = vadd.f32 0.0, %v2834
      %2836 = vmatmul.bf16.gmra.mxu0 %v2714
      %v2837 = vpop.f32.mrf.mxu0
      %v2838 = vadd.f32 0.0, %v2837
      %v2839 = vpop.f32.mrf.mxu0
      %v2840 = vadd.f32 0.0, %v2839
      %2841 = vmatmul.bf16.gmra.mxu0 %v2723
      %v2842 = vpop.f32.mrf.mxu0
      %v2843 = vadd.f32 0.0, %v2842
      %v2844 = vpop.f32.mrf.mxu0
      %v2845 = vadd.f32 0.0, %v2844
      %2846 = vmatmul.bf16.gmra.mxu0 %v2732
      %v2847 = vpop.f32.mrf.mxu0
      %v2848 = vadd.f32 0.0, %v2847
      %v2849 = vpop.f32.mrf.mxu0
      %v2850 = vadd.f32 0.0, %v2849
      %2851 = vmatmul.bf16.gmra.mxu0 %v2745
      %v2852 = vpop.f32.mrf.mxu0
      %v2853 = vadd.f32 0.0, %v2852
      %v2854 = vpop.f32.mrf.mxu0
      %v2855 = vadd.f32 0.0, %v2854
      %2856 = vdwg.mxu0
      %v2857 = vadd.f32 %v2619, %v2813
      %v2858 = vadd.f32 %v2620, %v2815
      %v2859 = vadd.f32 %v2621, %v2818
      %v2860 = vadd.f32 %v2622, %v2820
      %v2861 = vadd.f32 %v2623, %v2823
      %v2862 = vadd.f32 %v2624, %v2825
      %v2863 = vadd.f32 %v2625, %v2828
      %v2864 = vadd.f32 %v2626, %v2830
      %v2865 = vadd.f32 %v2627, %v2833
      %v2866 = vadd.f32 %v2628, %v2835
      %v2867 = vadd.f32 %v2629, %v2838
      %v2868 = vadd.f32 %v2630, %v2840
      %v2869 = vadd.f32 %v2631, %v2843
      %v2870 = vadd.f32 %v2632, %v2845
      %v2871 = vadd.f32 %v2633, %v2848
      %v2872 = vadd.f32 %v2634, %v2850
      %v2873 = vadd.f32 %v2635, %v2853
      %v2874 = vadd.f32 %v2636, %v2855
      %v2875 = vshrl.u32 %v1278, 16
      %v2877 = vrot.slane %v2875, 7
      %v2878 = vrot.slane %v2877, 1
      %v2879 = vshll.u32 %v1281, 16
      %v2881 = vsel %vm1348, %v2878, %v2879
      %v2882 = vshrl.u32 %v1281, 16
      %v2884 = vrot.slane %v2882, 7
      %v2885 = vrot.slane %v2884, 1
      %v2886 = vshll.u32 %v1284, 16
      %v2888 = vsel %vm1348, %v2885, %v2886
      %v2889 = vshrl.u32 %v1284, 16
      %v2891 = vrot.slane %v2889, 7
      %v2892 = vrot.slane %v2891, 1
      %v2893 = vshll.u32 %v1287, 16
      %v2895 = vsel %vm1348, %v2892, %v2893
      %v2896 = vshrl.u32 %v1287, 16
      %v2898 = vrot.slane %v2896, 7
      %v2899 = vrot.slane %v2898, 1
      %v2900 = vshll.u32 %v1290, 16
      %v2902 = vsel %vm1348, %v2899, %v2900
      %v2903 = vshrl.u32 %v1290, 16
      %v2905 = vrot.slane %v2903, 7
      %v2906 = vrot.slane %v2905, 1
      %v2907 = vshll.u32 %v1293, 16
      %v2909 = vsel %vm1348, %v2906, %v2907
      %v2910 = vshrl.u32 %v1293, 16
      %v2912 = vrot.slane %v2910, 7
      %v2913 = vrot.slane %v2912, 1
      %v2915 = vshll.u32 %v1296, 16
      %v2917 = vsel %vm1348, %v2913, %v2915
      %s2918 = scalar_lea.vmem %s3, 256
      %v2919 = vld [vmem:[%s2918] sm:$0xf]
      %v2920 = vld [vmem:[%s2918 + $0x4] sm:$0xf]
      %v2921 = vld [vmem:[%s2918 + $0x8] sm:$0xf]
      %v2922 = vld [vmem:[%s2918 + $0xc] sm:$0xf]
      %v2923 = vld [vmem:[%s2918 + $0x10] sm:$0xf]
      %v2924 = vld [vmem:[%s2918 + $0x14] sm:$0xf]
      %v2925 = vld [vmem:[%s2918 + $0x18] sm:$0xf]
      %v2926 = vld [vmem:[%s2918 + $0x1c] sm:$0xf]
      %v2927 = vld [vmem:[%s2918 + $0x20] sm:$0xf]
      %v2928 = vld [vmem:[%s2918 + $0x24] sm:$0xf]
      %v2929 = vld [vmem:[%s2918 + $0x28] sm:$0xf]
      %v2930 = vld [vmem:[%s2918 + $0x2c] sm:$0xf]
      %v2931 = vld [vmem:[%s2918 + $0x30] sm:$0xf]
      %v2932 = vld [vmem:[%s2918 + $0x34] sm:$0xf]
      %v2933 = vld [vmem:[%s2918 + $0x38] sm:$0xf]
      %v2934 = vld [vmem:[%s2918 + $0x3c] sm:$0xf]
      %2935 = vst [vmem:[#allocation1] ss:$9 sm:$0xff] %v1403
      %s2936 = scalar_lea.vmem [#allocation1], 1
      %2937 = vst [vmem:[%s2936] ss:$9 sm:$0xff] %v1411
      %s2938 = scalar_lea.vmem [#allocation1], 2
      %2939 = vst [vmem:[%s2938] ss:$9 sm:$0xff] %v1419
      %s2940 = scalar_lea.vmem [#allocation1], 3
      %2941 = vst [vmem:[%s2940] ss:$9 sm:$0xff] %v1427
      %s2942 = scalar_lea.vmem [#allocation1], 4
      %2943 = vst [vmem:[%s2942] ss:$9 sm:$0xff] %v1434
      %s2944 = scalar_lea.vmem [#allocation1], 5
      %2945 = vst [vmem:[%s2944] ss:$9 sm:$0xff] %v1442
      %s2946 = scalar_lea.vmem [#allocation1], 6
      %2947 = vst [vmem:[%s2946] ss:$9 sm:$0xff] %v1451
      %s2948 = scalar_lea.vmem [#allocation1], 7
      %2949 = vst [vmem:[%s2948] ss:$9 sm:$0xff] %v1458
      %v2950 = vld [vmem:[#allocation1] sm:$0xff]
      %2951 = vst [vmem:[#allocation1] ss:$9 sm:$0xff] %v1466
      %2952 = vst [vmem:[%s2936] ss:$9 sm:$0xff] %v1474
      %2953 = vst [vmem:[%s2938] ss:$9 sm:$0xff] %v1482
      %2954 = vst [vmem:[%s2940] ss:$9 sm:$0xff] %v1489
      %2955 = vst [vmem:[%s2942] ss:$9 sm:$0xff] %v1498
      %2956 = vst [vmem:[%s2944] ss:$9 sm:$0xff] %v1506
      %2957 = vst [vmem:[%s2946] ss:$9 sm:$0xff] %v1513
      %2958 = vst [vmem:[%s2948] ss:$9 sm:$0xff] %v1521
      %v2959 = vld [vmem:[#allocation1] sm:$0xff]
      %2960 = vst [vmem:[#allocation1] ss:$9 sm:$0xff] %v1529
      %2961 = vst [vmem:[%s2936] ss:$9 sm:$0xff] %v1537
      %2962 = vst [vmem:[%s2938] ss:$9 sm:$0xff] %v1545
      %2963 = vst [vmem:[%s2940] ss:$9 sm:$0xff] %v1553
      %2964 = vst [vmem:[%s2942] ss:$9 sm:$0xff] %v1561
      %2965 = vst [vmem:[%s2944] ss:$9 sm:$0xff] %v1568
      %2966 = vst [vmem:[%s2946] ss:$9 sm:$0xff] %v1576
      %2967 = vst [vmem:[%s2948] ss:$9 sm:$0xff] %v1584
      %v2968 = vld [vmem:[#allocation1] sm:$0xff]
      %2969 = vst [vmem:[#allocation1] ss:$9 sm:$0xff] %v1592
      %2970 = vst [vmem:[%s2936] ss:$9 sm:$0xff] %v1600
      %2971 = vst [vmem:[%s2938] ss:$9 sm:$0xff] %v1608
      %2972 = vst [vmem:[%s2940] ss:$9 sm:$0xff] %v1616
      %2973 = vst [vmem:[%s2942] ss:$9 sm:$0xff] %v1623
      %2974 = vst [vmem:[%s2944] ss:$9 sm:$0xff] %v1631
      %2975 = vst [vmem:[%s2946] ss:$9 sm:$0xff] %v1640
      %2976 = vst [vmem:[%s2948] ss:$9 sm:$0xff] %v1647
      %v2977 = vld [vmem:[#allocation1] sm:$0xff]
      %2978 = vst [vmem:[#allocation1] ss:$9 sm:$0xff] %v1655
      %2979 = vst [vmem:[%s2936] ss:$9 sm:$0xff] %v1663
      %2980 = vst [vmem:[%s2938] ss:$9 sm:$0xff] %v1671
      %2981 = vst [vmem:[%s2940] ss:$9 sm:$0xff] %v1678
      %2982 = vst [vmem:[%s2942] ss:$9 sm:$0xff] %v1687
      %2983 = vst [vmem:[%s2944] ss:$9 sm:$0xff] %v1695
      %2984 = vst [vmem:[%s2946] ss:$9 sm:$0xff] %v1702
      %2985 = vst [vmem:[%s2948] ss:$9 sm:$0xff] %v1710
      %v2986 = vld [vmem:[#allocation1] sm:$0xff]
      %2987 = vst [vmem:[#allocation1] ss:$9 sm:$0xff] %v1718
      %2988 = vst [vmem:[%s2936] ss:$9 sm:$0xff] %v1726
      %2989 = vst [vmem:[%s2938] ss:$9 sm:$0xff] %v1734
      %2990 = vst [vmem:[%s2940] ss:$9 sm:$0xff] %v1742
      %2991 = vst [vmem:[%s2942] ss:$9 sm:$0xff] %v1750
      %2992 = vst [vmem:[%s2944] ss:$9 sm:$0xff] %v1757
      %2993 = vst [vmem:[%s2946] ss:$9 sm:$0xff] %v1765
      %2994 = vst [vmem:[%s2948] ss:$9 sm:$0xff] %v1773
      %v2995 = vld [vmem:[#allocation1] sm:$0xff]
      %2996 = vst [vmem:[#allocation1] ss:$9 sm:$0xff] %v1781
      %2997 = vst [vmem:[%s2936] ss:$9 sm:$0xff] %v1789
      %2998 = vst [vmem:[%s2938] ss:$9 sm:$0xff] %v1797
      %2999 = vst [vmem:[%s2940] ss:$9 sm:$0xff] %v1805
      %3000 = vst [vmem:[%s2942] ss:$9 sm:$0xff] %v1812
      %3001 = vst [vmem:[%s2944] ss:$9 sm:$0xff] %v1820
      %3002 = vst [vmem:[%s2946] ss:$9 sm:$0xff] %v1829
      %3003 = vst [vmem:[%s2948] ss:$9 sm:$0xff] %v1836
      %v3004 = vld [vmem:[#allocation1] sm:$0xff]
      %3005 = vst [vmem:[#allocation1] ss:$9 sm:$0xff] %v1844
      %3006 = vst [vmem:[%s2936] ss:$9 sm:$0xff] %v1852
      %3007 = vst [vmem:[%s2938] ss:$9 sm:$0xff] %v1860
      %3008 = vst [vmem:[%s2940] ss:$9 sm:$0xff] %v1867
      %3009 = vst [vmem:[%s2942] ss:$9 sm:$0xff] %v1876
      %3010 = vst [vmem:[%s2944] ss:$9 sm:$0xff] %v1884
      %3011 = vst [vmem:[%s2946] ss:$9 sm:$0xff] %v1891
      %3012 = vst [vmem:[%s2948] ss:$9 sm:$0xff] %v1899
      %v3013 = vld [vmem:[#allocation1] sm:$0xff]
      %3014 = vst [vmem:[#allocation1] ss:$9 sm:$0xff] %v1907
      %3015 = vst [vmem:[%s2936] ss:$9 sm:$0xff] %v1915
      %3017 = vst [vmem:[%s2938] ss:$9 sm:$0xff] %v2881
      %3019 = vst [vmem:[%s2940] ss:$9 sm:$0xff] %v2888
      %3021 = vst [vmem:[%s2942] ss:$9 sm:$0xff] %v2895
      %3023 = vst [vmem:[%s2944] ss:$9 sm:$0xff] %v2902
      %3025 = vst [vmem:[%s2946] ss:$9 sm:$0xff] %v2909
      %3027 = vst [vmem:[%s2948] ss:$9 sm:$0xff] %v2917
      %v3028 = vld [vmem:[#allocation1] sm:$0xff]
      %v3054 = vunpack.c.l.b16 %v2919
      %v3055 = vunpack.c.l.b16 %v2920
      %v3056 = vunpack.c.l.b16 %v2921
      %v3057 = vunpack.c.l.b16 %v2922
      %v3058 = vunpack.c.l.b16 %v2923
      %v3059 = vunpack.c.l.b16 %v2924
      %v3060 = vunpack.c.l.b16 %v2925
      %v3061 = vunpack.c.l.b16 %v2926
      %v3062 = vunpack.c.l.b16 %v2927
      %v3063 = vunpack.c.l.b16 %v2928
      %v3064 = vunpack.c.l.b16 %v2929
      %v3065 = vunpack.c.l.b16 %v2930
      %v3066 = vunpack.c.l.b16 %v2931
      %v3067 = vunpack.c.l.b16 %v2932
      %v3068 = vunpack.c.l.b16 %v2933
      %v3069 = vunpack.c.l.b16 %v2934
      %v3070 = vpack.c.b16 %v3055, %v3054
      %v3071 = vpack.c.b16 %v3057, %v3056
      %v3072 = vpack.c.b16 %v3059, %v3058
      %v3073 = vpack.c.b16 %v3061, %v3060
      %v3074 = vpack.c.b16 %v3063, %v3062
      %v3075 = vpack.c.b16 %v3065, %v3064
      %v3076 = vpack.c.b16 %v3067, %v3066
      %v3077 = vpack.c.b16 %v3069, %v3068
      %3086 = vmatpush.bf16.msra.mxu0 %v3077
      %3087 = vmatpush.bf16.msra.mxu0 %v3076
      %3088 = vmatpush.bf16.msra.mxu0 %v3075
      %3089 = vmatpush.bf16.msra.mxu0 %v3074
      %3090 = vmatpush.bf16.msra.mxu0 %v3073
      %3091 = vmatpush.bf16.msra.mxu0 %v3072
      %3092 = vmatpush.bf16.msra.mxu0 %v3071
      %3093 = vmatpush.bf16.msra.mxu0 %v3070
      %3094 = vmatmul.bf16.gmra.mxu0 %v2950
      %v3095 = vpop.f32.mrf.mxu0
      %v3096 = vadd.f32 0.0, %v3095
      %v3097 = vpop.f32.mrf.mxu0
      %v3098 = vadd.f32 0.0, %v3097
      %3099 = vmatmul.bf16.gmra.mxu0 %v2959
      %v3100 = vpop.f32.mrf.mxu0
      %v3101 = vadd.f32 0.0, %v3100
      %v3102 = vpop.f32.mrf.mxu0
      %v3103 = vadd.f32 0.0, %v3102
      %3104 = vmatmul.bf16.gmra.mxu0 %v2968
      %v3105 = vpop.f32.mrf.mxu0
      %v3106 = vadd.f32 0.0, %v3105
      %v3107 = vpop.f32.mrf.mxu0
      %v3108 = vadd.f32 0.0, %v3107
      %3109 = vmatmul.bf16.gmra.mxu0 %v2977
      %v3110 = vpop.f32.mrf.mxu0
      %v3111 = vadd.f32 0.0, %v3110
      %v3112 = vpop.f32.mrf.mxu0
      %v3113 = vadd.f32 0.0, %v3112
      %3114 = vmatmul.bf16.gmra.mxu0 %v2986
      %v3115 = vpop.f32.mrf.mxu0
      %v3116 = vadd.f32 0.0, %v3115
      %v3117 = vpop.f32.mrf.mxu0
      %v3118 = vadd.f32 0.0, %v3117
      %3119 = vmatmul.bf16.gmra.mxu0 %v2995
      %v3120 = vpop.f32.mrf.mxu0
      %v3121 = vadd.f32 0.0, %v3120
      %v3122 = vpop.f32.mrf.mxu0
      %v3123 = vadd.f32 0.0, %v3122
      %3124 = vmatmul.bf16.gmra.mxu0 %v3004
      %v3125 = vpop.f32.mrf.mxu0
      %v3126 = vadd.f32 0.0, %v3125
      %v3127 = vpop.f32.mrf.mxu0
      %v3128 = vadd.f32 0.0, %v3127
      %3129 = vmatmul.bf16.gmra.mxu0 %v3013
      %v3130 = vpop.f32.mrf.mxu0
      %v3131 = vadd.f32 0.0, %v3130
      %v3132 = vpop.f32.mrf.mxu0
      %v3133 = vadd.f32 0.0, %v3132
      %3134 = vmatmul.bf16.gmra.mxu0 %v3028
      %v3135 = vpop.f32.mrf.mxu0
      %v3136 = vadd.f32 0.0, %v3135
      %v3137 = vpop.f32.mrf.mxu0
      %v3138 = vadd.f32 0.0, %v3137
      %3139 = vdwg.mxu0
      %v3140 = vadd.f32 %v2857, %v3096
      %v3141 = vadd.f32 %v2858, %v3098
      %v3142 = vadd.f32 %v2859, %v3101
      %v3143 = vadd.f32 %v2860, %v3103
      %v3144 = vadd.f32 %v2861, %v3106
      %v3145 = vadd.f32 %v2862, %v3108
      %v3146 = vadd.f32 %v2863, %v3111
      %v3147 = vadd.f32 %v2864, %v3113
      %v3148 = vadd.f32 %v2865, %v3116
      %v3149 = vadd.f32 %v2866, %v3118
      %v3150 = vadd.f32 %v2867, %v3121
      %v3151 = vadd.f32 %v2868, %v3123
      %v3152 = vadd.f32 %v2869, %v3126
      %v3153 = vadd.f32 %v2870, %v3128
      %v3154 = vadd.f32 %v2871, %v3131
      %v3155 = vadd.f32 %v2872, %v3133
      %v3156 = vadd.f32 %v2873, %v3136
      %v3157 = vadd.f32 %v2874, %v3138
      %s3158 = scalar_lea.vmem %s3, 320
      %v3159 = vld [vmem:[%s3158] sm:$0xf]
      %v3160 = vld [vmem:[%s3158 + $0x4] sm:$0xf]
      %v3161 = vld [vmem:[%s3158 + $0x8] sm:$0xf]
      %v3162 = vld [vmem:[%s3158 + $0xc] sm:$0xf]
      %v3163 = vld [vmem:[%s3158 + $0x10] sm:$0xf]
      %v3164 = vld [vmem:[%s3158 + $0x14] sm:$0xf]
      %v3165 = vld [vmem:[%s3158 + $0x18] sm:$0xf]
      %v3166 = vld [vmem:[%s3158 + $0x1c] sm:$0xf]
      %v3167 = vld [vmem:[%s3158 + $0x20] sm:$0xf]
      %v3168 = vld [vmem:[%s3158 + $0x24] sm:$0xf]
      %v3169 = vld [vmem:[%s3158 + $0x28] sm:$0xf]
      %v3170 = vld [vmem:[%s3158 + $0x2c] sm:$0xf]
      %v3171 = vld [vmem:[%s3158 + $0x30] sm:$0xf]
      %v3172 = vld [vmem:[%s3158 + $0x34] sm:$0xf]
      %v3173 = vld [vmem:[%s3158 + $0x38] sm:$0xf]
      %v3174 = vld [vmem:[%s3158 + $0x3c] sm:$0xf]
      %3175 = vst [vmem:[#allocation1] ss:$9 sm:$0xff] %v1050
      %s3176 = scalar_lea.vmem [#allocation1], 1
      %3177 = vst [vmem:[%s3176] ss:$9 sm:$0xff] %v1053
      %s3178 = scalar_lea.vmem [#allocation1], 2
      %3179 = vst [vmem:[%s3178] ss:$9 sm:$0xff] %v1056
      %s3180 = scalar_lea.vmem [#allocation1], 3
      %3181 = vst [vmem:[%s3180] ss:$9 sm:$0xff] %v1059
      %s3182 = scalar_lea.vmem [#allocation1], 4
      %3183 = vst [vmem:[%s3182] ss:$9 sm:$0xff] %v1062
      %s3184 = scalar_lea.vmem [#allocation1], 5
      %3185 = vst [vmem:[%s3184] ss:$9 sm:$0xff] %v1065
      %s3186 = scalar_lea.vmem [#allocation1], 6
      %3187 = vst [vmem:[%s3186] ss:$9 sm:$0xff] %v1071
      %s3188 = scalar_lea.vmem [#allocation1], 7
      %3189 = vst [vmem:[%s3188] ss:$9 sm:$0xff] %v1074
      %v3190 = vld [vmem:[#allocation1] sm:$0xff]
      %3191 = vst [vmem:[#allocation1] ss:$9 sm:$0xff] %v1077
      %3192 = vst [vmem:[%s3176] ss:$9 sm:$0xff] %v1080
      %3193 = vst [vmem:[%s3178] ss:$9 sm:$0xff] %v1083
      %3194 = vst [vmem:[%s3180] ss:$9 sm:$0xff] %v1086
      %3195 = vst [vmem:[%s3182] ss:$9 sm:$0xff] %v1092
      %3196 = vst [vmem:[%s3184] ss:$9 sm:$0xff] %v1095
      %3197 = vst [vmem:[%s3186] ss:$9 sm:$0xff] %v1098
      %3198 = vst [vmem:[%s3188] ss:$9 sm:$0xff] %v1101
      %v3199 = vld [vmem:[#allocation1] sm:$0xff]
      %3200 = vst [vmem:[#allocation1] ss:$9 sm:$0xff] %v1104
      %3201 = vst [vmem:[%s3176] ss:$9 sm:$0xff] %v1107
      %3202 = vst [vmem:[%s3178] ss:$9 sm:$0xff] %v1113
      %3203 = vst [vmem:[%s3180] ss:$9 sm:$0xff] %v1116
      %3204 = vst [vmem:[%s3182] ss:$9 sm:$0xff] %v1119
      %3205 = vst [vmem:[%s3184] ss:$9 sm:$0xff] %v1122
      %3206 = vst [vmem:[%s3186] ss:$9 sm:$0xff] %v1125
      %3207 = vst [vmem:[%s3188] ss:$9 sm:$0xff] %v1128
      %v3208 = vld [vmem:[#allocation1] sm:$0xff]
      %3209 = vst [vmem:[#allocation1] ss:$9 sm:$0xff] %v1134
      %3210 = vst [vmem:[%s3176] ss:$9 sm:$0xff] %v1137
      %3211 = vst [vmem:[%s3178] ss:$9 sm:$0xff] %v1140
      %3212 = vst [vmem:[%s3180] ss:$9 sm:$0xff] %v1143
      %3213 = vst [vmem:[%s3182] ss:$9 sm:$0xff] %v1146
      %3214 = vst [vmem:[%s3184] ss:$9 sm:$0xff] %v1149
      %3215 = vst [vmem:[%s3186] ss:$9 sm:$0xff] %v1155
      %3216 = vst [vmem:[%s3188] ss:$9 sm:$0xff] %v1158
      %v3217 = vld [vmem:[#allocation1] sm:$0xff]
      %3218 = vst [vmem:[#allocation1] ss:$9 sm:$0xff] %v1161
      %3219 = vst [vmem:[%s3176] ss:$9 sm:$0xff] %v1164
      %3220 = vst [vmem:[%s3178] ss:$9 sm:$0xff] %v1167
      %3221 = vst [vmem:[%s3180] ss:$9 sm:$0xff] %v1170
      %3222 = vst [vmem:[%s3182] ss:$9 sm:$0xff] %v1176
      %3223 = vst [vmem:[%s3184] ss:$9 sm:$0xff] %v1179
      %3224 = vst [vmem:[%s3186] ss:$9 sm:$0xff] %v1182
      %3225 = vst [vmem:[%s3188] ss:$9 sm:$0xff] %v1185
      %v3226 = vld [vmem:[#allocation1] sm:$0xff]
      %3227 = vst [vmem:[#allocation1] ss:$9 sm:$0xff] %v1188
      %3228 = vst [vmem:[%s3176] ss:$9 sm:$0xff] %v1191
      %3229 = vst [vmem:[%s3178] ss:$9 sm:$0xff] %v1197
      %3230 = vst [vmem:[%s3180] ss:$9 sm:$0xff] %v1200
      %3231 = vst [vmem:[%s3182] ss:$9 sm:$0xff] %v1203
      %3232 = vst [vmem:[%s3184] ss:$9 sm:$0xff] %v1206
      %3233 = vst [vmem:[%s3186] ss:$9 sm:$0xff] %v1209
      %3234 = vst [vmem:[%s3188] ss:$9 sm:$0xff] %v1212
      %v3235 = vld [vmem:[#allocation1] sm:$0xff]
      %3236 = vst [vmem:[#allocation1] ss:$9 sm:$0xff] %v1218
      %3237 = vst [vmem:[%s3176] ss:$9 sm:$0xff] %v1221
      %3238 = vst [vmem:[%s3178] ss:$9 sm:$0xff] %v1224
      %3239 = vst [vmem:[%s3180] ss:$9 sm:$0xff] %v1227
      %3240 = vst [vmem:[%s3182] ss:$9 sm:$0xff] %v1230
      %3241 = vst [vmem:[%s3184] ss:$9 sm:$0xff] %v1233
      %3242 = vst [vmem:[%s3186] ss:$9 sm:$0xff] %v1239
      %3243 = vst [vmem:[%s3188] ss:$9 sm:$0xff] %v1242
      %v3244 = vld [vmem:[#allocation1] sm:$0xff]
      %3245 = vst [vmem:[#allocation1] ss:$9 sm:$0xff] %v1245
      %3246 = vst [vmem:[%s3176] ss:$9 sm:$0xff] %v1248
      %3247 = vst [vmem:[%s3178] ss:$9 sm:$0xff] %v1251
      %3248 = vst [vmem:[%s3180] ss:$9 sm:$0xff] %v1254
      %3249 = vst [vmem:[%s3182] ss:$9 sm:$0xff] %v1260
      %3250 = vst [vmem:[%s3184] ss:$9 sm:$0xff] %v1263
      %3251 = vst [vmem:[%s3186] ss:$9 sm:$0xff] %v1266
      %3252 = vst [vmem:[%s3188] ss:$9 sm:$0xff] %v1269
      %v3253 = vld [vmem:[#allocation1] sm:$0xff]
      %3254 = vst [vmem:[#allocation1] ss:$9 sm:$0xff] %v1272
      %3255 = vst [vmem:[%s3176] ss:$9 sm:$0xff] %v1275
      %3256 = vst [vmem:[%s3178] ss:$9 sm:$0xff] %v1281
      %3257 = vst [vmem:[%s3180] ss:$9 sm:$0xff] %v1284
      %3258 = vst [vmem:[%s3182] ss:$9 sm:$0xff] %v1287
      %3259 = vst [vmem:[%s3184] ss:$9 sm:$0xff] %v1290
      %3260 = vst [vmem:[%s3186] ss:$9 sm:$0xff] %v1293
      %3261 = vst [vmem:[%s3188] ss:$9 sm:$0xff] %v1296
      %v3262 = vld [vmem:[#allocation1] sm:$0xff]
      %v3288 = vunpack.c.l.b16 %v3159
      %v3289 = vunpack.c.l.b16 %v3160
      %v3290 = vunpack.c.l.b16 %v3161
      %v3291 = vunpack.c.l.b16 %v3162
      %v3292 = vunpack.c.l.b16 %v3163
      %v3293 = vunpack.c.l.b16 %v3164
      %v3294 = vunpack.c.l.b16 %v3165
      %v3295 = vunpack.c.l.b16 %v3166
      %v3296 = vunpack.c.l.b16 %v3167
      %v3297 = vunpack.c.l.b16 %v3168
      %v3298 = vunpack.c.l.b16 %v3169
      %v3299 = vunpack.c.l.b16 %v3170
      %v3300 = vunpack.c.l.b16 %v3171
      %v3301 = vunpack.c.l.b16 %v3172
      %v3302 = vunpack.c.l.b16 %v3173
      %v3303 = vunpack.c.l.b16 %v3174
      %v3304 = vpack.c.b16 %v3289, %v3288
      %v3305 = vpack.c.b16 %v3291, %v3290
      %v3306 = vpack.c.b16 %v3293, %v3292
      %v3307 = vpack.c.b16 %v3295, %v3294
      %v3308 = vpack.c.b16 %v3297, %v3296
      %v3309 = vpack.c.b16 %v3299, %v3298
      %v3310 = vpack.c.b16 %v3301, %v3300
      %v3311 = vpack.c.b16 %v3303, %v3302
      %3320 = vmatpush.bf16.msra.mxu0 %v3311
      %3321 = vmatpush.bf16.msra.mxu0 %v3310
      %3322 = vmatpush.bf16.msra.mxu0 %v3309
      %3323 = vmatpush.bf16.msra.mxu0 %v3308
      %3324 = vmatpush.bf16.msra.mxu0 %v3307
      %3325 = vmatpush.bf16.msra.mxu0 %v3306
      %3326 = vmatpush.bf16.msra.mxu0 %v3305
      %3327 = vmatpush.bf16.msra.mxu0 %v3304
      %3328 = vmatmul.bf16.gmra.mxu0 %v3190
      %v3329 = vpop.f32.mrf.mxu0
      %v3330 = vadd.f32 0.0, %v3329
      %v3331 = vpop.f32.mrf.mxu0
      %v3332 = vadd.f32 0.0, %v3331
      %3333 = vmatmul.bf16.gmra.mxu0 %v3199
      %v3334 = vpop.f32.mrf.mxu0
      %v3335 = vadd.f32 0.0, %v3334
      %v3336 = vpop.f32.mrf.mxu0
      %v3337 = vadd.f32 0.0, %v3336
      %3338 = vmatmul.bf16.gmra.mxu0 %v3208
      %v3339 = vpop.f32.mrf.mxu0
      %v3340 = vadd.f32 0.0, %v3339
      %v3341 = vpop.f32.mrf.mxu0
      %v3342 = vadd.f32 0.0, %v3341
      %3343 = vmatmul.bf16.gmra.mxu0 %v3217
      %v3344 = vpop.f32.mrf.mxu0
      %v3345 = vadd.f32 0.0, %v3344
      %v3346 = vpop.f32.mrf.mxu0
      %v3347 = vadd.f32 0.0, %v3346
      %3348 = vmatmul.bf16.gmra.mxu0 %v3226
      %v3349 = vpop.f32.mrf.mxu0
      %v3350 = vadd.f32 0.0, %v3349
      %v3351 = vpop.f32.mrf.mxu0
      %v3352 = vadd.f32 0.0, %v3351
      %3353 = vmatmul.bf16.gmra.mxu0 %v3235
      %v3354 = vpop.f32.mrf.mxu0
      %v3355 = vadd.f32 0.0, %v3354
      %v3356 = vpop.f32.mrf.mxu0
      %v3357 = vadd.f32 0.0, %v3356
      %3358 = vmatmul.bf16.gmra.mxu0 %v3244
      %v3359 = vpop.f32.mrf.mxu0
      %v3360 = vadd.f32 0.0, %v3359
      %v3361 = vpop.f32.mrf.mxu0
      %v3362 = vadd.f32 0.0, %v3361
      %3363 = vmatmul.bf16.gmra.mxu0 %v3253
      %v3364 = vpop.f32.mrf.mxu0
      %v3365 = vadd.f32 0.0, %v3364
      %v3366 = vpop.f32.mrf.mxu0
      %v3367 = vadd.f32 0.0, %v3366
      %3368 = vmatmul.bf16.gmra.mxu0 %v3262
      %v3369 = vpop.f32.mrf.mxu0
      %v3370 = vadd.f32 0.0, %v3369
      %v3371 = vpop.f32.mrf.mxu0
      %v3372 = vadd.f32 0.0, %v3371
      %3373 = vdwg.mxu0
      %v3374 = vadd.f32 %v3140, %v3330
      %v3375 = vadd.f32 %v3141, %v3332
      %v3376 = vadd.f32 %v3142, %v3335
      %v3377 = vadd.f32 %v3143, %v3337
      %v3378 = vadd.f32 %v3144, %v3340
      %v3379 = vadd.f32 %v3145, %v3342
      %v3380 = vadd.f32 %v3146, %v3345
      %v3381 = vadd.f32 %v3147, %v3347
      %v3382 = vadd.f32 %v3148, %v3350
      %v3383 = vadd.f32 %v3149, %v3352
      %v3384 = vadd.f32 %v3150, %v3355
      %v3385 = vadd.f32 %v3151, %v3357
      %v3386 = vadd.f32 %v3152, %v3360
      %v3387 = vadd.f32 %v3153, %v3362
      %v3388 = vadd.f32 %v3154, %v3365
      %v3389 = vadd.f32 %v3155, %v3367
      %v3390 = vadd.f32 %v3156, %v3370
      %v3391 = vadd.f32 %v3157, %v3372
      %s3392 = scalar_lea.vmem %s3, 384
      %v3393 = vld [vmem:[%s3392] sm:$0xf]
      %v3394 = vld [vmem:[%s3392 + $0x4] sm:$0xf]
      %v3395 = vld [vmem:[%s3392 + $0x8] sm:$0xf]
      %v3396 = vld [vmem:[%s3392 + $0xc] sm:$0xf]
      %v3397 = vld [vmem:[%s3392 + $0x10] sm:$0xf]
      %v3398 = vld [vmem:[%s3392 + $0x14] sm:$0xf]
      %v3399 = vld [vmem:[%s3392 + $0x18] sm:$0xf]
      %v3400 = vld [vmem:[%s3392 + $0x1c] sm:$0xf]
      %v3401 = vld [vmem:[%s3392 + $0x20] sm:$0xf]
      %v3402 = vld [vmem:[%s3392 + $0x24] sm:$0xf]
      %v3403 = vld [vmem:[%s3392 + $0x28] sm:$0xf]
      %v3404 = vld [vmem:[%s3392 + $0x2c] sm:$0xf]
      %v3405 = vld [vmem:[%s3392 + $0x30] sm:$0xf]
      %v3406 = vld [vmem:[%s3392 + $0x34] sm:$0xf]
      %v3407 = vld [vmem:[%s3392 + $0x38] sm:$0xf]
      %v3408 = vld [vmem:[%s3392 + $0x3c] sm:$0xf]
      %3409 = vst [vmem:[#allocation1] ss:$9 sm:$0xff] %v1068
      %s3410 = scalar_lea.vmem [#allocation1], 1
      %3411 = vst [vmem:[%s3410] ss:$9 sm:$0xff] %v1071
      %s3412 = scalar_lea.vmem [#allocation1], 2
      %3413 = vst [vmem:[%s3412] ss:$9 sm:$0xff] %v1074
      %s3414 = scalar_lea.vmem [#allocation1], 3
      %3415 = vst [vmem:[%s3414] ss:$9 sm:$0xff] %v1077
      %s3416 = scalar_lea.vmem [#allocation1], 4
      %3417 = vst [vmem:[%s3416] ss:$9 sm:$0xff] %v1080
      %s3418 = scalar_lea.vmem [#allocation1], 5
      %3419 = vst [vmem:[%s3418] ss:$9 sm:$0xff] %v1083
      %s3420 = scalar_lea.vmem [#allocation1], 6
      %3421 = vst [vmem:[%s3420] ss:$9 sm:$0xff] %v1089
      %s3422 = scalar_lea.vmem [#allocation1], 7
      %3423 = vst [vmem:[%s3422] ss:$9 sm:$0xff] %v1092
      %v3424 = vld [vmem:[#allocation1] sm:$0xff]
      %3425 = vst [vmem:[#allocation1] ss:$9 sm:$0xff] %v1095
      %3426 = vst [vmem:[%s3410] ss:$9 sm:$0xff] %v1098
      %3427 = vst [vmem:[%s3412] ss:$9 sm:$0xff] %v1101
      %3428 = vst [vmem:[%s3414] ss:$9 sm:$0xff] %v1104
      %3429 = vst [vmem:[%s3416] ss:$9 sm:$0xff] %v1110
      %3430 = vst [vmem:[%s3418] ss:$9 sm:$0xff] %v1113
      %3431 = vst [vmem:[%s3420] ss:$9 sm:$0xff] %v1116
      %3432 = vst [vmem:[%s3422] ss:$9 sm:$0xff] %v1119
      %v3433 = vld [vmem:[#allocation1] sm:$0xff]
      %3434 = vst [vmem:[#allocation1] ss:$9 sm:$0xff] %v1122
      %3435 = vst [vmem:[%s3410] ss:$9 sm:$0xff] %v1125
      %3436 = vst [vmem:[%s3412] ss:$9 sm:$0xff] %v1131
      %3437 = vst [vmem:[%s3414] ss:$9 sm:$0xff] %v1134
      %3438 = vst [vmem:[%s3416] ss:$9 sm:$0xff] %v1137
      %3439 = vst [vmem:[%s3418] ss:$9 sm:$0xff] %v1140
      %3440 = vst [vmem:[%s3420] ss:$9 sm:$0xff] %v1143
      %3441 = vst [vmem:[%s3422] ss:$9 sm:$0xff] %v1146
      %v3442 = vld [vmem:[#allocation1] sm:$0xff]
      %3443 = vst [vmem:[#allocation1] ss:$9 sm:$0xff] %v1152
      %3444 = vst [vmem:[%s3410] ss:$9 sm:$0xff] %v1155
      %3445 = vst [vmem:[%s3412] ss:$9 sm:$0xff] %v1158
      %3446 = vst [vmem:[%s3414] ss:$9 sm:$0xff] %v1161
      %3447 = vst [vmem:[%s3416] ss:$9 sm:$0xff] %v1164
      %3448 = vst [vmem:[%s3418] ss:$9 sm:$0xff] %v1167
      %3449 = vst [vmem:[%s3420] ss:$9 sm:$0xff] %v1173
      %3450 = vst [vmem:[%s3422] ss:$9 sm:$0xff] %v1176
      %v3451 = vld [vmem:[#allocation1] sm:$0xff]
      %3452 = vst [vmem:[#allocation1] ss:$9 sm:$0xff] %v1179
      %3453 = vst [vmem:[%s3410] ss:$9 sm:$0xff] %v1182
      %3454 = vst [vmem:[%s3412] ss:$9 sm:$0xff] %v1185
      %3455 = vst [vmem:[%s3414] ss:$9 sm:$0xff] %v1188
      %3456 = vst [vmem:[%s3416] ss:$9 sm:$0xff] %v1194
      %3457 = vst [vmem:[%s3418] ss:$9 sm:$0xff] %v1197
      %3458 = vst [vmem:[%s3420] ss:$9 sm:$0xff] %v1200
      %3459 = vst [vmem:[%s3422] ss:$9 sm:$0xff] %v1203
      %v3460 = vld [vmem:[#allocation1] sm:$0xff]
      %3461 = vst [vmem:[#allocation1] ss:$9 sm:$0xff] %v1206
      %3462 = vst [vmem:[%s3410] ss:$9 sm:$0xff] %v1209
      %3463 = vst [vmem:[%s3412] ss:$9 sm:$0xff] %v1215
      %3464 = vst [vmem:[%s3414] ss:$9 sm:$0xff] %v1218
      %3465 = vst [vmem:[%s3416] ss:$9 sm:$0xff] %v1221
      %3466 = vst [vmem:[%s3418] ss:$9 sm:$0xff] %v1224
      %3467 = vst [vmem:[%s3420] ss:$9 sm:$0xff] %v1227
      %3468 = vst [vmem:[%s3422] ss:$9 sm:$0xff] %v1230
      %v3469 = vld [vmem:[#allocation1] sm:$0xff]
      %3470 = vst [vmem:[#allocation1] ss:$9 sm:$0xff] %v1236
      %3471 = vst [vmem:[%s3410] ss:$9 sm:$0xff] %v1239
      %3472 = vst [vmem:[%s3412] ss:$9 sm:$0xff] %v1242
      %3473 = vst [vmem:[%s3414] ss:$9 sm:$0xff] %v1245
      %3474 = vst [vmem:[%s3416] ss:$9 sm:$0xff] %v1248
      %3475 = vst [vmem:[%s3418] ss:$9 sm:$0xff] %v1251
      %3476 = vst [vmem:[%s3420] ss:$9 sm:$0xff] %v1257
      %3477 = vst [vmem:[%s3422] ss:$9 sm:$0xff] %v1260
      %v3478 = vld [vmem:[#allocation1] sm:$0xff]
      %3479 = vst [vmem:[#allocation1] ss:$9 sm:$0xff] %v1263
      %3480 = vst [vmem:[%s3410] ss:$9 sm:$0xff] %v1266
      %3481 = vst [vmem:[%s3412] ss:$9 sm:$0xff] %v1269
      %3482 = vst [vmem:[%s3414] ss:$9 sm:$0xff] %v1272
      %3483 = vst [vmem:[%s3416] ss:$9 sm:$0xff] %v1278
      %3484 = vst [vmem:[%s3418] ss:$9 sm:$0xff] %v1281
      %3485 = vst [vmem:[%s3420] ss:$9 sm:$0xff] %v1284
      %3486 = vst [vmem:[%s3422] ss:$9 sm:$0xff] %v1287
      %v3487 = vld [vmem:[#allocation1] sm:$0xff]
      %3488 = vst [vmem:[#allocation1] ss:$9 sm:$0xff] %v1290
      %3489 = vst [vmem:[%s3410] ss:$9 sm:$0xff] %v1293
      %3491 = vst [vmem:[%s3412] ss:$9 sm:$0xff] %v1299
      %3492 = vst [vmem:[%s3414] ss:$9 sm:$0xff] %v1302
      %3494 = vst [vmem:[%s3416] ss:$9 sm:$0xff] %v1305
      %3496 = vst [vmem:[%s3418] ss:$9 sm:$0xff] %v1308
      %3498 = vst [vmem:[%s3420] ss:$9 sm:$0xff] %v1311
      %3499 = vst [vmem:[%s3422] ss:$9 sm:$0xff] %v1314
      %v3500 = vld [vmem:[#allocation1] sm:$0xff]
      %v3526 = vunpack.c.l.b16 %v3393
      %v3527 = vunpack.c.l.b16 %v3394
      %v3528 = vunpack.c.l.b16 %v3395
      %v3529 = vunpack.c.l.b16 %v3396
      %v3530 = vunpack.c.l.b16 %v3397
      %v3531 = vunpack.c.l.b16 %v3398
      %v3532 = vunpack.c.l.b16 %v3399
      %v3533 = vunpack.c.l.b16 %v3400
      %v3534 = vunpack.c.l.b16 %v3401
      %v3535 = vunpack.c.l.b16 %v3402
      %v3536 = vunpack.c.l.b16 %v3403
      %v3537 = vunpack.c.l.b16 %v3404
      %v3538 = vunpack.c.l.b16 %v3405
      %v3539 = vunpack.c.l.b16 %v3406
      %v3540 = vunpack.c.l.b16 %v3407
      %v3541 = vunpack.c.l.b16 %v3408
      %v3542 = vpack.c.b16 %v3527, %v3526
      %v3543 = vpack.c.b16 %v3529, %v3528
      %v3544 = vpack.c.b16 %v3531, %v3530
      %v3545 = vpack.c.b16 %v3533, %v3532
      %v3546 = vpack.c.b16 %v3535, %v3534
      %v3547 = vpack.c.b16 %v3537, %v3536
      %v3548 = vpack.c.b16 %v3539, %v3538
      %v3549 = vpack.c.b16 %v3541, %v3540
      %3558 = vmatpush.bf16.msra.mxu0 %v3549
      %3559 = vmatpush.bf16.msra.mxu0 %v3548
      %3560 = vmatpush.bf16.msra.mxu0 %v3547
      %3561 = vmatpush.bf16.msra.mxu0 %v3546
      %3562 = vmatpush.bf16.msra.mxu0 %v3545
      %3563 = vmatpush.bf16.msra.mxu0 %v3544
      %3564 = vmatpush.bf16.msra.mxu0 %v3543
      %3565 = vmatpush.bf16.msra.mxu0 %v3542
      %3566 = vmatmul.bf16.gmra.mxu0 %v3424
      %v3567 = vpop.f32.mrf.mxu0
      %v3568 = vadd.f32 0.0, %v3567
      %v3569 = vpop.f32.mrf.mxu0
      %v3570 = vadd.f32 0.0, %v3569
      %3571 = vmatmul.bf16.gmra.mxu0 %v3433
      %v3572 = vpop.f32.mrf.mxu0
      %v3573 = vadd.f32 0.0, %v3572
      %v3574 = vpop.f32.mrf.mxu0
      %v3575 = vadd.f32 0.0, %v3574
      %3576 = vmatmul.bf16.gmra.mxu0 %v3442
      %v3577 = vpop.f32.mrf.mxu0
      %v3578 = vadd.f32 0.0, %v3577
      %v3579 = vpop.f32.mrf.mxu0
      %v3580 = vadd.f32 0.0, %v3579
      %3581 = vmatmul.bf16.gmra.mxu0 %v3451
      %v3582 = vpop.f32.mrf.mxu0
      %v3583 = vadd.f32 0.0, %v3582
      %v3584 = vpop.f32.mrf.mxu0
      %v3585 = vadd.f32 0.0, %v3584
      %3586 = vmatmul.bf16.gmra.mxu0 %v3460
      %v3587 = vpop.f32.mrf.mxu0
      %v3588 = vadd.f32 0.0, %v3587
      %v3589 = vpop.f32.mrf.mxu0
      %v3590 = vadd.f32 0.0, %v3589
      %3591 = vmatmul.bf16.gmra.mxu0 %v3469
      %v3592 = vpop.f32.mrf.mxu0
      %v3593 = vadd.f32 0.0, %v3592
      %v3594 = vpop.f32.mrf.mxu0
      %v3595 = vadd.f32 0.0, %v3594
      %3596 = vmatmul.bf16.gmra.mxu0 %v3478
      %v3597 = vpop.f32.mrf.mxu0
      %v3598 = vadd.f32 0.0, %v3597
      %v3599 = vpop.f32.mrf.mxu0
      %v3600 = vadd.f32 0.0, %v3599
      %3601 = vmatmul.bf16.gmra.mxu0 %v3487
      %v3602 = vpop.f32.mrf.mxu0
      %v3603 = vadd.f32 0.0, %v3602
      %v3604 = vpop.f32.mrf.mxu0
      %v3605 = vadd.f32 0.0, %v3604
      %3606 = vmatmul.bf16.gmra.mxu0 %v3500
      %v3607 = vpop.f32.mrf.mxu0
      %v3608 = vadd.f32 0.0, %v3607
      %v3609 = vpop.f32.mrf.mxu0
      %v3610 = vadd.f32 0.0, %v3609
      %3611 = vdwg.mxu0
      %v3612 = vadd.f32 %v3374, %v3568
      %v3613 = vadd.f32 %v3375, %v3570
      %v3614 = vadd.f32 %v3376, %v3573
      %v3615 = vadd.f32 %v3377, %v3575
      %v3616 = vadd.f32 %v3378, %v3578
      %v3617 = vadd.f32 %v3379, %v3580
      %v3618 = vadd.f32 %v3380, %v3583
      %v3619 = vadd.f32 %v3381, %v3585
      %v3620 = vadd.f32 %v3382, %v3588
      %v3621 = vadd.f32 %v3383, %v3590
      %v3622 = vadd.f32 %v3384, %v3593
      %v3623 = vadd.f32 %v3385, %v3595
      %v3624 = vadd.f32 %v3386, %v3598
      %v3625 = vadd.f32 %v3387, %v3600
      %v3626 = vadd.f32 %v3388, %v3603
      %v3627 = vadd.f32 %v3389, %v3605
      %v3628 = vadd.f32 %v3390, %v3608
      %v3629 = vadd.f32 %v3391, %v3610
      %v3630 = vshrl.u32 %v1299, 16
      %v3632 = vrot.slane %v3630, 7
      %v3633 = vrot.slane %v3632, 1
      %v3634 = vshll.u32 %v1302, 16
      %v3636 = vsel %vm1348, %v3633, %v3634
      %v3637 = vshrl.u32 %v1302, 16
      %v3639 = vrot.slane %v3637, 7
      %v3640 = vrot.slane %v3639, 1
      %v3641 = vshll.u32 %v1305, 16
      %v3643 = vsel %vm1348, %v3640, %v3641
      %v3644 = vshrl.u32 %v1305, 16
      %v3646 = vrot.slane %v3644, 7
      %v3647 = vrot.slane %v3646, 1
      %v3648 = vshll.u32 %v1308, 16
      %v3650 = vsel %vm1348, %v3647, %v3648
      %v3651 = vshrl.u32 %v1308, 16
      %v3653 = vrot.slane %v3651, 7
      %v3654 = vrot.slane %v3653, 1
      %v3655 = vshll.u32 %v1311, 16
      %v3657 = vsel %vm1348, %v3654, %v3655
      %v3658 = vshrl.u32 %v1311, 16
      %v3660 = vrot.slane %v3658, 7
      %v3661 = vrot.slane %v3660, 1
      %v3662 = vshll.u32 %v1314, 16
      %v3664 = vsel %vm1348, %v3661, %v3662
      %v3665 = vshrl.u32 %v1314, 16
      %v3667 = vrot.slane %v3665, 7
      %v3668 = vrot.slane %v3667, 1
      %v3670 = vshll.u32 %v1317, 16
      %v3672 = vsel %vm1348, %v3668, %v3670
      %s3673 = scalar_lea.vmem %s3, 448
      %v3674 = vld [vmem:[%s3673] sm:$0xf]
      %v3675 = vld [vmem:[%s3673 + $0x4] sm:$0xf]
      %v3676 = vld [vmem:[%s3673 + $0x8] sm:$0xf]
      %v3677 = vld [vmem:[%s3673 + $0xc] sm:$0xf]
      %v3678 = vld [vmem:[%s3673 + $0x10] sm:$0xf]
      %v3679 = vld [vmem:[%s3673 + $0x14] sm:$0xf]
      %v3680 = vld [vmem:[%s3673 + $0x18] sm:$0xf]
      %v3681 = vld [vmem:[%s3673 + $0x1c] sm:$0xf]
      %v3682 = vld [vmem:[%s3673 + $0x20] sm:$0xf]
      %v3683 = vld [vmem:[%s3673 + $0x24] sm:$0xf]
      %v3684 = vld [vmem:[%s3673 + $0x28] sm:$0xf]
      %v3685 = vld [vmem:[%s3673 + $0x2c] sm:$0xf]
      %v3686 = vld [vmem:[%s3673 + $0x30] sm:$0xf]
      %v3687 = vld [vmem:[%s3673 + $0x34] sm:$0xf]
      %v3688 = vld [vmem:[%s3673 + $0x38] sm:$0xf]
      %v3689 = vld [vmem:[%s3673 + $0x3c] sm:$0xf]
      %3690 = vst [vmem:[#allocation1] ss:$9 sm:$0xff] %v1451
      %s3691 = scalar_lea.vmem [#allocation1], 1
      %3692 = vst [vmem:[%s3691] ss:$9 sm:$0xff] %v1458
      %s3693 = scalar_lea.vmem [#allocation1], 2
      %3694 = vst [vmem:[%s3693] ss:$9 sm:$0xff] %v1466
      %s3695 = scalar_lea.vmem [#allocation1], 3
      %3696 = vst [vmem:[%s3695] ss:$9 sm:$0xff] %v1474
      %s3697 = scalar_lea.vmem [#allocation1], 4
      %3698 = vst [vmem:[%s3697] ss:$9 sm:$0xff] %v1482
      %s3699 = scalar_lea.vmem [#allocation1], 5
      %3700 = vst [vmem:[%s3699] ss:$9 sm:$0xff] %v1489
      %s3701 = scalar_lea.vmem [#allocation1], 6
      %3702 = vst [vmem:[%s3701] ss:$9 sm:$0xff] %v1498
      %s3703 = scalar_lea.vmem [#allocation1], 7
      %3704 = vst [vmem:[%s3703] ss:$9 sm:$0xff] %v1506
      %v3705 = vld [vmem:[#allocation1] sm:$0xff]
      %3706 = vst [vmem:[#allocation1] ss:$9 sm:$0xff] %v1513
      %3707 = vst [vmem:[%s3691] ss:$9 sm:$0xff] %v1521
      %3708 = vst [vmem:[%s3693] ss:$9 sm:$0xff] %v1529
      %3709 = vst [vmem:[%s3695] ss:$9 sm:$0xff] %v1537
      %3710 = vst [vmem:[%s3697] ss:$9 sm:$0xff] %v1545
      %3711 = vst [vmem:[%s3699] ss:$9 sm:$0xff] %v1553
      %3712 = vst [vmem:[%s3701] ss:$9 sm:$0xff] %v1561
      %3713 = vst [vmem:[%s3703] ss:$9 sm:$0xff] %v1568
      %v3714 = vld [vmem:[#allocation1] sm:$0xff]
      %3715 = vst [vmem:[#allocation1] ss:$9 sm:$0xff] %v1576
      %3716 = vst [vmem:[%s3691] ss:$9 sm:$0xff] %v1584
      %3717 = vst [vmem:[%s3693] ss:$9 sm:$0xff] %v1592
      %3718 = vst [vmem:[%s3695] ss:$9 sm:$0xff] %v1600
      %3719 = vst [vmem:[%s3697] ss:$9 sm:$0xff] %v1608
      %3720 = vst [vmem:[%s3699] ss:$9 sm:$0xff] %v1616
      %3721 = vst [vmem:[%s3701] ss:$9 sm:$0xff] %v1623
      %3722 = vst [vmem:[%s3703] ss:$9 sm:$0xff] %v1631
      %v3723 = vld [vmem:[#allocation1] sm:$0xff]
      %3724 = vst [vmem:[#allocation1] ss:$9 sm:$0xff] %v1640
      %3725 = vst [vmem:[%s3691] ss:$9 sm:$0xff] %v1647
      %3726 = vst [vmem:[%s3693] ss:$9 sm:$0xff] %v1655
      %3727 = vst [vmem:[%s3695] ss:$9 sm:$0xff] %v1663
      %3728 = vst [vmem:[%s3697] ss:$9 sm:$0xff] %v1671
      %3729 = vst [vmem:[%s3699] ss:$9 sm:$0xff] %v1678
      %3730 = vst [vmem:[%s3701] ss:$9 sm:$0xff] %v1687
      %3731 = vst [vmem:[%s3703] ss:$9 sm:$0xff] %v1695
      %v3732 = vld [vmem:[#allocation1] sm:$0xff]
      %3733 = vst [vmem:[#allocation1] ss:$9 sm:$0xff] %v1702
      %3734 = vst [vmem:[%s3691] ss:$9 sm:$0xff] %v1710
      %3735 = vst [vmem:[%s3693] ss:$9 sm:$0xff] %v1718
      %3736 = vst [vmem:[%s3695] ss:$9 sm:$0xff] %v1726
      %3737 = vst [vmem:[%s3697] ss:$9 sm:$0xff] %v1734
      %3738 = vst [vmem:[%s3699] ss:$9 sm:$0xff] %v1742
      %3739 = vst [vmem:[%s3701] ss:$9 sm:$0xff] %v1750
      %3740 = vst [vmem:[%s3703] ss:$9 sm:$0xff] %v1757
      %v3741 = vld [vmem:[#allocation1] sm:$0xff]
      %3742 = vst [vmem:[#allocation1] ss:$9 sm:$0xff] %v1765
      %3743 = vst [vmem:[%s3691] ss:$9 sm:$0xff] %v1773
      %3744 = vst [vmem:[%s3693] ss:$9 sm:$0xff] %v1781
      %3745 = vst [vmem:[%s3695] ss:$9 sm:$0xff] %v1789
      %3746 = vst [vmem:[%s3697] ss:$9 sm:$0xff] %v1797
      %3747 = vst [vmem:[%s3699] ss:$9 sm:$0xff] %v1805
      %3748 = vst [vmem:[%s3701] ss:$9 sm:$0xff] %v1812
      %3749 = vst [vmem:[%s3703] ss:$9 sm:$0xff] %v1820
      %v3750 = vld [vmem:[#allocation1] sm:$0xff]
      %3751 = vst [vmem:[#allocation1] ss:$9 sm:$0xff] %v1829
      %3752 = vst [vmem:[%s3691] ss:$9 sm:$0xff] %v1836
      %3753 = vst [vmem:[%s3693] ss:$9 sm:$0xff] %v1844
      %3754 = vst [vmem:[%s3695] ss:$9 sm:$0xff] %v1852
      %3755 = vst [vmem:[%s3697] ss:$9 sm:$0xff] %v1860
      %3756 = vst [vmem:[%s3699] ss:$9 sm:$0xff] %v1867
      %3757 = vst [vmem:[%s3701] ss:$9 sm:$0xff] %v1876
      %3758 = vst [vmem:[%s3703] ss:$9 sm:$0xff] %v1884
      %v3759 = vld [vmem:[#allocation1] sm:$0xff]
      %3760 = vst [vmem:[#allocation1] ss:$9 sm:$0xff] %v1891
      %3761 = vst [vmem:[%s3691] ss:$9 sm:$0xff] %v1899
      %3762 = vst [vmem:[%s3693] ss:$9 sm:$0xff] %v1907
      %3763 = vst [vmem:[%s3695] ss:$9 sm:$0xff] %v1915
      %3764 = vst [vmem:[%s3697] ss:$9 sm:$0xff] %v2881
      %3765 = vst [vmem:[%s3699] ss:$9 sm:$0xff] %v2888
      %3766 = vst [vmem:[%s3701] ss:$9 sm:$0xff] %v2895
      %3767 = vst [vmem:[%s3703] ss:$9 sm:$0xff] %v2902
      %v3768 = vld [vmem:[#allocation1] sm:$0xff]
      %3769 = vst [vmem:[#allocation1] ss:$9 sm:$0xff] %v2909
      %3770 = vst [vmem:[%s3691] ss:$9 sm:$0xff] %v2917
      %3772 = vst [vmem:[%s3693] ss:$9 sm:$0xff] %v3636
      %3774 = vst [vmem:[%s3695] ss:$9 sm:$0xff] %v3643
      %3776 = vst [vmem:[%s3697] ss:$9 sm:$0xff] %v3650
      %3778 = vst [vmem:[%s3699] ss:$9 sm:$0xff] %v3657
      %3780 = vst [vmem:[%s3701] ss:$9 sm:$0xff] %v3664
      %3782 = vst [vmem:[%s3703] ss:$9 sm:$0xff] %v3672
      %v3783 = vld [vmem:[#allocation1] sm:$0xff]
      %v3809 = vunpack.c.l.b16 %v3674
      %v3810 = vunpack.c.l.b16 %v3675
      %v3811 = vunpack.c.l.b16 %v3676
      %v3812 = vunpack.c.l.b16 %v3677
      %v3813 = vunpack.c.l.b16 %v3678
      %v3814 = vunpack.c.l.b16 %v3679
      %v3815 = vunpack.c.l.b16 %v3680
      %v3816 = vunpack.c.l.b16 %v3681
      %v3817 = vunpack.c.l.b16 %v3682
      %v3818 = vunpack.c.l.b16 %v3683
      %v3819 = vunpack.c.l.b16 %v3684
      %v3820 = vunpack.c.l.b16 %v3685
      %v3821 = vunpack.c.l.b16 %v3686
      %v3822 = vunpack.c.l.b16 %v3687
      %v3823 = vunpack.c.l.b16 %v3688
      %v3824 = vunpack.c.l.b16 %v3689
      %v3825 = vpack.c.b16 %v3810, %v3809
      %v3826 = vpack.c.b16 %v3812, %v3811
      %v3827 = vpack.c.b16 %v3814, %v3813
      %v3828 = vpack.c.b16 %v3816, %v3815
      %v3829 = vpack.c.b16 %v3818, %v3817
      %v3830 = vpack.c.b16 %v3820, %v3819
      %v3831 = vpack.c.b16 %v3822, %v3821
      %v3832 = vpack.c.b16 %v3824, %v3823
      %3841 = vmatpush.bf16.msra.mxu0 %v3832
      %3842 = vmatpush.bf16.msra.mxu0 %v3831
      %3843 = vmatpush.bf16.msra.mxu0 %v3830
      %3844 = vmatpush.bf16.msra.mxu0 %v3829
      %3845 = vmatpush.bf16.msra.mxu0 %v3828
      %3846 = vmatpush.bf16.msra.mxu0 %v3827
      %3847 = vmatpush.bf16.msra.mxu0 %v3826
      %3848 = vmatpush.bf16.msra.mxu0 %v3825
      %3849 = vmatmul.bf16.gmra.mxu0 %v3705
      %v3850 = vpop.f32.mrf.mxu0
      %v3851 = vadd.f32 0.0, %v3850
      %v3852 = vpop.f32.mrf.mxu0
      %v3853 = vadd.f32 0.0, %v3852
      %3854 = vmatmul.bf16.gmra.mxu0 %v3714
      %v3855 = vpop.f32.mrf.mxu0
      %v3856 = vadd.f32 0.0, %v3855
      %v3857 = vpop.f32.mrf.mxu0
      %v3858 = vadd.f32 0.0, %v3857
      %3859 = vmatmul.bf16.gmra.mxu0 %v3723
      %v3860 = vpop.f32.mrf.mxu0
      %v3861 = vadd.f32 0.0, %v3860
      %v3862 = vpop.f32.mrf.mxu0
      %v3863 = vadd.f32 0.0, %v3862
      %3864 = vmatmul.bf16.gmra.mxu0 %v3732
      %v3865 = vpop.f32.mrf.mxu0
      %v3866 = vadd.f32 0.0, %v3865
      %v3867 = vpop.f32.mrf.mxu0
      %v3868 = vadd.f32 0.0, %v3867
      %3869 = vmatmul.bf16.gmra.mxu0 %v3741
      %v3870 = vpop.f32.mrf.mxu0
      %v3871 = vadd.f32 0.0, %v3870
      %v3872 = vpop.f32.mrf.mxu0
      %v3873 = vadd.f32 0.0, %v3872
      %3874 = vmatmul.bf16.gmra.mxu0 %v3750
      %v3875 = vpop.f32.mrf.mxu0
      %v3876 = vadd.f32 0.0, %v3875
      %v3877 = vpop.f32.mrf.mxu0
      %v3878 = vadd.f32 0.0, %v3877
      %3879 = vmatmul.bf16.gmra.mxu0 %v3759
      %v3880 = vpop.f32.mrf.mxu0
      %v3881 = vadd.f32 0.0, %v3880
      %v3882 = vpop.f32.mrf.mxu0
      %v3883 = vadd.f32 0.0, %v3882
      %3884 = vmatmul.bf16.gmra.mxu0 %v3768
      %v3885 = vpop.f32.mrf.mxu0
      %v3886 = vadd.f32 0.0, %v3885
      %v3887 = vpop.f32.mrf.mxu0
      %v3888 = vadd.f32 0.0, %v3887
      %3889 = vmatmul.bf16.gmra.mxu0 %v3783
      %v3890 = vpop.f32.mrf.mxu0
      %v3891 = vadd.f32 0.0, %v3890
      %v3892 = vpop.f32.mrf.mxu0
      %v3893 = vadd.f32 0.0, %v3892
      %3894 = vdwg.mxu0
      %v3895 = vadd.f32 %v3612, %v3851
      %v3896 = vadd.f32 %v3613, %v3853
      %v3897 = vadd.f32 %v3614, %v3856
      %v3898 = vadd.f32 %v3615, %v3858
      %v3899 = vadd.f32 %v3616, %v3861
      %v3900 = vadd.f32 %v3617, %v3863
      %v3901 = vadd.f32 %v3618, %v3866
      %v3902 = vadd.f32 %v3619, %v3868
      %v3903 = vadd.f32 %v3620, %v3871
      %v3904 = vadd.f32 %v3621, %v3873
      %v3905 = vadd.f32 %v3622, %v3876
      %v3906 = vadd.f32 %v3623, %v3878
      %v3907 = vadd.f32 %v3624, %v3881
      %v3908 = vadd.f32 %v3625, %v3883
      %v3909 = vadd.f32 %v3626, %v3886
      %v3910 = vadd.f32 %v3627, %v3888
      %v3911 = vadd.f32 %v3628, %v3891
      %v3912 = vadd.f32 %v3629, %v3893
      %s3913 = scalar_lea.vmem %s3, 512
      %v3914 = vld [vmem:[%s3913] sm:$0xf]
      %v3915 = vld [vmem:[%s3913 + $0x4] sm:$0xf]
      %v3916 = vld [vmem:[%s3913 + $0x8] sm:$0xf]
      %v3917 = vld [vmem:[%s3913 + $0xc] sm:$0xf]
      %v3918 = vld [vmem:[%s3913 + $0x10] sm:$0xf]
      %v3919 = vld [vmem:[%s3913 + $0x14] sm:$0xf]
      %v3920 = vld [vmem:[%s3913 + $0x18] sm:$0xf]
      %v3921 = vld [vmem:[%s3913 + $0x1c] sm:$0xf]
      %v3922 = vld [vmem:[%s3913 + $0x20] sm:$0xf]
      %v3923 = vld [vmem:[%s3913 + $0x24] sm:$0xf]
      %v3924 = vld [vmem:[%s3913 + $0x28] sm:$0xf]
      %v3925 = vld [vmem:[%s3913 + $0x2c] sm:$0xf]
      %v3926 = vld [vmem:[%s3913 + $0x30] sm:$0xf]
      %v3927 = vld [vmem:[%s3913 + $0x34] sm:$0xf]
      %v3928 = vld [vmem:[%s3913 + $0x38] sm:$0xf]
      %v3929 = vld [vmem:[%s3913 + $0x3c] sm:$0xf]
      %3930 = vst [vmem:[#allocation1] ss:$9 sm:$0xff] %v1071
      %s3931 = scalar_lea.vmem [#allocation1], 1
      %3932 = vst [vmem:[%s3931] ss:$9 sm:$0xff] %v1074
      %s3933 = scalar_lea.vmem [#allocation1], 2
      %3934 = vst [vmem:[%s3933] ss:$9 sm:$0xff] %v1077
      %s3935 = scalar_lea.vmem [#allocation1], 3
      %3936 = vst [vmem:[%s3935] ss:$9 sm:$0xff] %v1080
      %s3937 = scalar_lea.vmem [#allocation1], 4
      %3938 = vst [vmem:[%s3937] ss:$9 sm:$0xff] %v1083
      %s3939 = scalar_lea.vmem [#allocation1], 5
      %3940 = vst [vmem:[%s3939] ss:$9 sm:$0xff] %v1086
      %s3941 = scalar_lea.vmem [#allocation1], 6
      %3942 = vst [vmem:[%s3941] ss:$9 sm:$0xff] %v1092
      %s3943 = scalar_lea.vmem [#allocation1], 7
      %3944 = vst [vmem:[%s3943] ss:$9 sm:$0xff] %v1095
      %v3945 = vld [vmem:[#allocation1] sm:$0xff]
      %3946 = vst [vmem:[#allocation1] ss:$9 sm:$0xff] %v1098
      %3947 = vst [vmem:[%s3931] ss:$9 sm:$0xff] %v1101
      %3948 = vst [vmem:[%s3933] ss:$9 sm:$0xff] %v1104
      %3949 = vst [vmem:[%s3935] ss:$9 sm:$0xff] %v1107
      %3950 = vst [vmem:[%s3937] ss:$9 sm:$0xff] %v1113
      %3951 = vst [vmem:[%s3939] ss:$9 sm:$0xff] %v1116
      %3952 = vst [vmem:[%s3941] ss:$9 sm:$0xff] %v1119
      %3953 = vst [vmem:[%s3943] ss:$9 sm:$0xff] %v1122
      %v3954 = vld [vmem:[#allocation1] sm:$0xff]
      %3955 = vst [vmem:[#allocation1] ss:$9 sm:$0xff] %v1125
      %3956 = vst [vmem:[%s3931] ss:$9 sm:$0xff] %v1128
      %3957 = vst [vmem:[%s3933] ss:$9 sm:$0xff] %v1134
      %3958 = vst [vmem:[%s3935] ss:$9 sm:$0xff] %v1137
      %3959 = vst [vmem:[%s3937] ss:$9 sm:$0xff] %v1140
      %3960 = vst [vmem:[%s3939] ss:$9 sm:$0xff] %v1143
      %3961 = vst [vmem:[%s3941] ss:$9 sm:$0xff] %v1146
      %3962 = vst [vmem:[%s3943] ss:$9 sm:$0xff] %v1149
      %v3963 = vld [vmem:[#allocation1] sm:$0xff]
      %3964 = vst [vmem:[#allocation1] ss:$9 sm:$0xff] %v1155
      %3965 = vst [vmem:[%s3931] ss:$9 sm:$0xff] %v1158
      %3966 = vst [vmem:[%s3933] ss:$9 sm:$0xff] %v1161
      %3967 = vst [vmem:[%s3935] ss:$9 sm:$0xff] %v1164
      %3968 = vst [vmem:[%s3937] ss:$9 sm:$0xff] %v1167
      %3969 = vst [vmem:[%s3939] ss:$9 sm:$0xff] %v1170
      %3970 = vst [vmem:[%s3941] ss:$9 sm:$0xff] %v1176
      %3971 = vst [vmem:[%s3943] ss:$9 sm:$0xff] %v1179
      %v3972 = vld [vmem:[#allocation1] sm:$0xff]
      %3973 = vst [vmem:[#allocation1] ss:$9 sm:$0xff] %v1182
      %3974 = vst [vmem:[%s3931] ss:$9 sm:$0xff] %v1185
      %3975 = vst [vmem:[%s3933] ss:$9 sm:$0xff] %v1188
      %3976 = vst [vmem:[%s3935] ss:$9 sm:$0xff] %v1191
      %3977 = vst [vmem:[%s3937] ss:$9 sm:$0xff] %v1197
      %3978 = vst [vmem:[%s3939] ss:$9 sm:$0xff] %v1200
      %3979 = vst [vmem:[%s3941] ss:$9 sm:$0xff] %v1203
      %3980 = vst [vmem:[%s3943] ss:$9 sm:$0xff] %v1206
      %v3981 = vld [vmem:[#allocation1] sm:$0xff]
      %3982 = vst [vmem:[#allocation1] ss:$9 sm:$0xff] %v1209
      %3983 = vst [vmem:[%s3931] ss:$9 sm:$0xff] %v1212
      %3984 = vst [vmem:[%s3933] ss:$9 sm:$0xff] %v1218
      %3985 = vst [vmem:[%s3935] ss:$9 sm:$0xff] %v1221
      %3986 = vst [vmem:[%s3937] ss:$9 sm:$0xff] %v1224
      %3987 = vst [vmem:[%s3939] ss:$9 sm:$0xff] %v1227
      %3988 = vst [vmem:[%s3941] ss:$9 sm:$0xff] %v1230
      %3989 = vst [vmem:[%s3943] ss:$9 sm:$0xff] %v1233
      %v3990 = vld [vmem:[#allocation1] sm:$0xff]
      %3991 = vst [vmem:[#allocation1] ss:$9 sm:$0xff] %v1239
      %3992 = vst [vmem:[%s3931] ss:$9 sm:$0xff] %v1242
      %3993 = vst [vmem:[%s3933] ss:$9 sm:$0xff] %v1245
      %3994 = vst [vmem:[%s3935] ss:$9 sm:$0xff] %v1248
      %3995 = vst [vmem:[%s3937] ss:$9 sm:$0xff] %v1251
      %3996 = vst [vmem:[%s3939] ss:$9 sm:$0xff] %v1254
      %3997 = vst [vmem:[%s3941] ss:$9 sm:$0xff] %v1260
      %3998 = vst [vmem:[%s3943] ss:$9 sm:$0xff] %v1263
      %v3999 = vld [vmem:[#allocation1] sm:$0xff]
      %4000 = vst [vmem:[#allocation1] ss:$9 sm:$0xff] %v1266
      %4001 = vst [vmem:[%s3931] ss:$9 sm:$0xff] %v1269
      %4002 = vst [vmem:[%s3933] ss:$9 sm:$0xff] %v1272
      %4003 = vst [vmem:[%s3935] ss:$9 sm:$0xff] %v1275
      %4004 = vst [vmem:[%s3937] ss:$9 sm:$0xff] %v1281
      %4005 = vst [vmem:[%s3939] ss:$9 sm:$0xff] %v1284
      %4006 = vst [vmem:[%s3941] ss:$9 sm:$0xff] %v1287
      %4007 = vst [vmem:[%s3943] ss:$9 sm:$0xff] %v1290
      %v4008 = vld [vmem:[#allocation1] sm:$0xff]
      %4009 = vst [vmem:[#allocation1] ss:$9 sm:$0xff] %v1293
      %4010 = vst [vmem:[%s3931] ss:$9 sm:$0xff] %v1296
      %4011 = vst [vmem:[%s3933] ss:$9 sm:$0xff] %v1302
      %4012 = vst [vmem:[%s3935] ss:$9 sm:$0xff] %v1305
      %4013 = vst [vmem:[%s3937] ss:$9 sm:$0xff] %v1308
      %4014 = vst [vmem:[%s3939] ss:$9 sm:$0xff] %v1311
      %4015 = vst [vmem:[%s3941] ss:$9 sm:$0xff] %v1314
      %4016 = vst [vmem:[%s3943] ss:$9 sm:$0xff] %v1317
      %v4017 = vld [vmem:[#allocation1] sm:$0xff]
      %v4043 = vunpack.c.l.b16 %v3914
      %v4044 = vunpack.c.l.b16 %v3915
      %v4045 = vunpack.c.l.b16 %v3916
      %v4046 = vunpack.c.l.b16 %v3917
      %v4047 = vunpack.c.l.b16 %v3918
      %v4048 = vunpack.c.l.b16 %v3919
      %v4049 = vunpack.c.l.b16 %v3920
      %v4050 = vunpack.c.l.b16 %v3921
      %v4051 = vunpack.c.l.b16 %v3922
      %v4052 = vunpack.c.l.b16 %v3923
      %v4053 = vunpack.c.l.b16 %v3924
      %v4054 = vunpack.c.l.b16 %v3925
      %v4055 = vunpack.c.l.b16 %v3926
      %v4056 = vunpack.c.l.b16 %v3927
      %v4057 = vunpack.c.l.b16 %v3928
      %v4058 = vunpack.c.l.b16 %v3929
      %v4059 = vpack.c.b16 %v4044, %v4043
      %v4060 = vpack.c.b16 %v4046, %v4045
      %v4061 = vpack.c.b16 %v4048, %v4047
      %v4062 = vpack.c.b16 %v4050, %v4049
      %v4063 = vpack.c.b16 %v4052, %v4051
      %v4064 = vpack.c.b16 %v4054, %v4053
      %v4065 = vpack.c.b16 %v4056, %v4055
      %v4066 = vpack.c.b16 %v4058, %v4057
      %4075 = vmatpush.bf16.msra.mxu0 %v4066
      %4076 = vmatpush.bf16.msra.mxu0 %v4065
      %4077 = vmatpush.bf16.msra.mxu0 %v4064
      %4078 = vmatpush.bf16.msra.mxu0 %v4063
      %4079 = vmatpush.bf16.msra.mxu0 %v4062
      %4080 = vmatpush.bf16.msra.mxu0 %v4061
      %4081 = vmatpush.bf16.msra.mxu0 %v4060
      %4082 = vmatpush.bf16.msra.mxu0 %v4059
      %4083 = vmatmul.bf16.gmra.mxu0 %v3945
      %v4084 = vpop.f32.mrf.mxu0
      %v4085 = vadd.f32 0.0, %v4084
      %v4086 = vpop.f32.mrf.mxu0
      %v4087 = vadd.f32 0.0, %v4086
      %4088 = vmatmul.bf16.gmra.mxu0 %v3954
      %v4089 = vpop.f32.mrf.mxu0
      %v4090 = vadd.f32 0.0, %v4089
      %v4091 = vpop.f32.mrf.mxu0
      %v4092 = vadd.f32 0.0, %v4091
      %4093 = vmatmul.bf16.gmra.mxu0 %v3963
      %v4094 = vpop.f32.mrf.mxu0
      %v4095 = vadd.f32 0.0, %v4094
      %v4096 = vpop.f32.mrf.mxu0
      %v4097 = vadd.f32 0.0, %v4096
      %4098 = vmatmul.bf16.gmra.mxu0 %v3972
      %v4099 = vpop.f32.mrf.mxu0
      %v4100 = vadd.f32 0.0, %v4099
      %v4101 = vpop.f32.mrf.mxu0
      %v4102 = vadd.f32 0.0, %v4101
      %4103 = vmatmul.bf16.gmra.mxu0 %v3981
      %v4104 = vpop.f32.mrf.mxu0
      %v4105 = vadd.f32 0.0, %v4104
      %v4106 = vpop.f32.mrf.mxu0
      %v4107 = vadd.f32 0.0, %v4106
      %4108 = vmatmul.bf16.gmra.mxu0 %v3990
      %v4109 = vpop.f32.mrf.mxu0
      %v4110 = vadd.f32 0.0, %v4109
      %v4111 = vpop.f32.mrf.mxu0
      %v4112 = vadd.f32 0.0, %v4111
      %4113 = vmatmul.bf16.gmra.mxu0 %v3999
      %v4114 = vpop.f32.mrf.mxu0
      %v4115 = vadd.f32 0.0, %v4114
      %v4116 = vpop.f32.mrf.mxu0
      %v4117 = vadd.f32 0.0, %v4116
      %4118 = vmatmul.bf16.gmra.mxu0 %v4008
      %v4119 = vpop.f32.mrf.mxu0
      %v4120 = vadd.f32 0.0, %v4119
      %v4121 = vpop.f32.mrf.mxu0
      %v4122 = vadd.f32 0.0, %v4121
      %4123 = vmatmul.bf16.gmra.mxu0 %v4017
      %v4124 = vpop.f32.mrf.mxu0
      %v4125 = vadd.f32 0.0, %v4124
      %v4126 = vpop.f32.mrf.mxu0
      %v4127 = vadd.f32 0.0, %v4126
      %4128 = vdwg.mxu0
      %v4129 = vadd.f32 %v3895, %v4085
      %v4130 = vadd.f32 %v3896, %v4087
      %v4131 = vadd.f32 %v3897, %v4090
      %v4132 = vadd.f32 %v3898, %v4092
      %v4133 = vadd.f32 %v3899, %v4095
      %v4134 = vadd.f32 %v3900, %v4097
      %v4135 = vadd.f32 %v3901, %v4100
      %v4136 = vadd.f32 %v3902, %v4102
      %v4137 = vadd.f32 %v3903, %v4105
      %v4138 = vadd.f32 %v3904, %v4107
      %v4139 = vadd.f32 %v3905, %v4110
      %v4140 = vadd.f32 %v3906, %v4112
      %v4141 = vadd.f32 %v3907, %v4115
      %v4142 = vadd.f32 %v3908, %v4117
      %v4143 = vadd.f32 %v3909, %v4120
      %v4144 = vadd.f32 %v3910, %v4122
      %v4145 = vadd.f32 %v3911, %v4125
      %v4146 = vadd.f32 %v3912, %v4127
      %v4147 = vld [vmem:[%s4] sm:$0x1]
      %v4149 = vperm.slane %v4147, 0
      %v4151 = vadd.f32 %v4129, %v4149
      %v4152 = vadd.f32 %v4130, %v4149
      %v4153 = vadd.f32 %v4131, %v4149
      %v4154 = vadd.f32 %v4132, %v4149
      %v4155 = vadd.f32 %v4133, %v4149
      %v4156 = vadd.f32 %v4134, %v4149
      %v4157 = vadd.f32 %v4135, %v4149
      %v4158 = vadd.f32 %v4136, %v4149
      %v4159 = vadd.f32 %v4137, %v4149
      %v4160 = vadd.f32 %v4138, %v4149
      %v4161 = vadd.f32 %v4139, %v4149
      %v4162 = vadd.f32 %v4140, %v4149
      %v4163 = vadd.f32 %v4141, %v4149
      %v4164 = vadd.f32 %v4142, %v4149
      %v4165 = vadd.f32 %v4143, %v4149
      %v4166 = vadd.f32 %v4144, %v4149
      %v4167 = vadd.f32 %v4145, %v4149
      %v4168 = vadd.f32 %v4146, %v4149
      %v4169 = vmax.f32 %v4151, 0.0
      %v4170 = vmax.f32 %v4152, 0.0
      %v4171 = vmax.f32 %v4153, 0.0
      %v4172 = vmax.f32 %v4154, 0.0
      %v4173 = vmax.f32 %v4155, 0.0
      %v4174 = vmax.f32 %v4156, 0.0
      %v4175 = vmax.f32 %v4157, 0.0
      %v4176 = vmax.f32 %v4158, 0.0
      %v4177 = vmax.f32 %v4159, 0.0
      %v4178 = vmax.f32 %v4160, 0.0
      %v4179 = vmax.f32 %v4161, 0.0
      %v4180 = vmax.f32 %v4162, 0.0
      %v4181 = vmax.f32 %v4163, 0.0
      %v4182 = vmax.f32 %v4164, 0.0
      %v4183 = vmax.f32 %v4165, 0.0
      %v4184 = vmax.f32 %v4166, 0.0
      %v4185 = vmax.f32 %v4167, 0.0
      %v4186 = vmax.f32 %v4168, 0.0
      %v4205 = vrot.slane %v4169, 4
      %v4206 = vrot.slane %v4170, 4
      %v4207 = vrot.slane %v4171, 4
      %v4208 = vrot.slane %v4172, 4
      %v4209 = vrot.slane %v4173, 4
      %v4210 = vrot.slane %v4174, 4
      %v4211 = vrot.slane %v4175, 4
      %v4212 = vrot.slane %v4176, 4
      %v4213 = vrot.slane %v4177, 4
      %v4214 = vrot.slane %v4178, 4
      %v4215 = vrot.slane %v4179, 4
      %v4216 = vrot.slane %v4180, 4
      %v4217 = vrot.slane %v4181, 4
      %v4218 = vrot.slane %v4182, 4
      %v4219 = vrot.slane %v4183, 4
      %v4220 = vrot.slane %v4184, 4
      %v4221 = vrot.slane %v4185, 4
      %v4222 = vrot.slane %v4186, 4
      %4223 = vst [vmem:[#allocation1] ss:$2 sm:$0xff] %v4169
      %s4224 = scalar_lea.vmem [#allocation1], 1
      %4225 = vst [vmem:[%s4224] ss:$2 sm:$0xff] %v4205
      %s4226 = scalar_lea.vmem [#allocation1], 16
      %4227 = vst [vmem:[%s4226] ss:$2 sm:$0xff] %v4170
      %v4228 = vld.sshfl [vmem:[#allocation1] sm:$0xff pattern:$0x75316420]
      %v4229 = vld.sshfl [vmem:[#allocation1 + $0x10] sm:$0xff pattern:$0x75316420]
      %s4230 = scalar_lea.vmem [#allocation1], 32
      %4231 = vst [vmem:[%s4230] ss:$2 sm:$0xff] %v4206
      %s4232 = scalar_lea.vmem [#allocation1], 33
      %4233 = vst [vmem:[%s4232] ss:$2 sm:$0xff] %v4171
      %s4234 = scalar_lea.vmem [#allocation1], 48
      %4235 = vst [vmem:[%s4234] ss:$2 sm:$0xff] %v4207
      %v4236 = vld.sshfl [vmem:[#allocation1 + $0x20] sm:$0xff pattern:$0x75316420]
      %v4237 = vld.sshfl [vmem:[#allocation1 + $0x30] sm:$0xff pattern:$0x75316420]
      %4238 = vst [vmem:[#allocation1] ss:$2 sm:$0xff] %v4172
      %4239 = vst [vmem:[%s4224] ss:$2 sm:$0xff] %v4208
      %4240 = vst [vmem:[%s4226] ss:$2 sm:$0xff] %v4173
      %v4241 = vld.sshfl [vmem:[#allocation1] sm:$0xff pattern:$0x75316420]
      %v4242 = vld.sshfl [vmem:[#allocation1 + $0x10] sm:$0xff pattern:$0x75316420]
      %4243 = vst [vmem:[%s4230] ss:$2 sm:$0xff] %v4209
      %4244 = vst [vmem:[%s4232] ss:$2 sm:$0xff] %v4174
      %4245 = vst [vmem:[%s4234] ss:$2 sm:$0xff] %v4210
      %v4246 = vld.sshfl [vmem:[#allocation1 + $0x20] sm:$0xff pattern:$0x75316420]
      %v4247 = vld.sshfl [vmem:[#allocation1 + $0x30] sm:$0xff pattern:$0x75316420]
      %4248 = vst [vmem:[#allocation1] ss:$2 sm:$0xff] %v4175
      %4249 = vst [vmem:[%s4224] ss:$2 sm:$0xff] %v4211
      %4250 = vst [vmem:[%s4226] ss:$2 sm:$0xff] %v4176
      %v4251 = vld.sshfl [vmem:[#allocation1] sm:$0xff pattern:$0x75316420]
      %v4252 = vld.sshfl [vmem:[#allocation1 + $0x10] sm:$0xff pattern:$0x75316420]
      %4253 = vst [vmem:[%s4230] ss:$2 sm:$0xff] %v4212
      %4254 = vst [vmem:[%s4232] ss:$2 sm:$0xff] %v4177
      %4255 = vst [vmem:[%s4234] ss:$2 sm:$0xff] %v4213
      %v4256 = vld.sshfl [vmem:[#allocation1 + $0x20] sm:$0xff pattern:$0x75316420]
      %v4257 = vld.sshfl [vmem:[#allocation1 + $0x30] sm:$0xff pattern:$0x75316420]
      %4258 = vst [vmem:[#allocation1] ss:$2 sm:$0xff] %v4178
      %4259 = vst [vmem:[%s4224] ss:$2 sm:$0xff] %v4214
      %4260 = vst [vmem:[%s4226] ss:$2 sm:$0xff] %v4179
      %v4261 = vld.sshfl [vmem:[#allocation1] sm:$0xff pattern:$0x75316420]
      %v4262 = vld.sshfl [vmem:[#allocation1 + $0x10] sm:$0xff pattern:$0x75316420]
      %4263 = vst [vmem:[%s4230] ss:$2 sm:$0xff] %v4215
      %4264 = vst [vmem:[%s4232] ss:$2 sm:$0xff] %v4180
      %4265 = vst [vmem:[%s4234] ss:$2 sm:$0xff] %v4216
      %v4266 = vld.sshfl [vmem:[#allocation1 + $0x20] sm:$0xff pattern:$0x75316420]
      %v4267 = vld.sshfl [vmem:[#allocation1 + $0x30] sm:$0xff pattern:$0x75316420]
      %4268 = vst [vmem:[#allocation1] ss:$2 sm:$0xff] %v4181
      %4269 = vst [vmem:[%s4224] ss:$2 sm:$0xff] %v4217
      %4270 = vst [vmem:[%s4226] ss:$2 sm:$0xff] %v4182
      %v4271 = vld.sshfl [vmem:[#allocation1] sm:$0xff pattern:$0x75316420]
      %v4272 = vld.sshfl [vmem:[#allocation1 + $0x10] sm:$0xff pattern:$0x75316420]
      %4273 = vst [vmem:[%s4230] ss:$2 sm:$0xff] %v4218
      %4274 = vst [vmem:[%s4232] ss:$2 sm:$0xff] %v4183
      %4275 = vst [vmem:[%s4234] ss:$2 sm:$0xff] %v4219
      %v4276 = vld.sshfl [vmem:[#allocation1 + $0x20] sm:$0xff pattern:$0x75316420]
      %v4277 = vld.sshfl [vmem:[#allocation1 + $0x30] sm:$0xff pattern:$0x75316420]
      %4278 = vst [vmem:[#allocation1] ss:$2 sm:$0xff] %v4184
      %4279 = vst [vmem:[%s4224] ss:$2 sm:$0xff] %v4220
      %4280 = vst [vmem:[%s4226] ss:$2 sm:$0xff] %v4185
      %v4281 = vld.sshfl [vmem:[#allocation1] sm:$0xff pattern:$0x75316420]
      %v4282 = vld.sshfl [vmem:[#allocation1 + $0x10] sm:$0xff pattern:$0x75316420]
      %4283 = vst [vmem:[%s4230] ss:$2 sm:$0xff] %v4221
      %4284 = vst [vmem:[%s4232] ss:$2 sm:$0xff] %v4186
      %4285 = vst [vmem:[%s4234] ss:$2 sm:$0xff] %v4222
      %v4286 = vld.sshfl [vmem:[#allocation1 + $0x20] sm:$0xff pattern:$0x75316420]
      %v4287 = vld.sshfl [vmem:[#allocation1 + $0x30] sm:$0xff pattern:$0x75316420]
      %vm4312 = vcmask 64512
      %4313 = vst.msk [vmem:[%s224] sm:$0xff] %vm4312, %v4228
      %vm4314 = vcmask 60416
      %4315 = vst.msk [vmem:[%s224 + $0x8] sm:$0xf] %vm4314, %v4229
      %4316 = vst.msk [vmem:[%s224 + $0x10] sm:$0xff] %vm4312, %v4236
      %4317 = vst.msk [vmem:[%s224 + $0x18] sm:$0xf] %vm4314, %v4237
      %4318 = vst.msk [vmem:[%s224 + $0x20] sm:$0xff] %vm4312, %v4241
      %4319 = vst.msk [vmem:[%s224 + $0x28] sm:$0xf] %vm4314, %v4242
      %4320 = vst.msk [vmem:[%s224 + $0x30] sm:$0xff] %vm4312, %v4246
      %4321 = vst.msk [vmem:[%s224 + $0x38] sm:$0xf] %vm4314, %v4247
      %4322 = vst.msk [vmem:[%s224 + $0x40] sm:$0xff] %vm4312, %v4251
      %4323 = vst.msk [vmem:[%s224 + $0x48] sm:$0xf] %vm4314, %v4252
      %4324 = vst.msk [vmem:[%s224 + $0x50] sm:$0xff] %vm4312, %v4256
      %4325 = vst.msk [vmem:[%s224 + $0x58] sm:$0xf] %vm4314, %v4257
      %4326 = vst.msk [vmem:[%s224 + $0x60] sm:$0xff] %vm4312, %v4261
      %4327 = vst.msk [vmem:[%s224 + $0x68] sm:$0xf] %vm4314, %v4262
      %4328 = vst.msk [vmem:[%s224 + $0x70] sm:$0xff] %vm4312, %v4266
      %4329 = vst.msk [vmem:[%s224 + $0x78] sm:$0xf] %vm4314, %v4267
      %4330 = vst.msk [vmem:[%s224 + $0x80] sm:$0xff] %vm4312, %v4271
      %4331 = vst.msk [vmem:[%s224 + $0x88] sm:$0xf] %vm4314, %v4272
      %4332 = vst.msk [vmem:[%s224 + $0x90] sm:$0xff] %vm4312, %v4276
      %4333 = vst.msk [vmem:[%s224 + $0x98] sm:$0xf] %vm4314, %v4277
      %4334 = vst.msk [vmem:[%s224 + $0xa0] sm:$0xff] %vm4312, %v4281
      %4335 = vst.msk [vmem:[%s224 + $0xa8] sm:$0xf] %vm4314, %v4282
      %4336 = vst.msk [vmem:[%s224 + $0xb0] sm:$0xff] %vm4312, %v4286
      %4337 = vst.msk [vmem:[%s224 + $0xb8] sm:$0xf] %vm4314, %v4287
      %p4338 = scmp.lt.s32.totalorder %s16, 1
      %s4339 = scalar_select %p4338, %s16, 1
      %s4340 = smul.addr %s4339, 24
      %s4341 = smul.addr %s4340, 8
      %s4342 = scalar_lea.vmem %s5, %s4341
      // Predicated region
      $region41: #{block_forward_nhwc.1} parent=39 // pred_check
        %p4343 = pneg %p144
      $region42: #{block_forward_nhwc.1} parent=39 // pred_check_branch
        %4345 = sbr.rel (%p4343) target = $region44
      $region43: #{block_forward_nhwc.1} parent=39 // pred_region
        _
      $region44: #{block_forward_nhwc.1} parent=39 // pred_fallthru
        _
    $region40: #{block_forward_nhwc.1} parent=5 // pred_fallthru
      _
    %p4346 = scmp.le.s32.totalorder 2, %s11
    // Predicated region
    $region45: #{block_forward_nhwc.1} parent=5 // pred_check
      %p4347 = pneg %p4346
    $region46: #{block_forward_nhwc.1} parent=5 // pred_check_branch
      %4349 = sbr.rel (%p4347) target = $region48
    $region47: #{block_forward_nhwc.1} parent=5 // pred_region
      %s4350 = ssub.s32 %s11, 2
      // Predicated region
      $region49: #{block_forward_nhwc.1} parent=47 // pred_check
        %p4351 = pneg %p150
      $region50: #{block_forward_nhwc.1} parent=47 // pred_check_branch
        %4353 = sbr.rel (%p4351) target = $region52
      $region51: #{block_forward_nhwc.1} parent=47 // pred_region
        %p4354 = scmp.lt.s32.totalorder %s17, 1
        %s4355 = scalar_select %p4354, %s17, 1
        %s4356 = smul.addr %s4355, 24
        %s4357 = smul.addr %s4356, 8
        %s4358 = scalar_lea.vmem %s5, %s4357
      $region52: #{block_forward_nhwc.1} parent=47 // pred_fallthru
        _
    $region48: #{block_forward_nhwc.1} parent=5 // pred_fallthru
      _
  $region6: #{block_forward_nhwc.1} parent=0 // loop_footer
    %s15 = sadd.s32 1, %s11
  $region7: #{block_forward_nhwc.1} parent=0 // loop_footer_branch
    %10 = sbr.rel target = $region3
  $region8: #{block_forward_nhwc.1} parent=0 // loop_exit
    _

</llo_original>
